<compile_context>
chip_gen: v6e
topology: v6e:2x2x1
jax: 0.10.0
libtpu: 0.0.40
codegen_flags: <defaults>
</compile_context>

<pallas_src>
import functools

import jax
import jax.numpy as jnp
from jax.experimental import pallas as pl
from jax.experimental.pallas import tpu as pltpu

# ---- module hyperparameters (from LSTMFluPredictor.__init__) -------------
N_PREDICT_WEEKS = 5
INPUT_DIM = 1 + 2          # weather feature 0, ili_past, tot_cases_past
NUM_LAYERS = 3
HIDDEN_DIM = 64


# ---------------------------------------------------------------------------
# Glue: move_padding_to_end (stable compaction, exact torch semantics)
# ---------------------------------------------------------------------------
def move_padding_to_end(x, mask):
    """x: (B, T, D) f32, mask: (B, T) bool (True = valid)."""
    T = x.shape[1]
    order = jnp.argsort(jnp.logical_not(mask).astype(jnp.int32), axis=1, stable=True)
    new_x = jnp.take_along_axis(x, order[:, :, None], axis=1)
    seq_len = jnp.sum(mask.astype(jnp.int32), axis=1)
    new_mask = jnp.arange(T)[None, :] < seq_len[:, None]
    new_x = jnp.where(new_mask[:, :, None], new_x, 0.0)          # zero the tail
    return new_x, new_mask


# ---------------------------------------------------------------------------
# Pallas kernel: 3-layer LSTM wavefront + last-state gather + FC head
# ---------------------------------------------------------------------------
def _lstm_kernel(xw0_ref, tgt_ref, ili_ref, whh_ref, wih_ref, b_ref,
                 wfc_ref, bfc_ref, out_ref, *, hidden_dim, seq_len, tile_b):
    T, B, H = seq_len, tile_b, hidden_dim
    tgt = tgt_ref[...]                                     # (B, 1) i32: lengths-1

    def cell(gates, c):
        # gate order (i, f, o, g): one transcendental covers all three sigmoids,
        # one covers tanh(g).  sigmoid(x) = 0.5*(1 + tanh(0.5*x)).
        sig = 0.5 * (jnp.tanh(0.5 * gates[:, :3 * H]) + 1.0)
        g = jnp.tanh(gates[:, 3 * H:])
        c_new = sig[:, H:2 * H] * c + sig[:, :H] * g       # f * c + i * g
        h_new = sig[:, 2 * H:3 * H] * jnp.tanh(c_new)      # o * tanh(c)
        return h_new, c_new

    zeros = jnp.zeros((B, H), jnp.float32)
    h0 = c0 = h1 = c1 = h2 = c2 = zeros
    out01 = out12 = zeros        # hidden handed down one layer, one step late
    last = zeros

    # Layer wavefront: serial step s computes L0@t=s, L1@t=s-1, L2@t=s-2;
    # the three chains within a step are mutually independent.
    # TODO(synk): for T >~ 16 switch to lax.fori_loop(..., unroll=4..8) to cap
    # code size / vreg live ranges; full unroll is right at these toy lengths.
    for s in range(T + NUM_LAYERS - 1):
        n01, n12 = out01, out12
        if s < T:                                          # layer 0 @ t = s
            gates = xw0_ref[s] + jnp.dot(h0.astype(jnp.bfloat16), whh_ref[0],
                                         preferred_element_type=jnp.float32)
            h0, c0 = cell(gates, c0)
            n01 = h0
        if 0 <= s - 1 < T:                                 # layer 1 @ t = s-1
            gates = (jnp.dot(out01.astype(jnp.bfloat16), wih_ref[0],
                             preferred_element_type=jnp.float32)
                     + jnp.dot(h1.astype(jnp.bfloat16), whh_ref[1],
                               preferred_element_type=jnp.float32)
                     + b_ref[0])
            h1, c1 = cell(gates, c1)
            n12 = h1
        if 0 <= s - 2 < T:                                 # layer 2 @ t = s-2
            t2 = s - 2
            gates = (jnp.dot(out12.astype(jnp.bfloat16), wih_ref[1],
                             preferred_element_type=jnp.float32)
                     + jnp.dot(h2.astype(jnp.bfloat16), whh_ref[2],
                               preferred_element_type=jnp.float32)
                     + b_ref[1])
            h2, c2 = cell(gates, c2)
            last = jnp.where(tgt == t2, h2, last)          # h at t == lengths-1
        out01, out12 = n01, n12

    # fc head + residual add of ili_past[:, -1] on column 0
    pred = jnp.dot(last.astype(jnp.bfloat16), wfc_ref[...],
                   preferred_element_type=jnp.float32) + bfc_ref[...]
    col = jax.lax.broadcasted_iota(jnp.int32, pred.shape, 1)
    pred = pred + jnp.where(col == 0, ili_ref[...], 0.0)
    out_ref[...] = pred


# ---------------------------------------------------------------------------
# Wrapper (forward pass)
# ---------------------------------------------------------------------------
def lstm_flu_predictor_forward(params, weather, mask, weather_index, coords,
                               ili_past, tot_cases_past):
    del weather_index, coords                  # unused in the reference forward
    B, T, _ = weather.shape
    H = HIDDEN_DIM
    Bp = ((B + 7) // 8) * 8                    # pad batch to full sublanes
    TB = 128                                   # batch tile per grid step
    while Bp % TB:
        TB //= 2                               # Bp % 8 == 0, so TB >= 8

    combined = jnp.concatenate(
        [weather[:, :, 0:1], ili_past[..., None], tot_cases_past[..., None]],
        axis=-1)                               # (B, T, 3): weather_indices = [0]
    combined, new_mask = move_padding_to_end(combined, mask)
    # lengths = (~mask).sum(dim=1) on the re-arranged mask, exactly as in the
    # torch forward (counts PAD positions).
    # TODO(synk): replicated verbatim from the original code; confirm against
    # the trained torch model whether valid lengths were intended.
    lengths = jnp.sum(jnp.logical_not(new_mask).astype(jnp.int32), axis=1)

    # Layer-0 input projection (input_dim = 3) as a plain XLA matmul; time-major.
    xw0 = jnp.einsum("btf,fg->btg", combined, params["w_ih0_t"]) + params["b0"]
    xw0 = jnp.transpose(xw0, (1, 0, 2))                              # (T, B, 4H)
    xw0 = jnp.zeros((T, Bp, 4 * H), jnp.float32).at[:, :B, :].set(xw0)

    tgt = jnp.full((Bp, 1), -1, jnp.int32).at[:B, 0].set(lengths - 1)
    ili_last = jnp.zeros((Bp, 1), jnp.float32).at[:B, 0].set(ili_past[:, -1])

    kernel = functools.partial(_lstm_kernel, hidden_dim=H, seq_len=T, tile_b=TB)

    def full_spec(shape):
        return pl.BlockSpec(shape, lambda b, _n=len(shape): (0,) * _n)

    pred = pl.pallas_call(
        kernel,
        out_shape=jax.ShapeDtypeStruct((Bp, N_PREDICT_WEEKS), jnp.float32),
        grid=(Bp // TB,),
        in_specs=[
            pl.BlockSpec((T, TB, 4 * H), lambda b: (0, b, 0)),       # xw0
            pl.BlockSpec((TB, 1), lambda b: (b, 0)),                 # tgt
            pl.BlockSpec((TB, 1), lambda b: (b, 0)),                 # ili_last
            full_spec(params["w_hh_t"].shape),                       # (3, H, 4H)
            full_spec(params["w_ih_t"].shape),                       # (2, H, 4H)
            full_spec(params["b12"].shape),                          # (2, 1, 4H)
            full_spec(params["w_fc_t"].shape),                       # (H, P)
            full_spec(params["b_fc"].shape),                         # (1, P)
        ],
        out_specs=pl.BlockSpec((TB, N_PREDICT_WEEKS), lambda b: (b, 0)),
        compiler_params=pltpu.CompilerParams(
            dimension_semantics=("parallel",),   # v7x: batch tiles on both TCs
            vmem_limit_bytes=32 * 1024 * 1024,
        ),
    )(xw0, tgt, ili_last,
      params["w_hh_t"], params["w_ih_t"], params["b12"],
      params["w_fc_t"], params["b_fc"])
    return pred[:B]


# ---------------------------------------------------------------------------
# Parameters: PyTorch-layout f32 init + kernel-layout packing
# ---------------------------------------------------------------------------
def _reorder_gates(w, axis=0):
    """torch gate order (i, f, g, o) -> kernel order (i, f, o, g)."""
    i, f, g, o = jnp.split(w, 4, axis=axis)
    return jnp.concatenate([i, f, o, g], axis=axis)


def init_raw_params(key):
    """PyTorch-style f32 parameters, U(-1/sqrt(H), 1/sqrt(H)) init."""
    H = HIDDEN_DIM
    bound = 1.0 / (H ** 0.5)
    ks = jax.random.split(key, 4 * NUM_LAYERS + 2)
    raw = {"w_ih": [], "w_hh": [], "b_ih": [], "b_hh": []}
    for l in range(NUM_LAYERS):
        in_dim = INPUT_DIM if l == 0 else H
        k0, k1, k2, k3 = ks[4 * l:4 * l + 4]
        raw["w_ih"].append(jax.random.uniform(k0, (4 * H, in_dim), jnp.float32, -bound, bound))
        raw["w_hh"].append(jax.random.uniform(k1, (4 * H, H), jnp.float32, -bound, bound))
        raw["b_ih"].append(jax.random.uniform(k2, (4 * H,), jnp.float32, -bound, bound))
        raw["b_hh"].append(jax.random.uniform(k3, (4 * H,), jnp.float32, -bound, bound))
    raw["w_fc"] = jax.random.uniform(ks[-2], (N_PREDICT_WEEKS, H), jnp.float32, -bound, bound)
    raw["b_fc"] = jax.random.uniform(ks[-1], (N_PREDICT_WEEKS,), jnp.float32, -bound, bound)
    return raw


def pack_params(raw):
    """Kernel layout: gates reordered to (i,f,o,g), weights transposed, bf16
    matmul operands (f32 MXU accumulation); biases stay f32."""
    H = HIDDEN_DIM
    w_hh_t = jnp.stack([_reorder_gates(w).T for w in raw["w_hh"]])           # (3,H,4H)
    w_ih_t = jnp.stack([_reorder_gates(w).T for w in raw["w_ih"][1:]])       # (2,H,4H)
    b12 = jnp.stack([_reorder_gates(raw["b_ih"][l] + raw["b_hh"][l]).reshape(1, 4 * H)
                     for l in range(1, NUM_LAYERS)])                         # (2,1,4H)
    return {
        "w_ih0_t": _reorder_gates(raw["w_ih"][0]).T,                         # (3,4H) f32, wrapper-side
        "b0": _reorder_gates(raw["b_ih"][0] + raw["b_hh"][0]).reshape(1, 1, 4 * H),
        "w_hh_t": w_hh_t.astype(jnp.bfloat16),
        "w_ih_t": w_ih_t.astype(jnp.bfloat16),
        "b12": b12,
        "w_fc_t": raw["w_fc"].T.astype(jnp.bfloat16),                        # (H, P)
        "b_fc": raw["b_fc"].reshape(1, -1),                                  # (1, P)
    }


# ---------------------------------------------------------------------------
# Pure-JAX reference (layer-sequential scan, torch gate order, same bf16
# matmul-operand rounding) for a correctness check
# ---------------------------------------------------------------------------
def reference_forward(raw, weather, mask, weather_index, coords,
                      ili_past, tot_cases_past):
    del weather_index, coords
    B, T, _ = weather.shape
    H = HIDDEN_DIM
    combined = jnp.concatenate(
        [weather[:, :, 0:1], ili_past[..., None], tot_cases_past[..., None]], axis=-1)
    combined, new_mask = move_padding_to_end(combined, mask)
    lengths = jnp.sum(jnp.logical_not(new_mask).astype(jnp.int32), axis=1)

    seq = None
    for l in range(NUM_LAYERS):
        b = (raw["b_ih"][l] + raw["b_hh"][l]).reshape(1, 4 * H)
        if l == 0:
            xw = jnp.einsum("btf,fg->btg", combined, raw["w_ih"][0].T) + b
            xw = jnp.transpose(xw, (1, 0, 2))                        # (T,B,4H)
        else:
            xw = jnp.einsum("tbh,hg->tbg", seq.astype(jnp.bfloat16),
                            raw["w_ih"][l].T.astype(jnp.bfloat16),
                            preferred_element_type=jnp.float32) + b
        whh = raw["w_hh"][l].T.astype(jnp.bfloat16)                  # (H,4H)

        def step(carry, xw_t, whh=whh):
            h, c = carry
            gates = xw_t + jnp.dot(h.astype(jnp.bfloat16), whh,
                                   preferred_element_type=jnp.float32)
            i = jax.nn.sigmoid(gates[:, :H])
            f = jax.nn.sigmoid(gates[:, H:2 * H])
            g = jnp.tanh(gates[:, 2 * H:3 * H])
            o = jax.nn.sigmoid(gates[:, 3 * H:])
            c = f * c + i * g
            h = o * jnp.tanh(c)
            return (h, c), h

        zero = jnp.zeros((B, H), jnp.float32)
        (_, _), seq = jax.lax.scan(step, (zero, zero), xw)           # (T,B,H)

    tgt = lengths - 1
    last = seq[jnp.clip(tgt, 0, T - 1), jnp.arange(B)]
    last = jnp.where((tgt >= 0)[:, None], last, 0.0)
    pred = jnp.dot(last.astype(jnp.bfloat16), raw["w_fc"].T.astype(jnp.bfloat16),
                   preferred_element_type=jnp.float32) + raw["b_fc"].reshape(1, -1)
    pred = pred.at[:, 0].add(ili_past[:, -1])
    return pred


if __name__ == "__main__":
    key = jax.random.PRNGKey(0)
    B, T, F = 4, 8, 3
    k_params, kw, ki, kt = jax.random.split(key, 4)

    raw = init_raw_params(k_params)
    params = pack_params(raw)

    weather = jax.random.normal(kw, (B, T, F), jnp.float32)
    ili_past = jax.random.normal(ki, (B, T), jnp.float32)
    tot_cases_past = jax.random.normal(kt, (B, T), jnp.float32)
    coords = jnp.zeros((B, 2), jnp.float32)            # unused in forward
    weather_index = jnp.zeros((B,), jnp.int32)         # unused in forward
    # mask: padding (0) at the beginning, valid (1) afterwards
    pad_counts = jnp.array([3, 5, 2, 4], jnp.int32)
    mask = jnp.arange(T)[None, :] >= pad_counts[:, None]          # (B, T) bool

    pred = lstm_flu_predictor_forward(params, weather, mask, weather_index,
                                      coords, ili_past, tot_cases_past)
    pred = jax.block_until_ready(pred)

    ref = reference_forward(raw, weather, mask, weather_index, coords,
                            ili_past, tot_cases_past)
    assert pred.shape == (B, N_PREDICT_WEEKS)
    assert jnp.allclose(pred, ref, atol=5e-3, rtol=5e-3), (pred, ref)
    print("KERNEL_OK")
</pallas_src>

<mosaic_0001>
module attributes {stable_mosaic.version = 11 : i64} {
  func.func @_lstm_kernel(%arg0: i32, %arg1: memref<8x8x256xf32, #tpu.memory_space<vmem>>, %arg2: memref<8x1xi32, #tpu.memory_space<vmem>>, %arg3: memref<8x1xf32, #tpu.memory_space<vmem>>, %arg4: memref<3x64x256xbf16, #tpu.memory_space<vmem>>, %arg5: memref<2x64x256xbf16, #tpu.memory_space<vmem>>, %arg6: memref<2x1x256xf32, #tpu.memory_space<vmem>>, %arg7: memref<64x5xbf16, #tpu.memory_space<vmem>>, %arg8: memref<1x5xf32, #tpu.memory_space<vmem>>, %arg9: memref<8x5xf32, #tpu.memory_space<vmem>>) attributes {dimension_semantics = [#tpu.dimension_semantics<parallel>], iteration_bounds = array<i64: 1>, scalar_prefetch = 0 : i64, scratch_operands = 0 : i64, tpu.core_type = #tpu.core_type<tc>, window_params = [{transform_indices = @transform_0, window_bounds = array<i64: 8, 8, 256>}, {transform_indices = @transform_1, window_bounds = array<i64: 8, 1>}, {transform_indices = @transform_2, window_bounds = array<i64: 8, 1>}, {pipeline_mode = #tpu.pipeline_mode<synchronous>, transform_indices = @transform_3, window_bounds = array<i64: 3, 64, 256>}, {pipeline_mode = #tpu.pipeline_mode<synchronous>, transform_indices = @transform_4, window_bounds = array<i64: 2, 64, 256>}, {pipeline_mode = #tpu.pipeline_mode<synchronous>, transform_indices = @transform_5, window_bounds = array<i64: 2, 1, 256>}, {pipeline_mode = #tpu.pipeline_mode<synchronous>, transform_indices = @transform_6, window_bounds = array<i64: 64, 5>}, {pipeline_mode = #tpu.pipeline_mode<synchronous>, transform_indices = @transform_7, window_bounds = array<i64: 1, 5>}, {transform_indices = @transform_8, window_bounds = array<i64: 8, 5>}]} {
    %c0 = arith.constant 0 : index
    %c0_0 = arith.constant 0 : index
    %0 = vector.load %arg2[%c0, %c0_0] : memref<8x1xi32, #tpu.memory_space<vmem>>, vector<8x1xi32>
    %cst = arith.constant 0.000000e+00 : f32
    %1 = vector.broadcast %cst : f32 to vector<8x64xf32>
    %c0_1 = arith.constant 0 : index
    %c0_2 = arith.constant 0 : index
    %c0_3 = arith.constant 0 : index
    %2 = vector.load %arg1[%c0_1, %c0_2, %c0_3] : memref<8x8x256xf32, #tpu.memory_space<vmem>>, vector<1x8x256xf32>
    %3 = vector.shape_cast %2 : vector<1x8x256xf32> to vector<8x256xf32>
    %4 = arith.truncf %1 : vector<8x64xf32> to vector<8x64xbf16>
    %c0_4 = arith.constant 0 : index
    %c0_5 = arith.constant 0 : index
    %c0_6 = arith.constant 0 : index
    %5 = vector.load %arg4[%c0_4, %c0_5, %c0_6] : memref<3x64x256xbf16, #tpu.memory_space<vmem>>, vector<1x64x256xbf16>
    %6 = vector.shape_cast %5 : vector<1x64x256xbf16> to vector<64x256xbf16>
    %cst_7 = arith.constant dense<0.000000e+00> : vector<8x256xf32>
    %7 = tpu.matmul %4, %6, %cst_7 {dimension_numbers = #tpu.dot_dimension_numbers<[1], [0], [0], [1], [0, 0, 1, 1], [], []>} : vector<8x64xbf16>, vector<64x256xbf16>, vector<8x256xf32> -> vector<8x256xf32>
    %8 = arith.addf %3, %7 : vector<8x256xf32>
    %9 = vector.extract_strided_slice %8 {offsets = [0, 0], sizes = [8, 192], strides = [1, 1]} : vector<8x256xf32> to vector<8x192xf32>
    %cst_8 = arith.constant 5.000000e-01 : f32
    %10 = vector.broadcast %cst_8 : f32 to vector<8x192xf32>
    %11 = arith.mulf %10, %9 : vector<8x192xf32>
    %12 = math.tanh %11 : vector<8x192xf32>
    %cst_9 = arith.constant 1.000000e+00 : f32
    %13 = vector.broadcast %cst_9 : f32 to vector<8x192xf32>
    %14 = arith.addf %12, %13 : vector<8x192xf32>
    %cst_10 = arith.constant 5.000000e-01 : f32
    %15 = vector.broadcast %cst_10 : f32 to vector<8x192xf32>
    %16 = arith.mulf %15, %14 : vector<8x192xf32>
    %17 = vector.extract_strided_slice %8 {offsets = [0, 192], sizes = [8, 64], strides = [1, 1]} : vector<8x256xf32> to vector<8x64xf32>
    %18 = math.tanh %17 : vector<8x64xf32>
    %19 = vector.extract_strided_slice %16 {offsets = [0, 64], sizes = [8, 64], strides = [1, 1]} : vector<8x192xf32> to vector<8x64xf32>
    %20 = arith.mulf %19, %1 : vector<8x64xf32>
    %21 = vector.extract_strided_slice %16 {offsets = [0, 0], sizes = [8, 64], strides = [1, 1]} : vector<8x192xf32> to vector<8x64xf32>
    %22 = arith.mulf %21, %18 : vector<8x64xf32>
    %23 = arith.addf %20, %22 : vector<8x64xf32>
    %24 = vector.extract_strided_slice %16 {offsets = [0, 128], sizes = [8, 64], strides = [1, 1]} : vector<8x192xf32> to vector<8x64xf32>
    %25 = math.tanh %23 : vector<8x64xf32>
    %26 = arith.mulf %24, %25 : vector<8x64xf32>
    %c1 = arith.constant 1 : index
    %c0_11 = arith.constant 0 : index
    %c0_12 = arith.constant 0 : index
    %27 = vector.load %arg1[%c1, %c0_11, %c0_12] : memref<8x8x256xf32, #tpu.memory_space<vmem>>, vector<1x8x256xf32>
    %28 = vector.shape_cast %27 : vector<1x8x256xf32> to vector<8x256xf32>
    %29 = arith.truncf %26 : vector<8x64xf32> to vector<8x64xbf16>
    %c0_13 = arith.constant 0 : index
    %c0_14 = arith.constant 0 : index
    %c0_15 = arith.constant 0 : index
    %30 = vector.load %arg4[%c0_13, %c0_14, %c0_15] : memref<3x64x256xbf16, #tpu.memory_space<vmem>>, vector<1x64x256xbf16>
    %31 = vector.shape_cast %30 : vector<1x64x256xbf16> to vector<64x256xbf16>
    %cst_16 = arith.constant dense<0.000000e+00> : vector<8x256xf32>
    %32 = tpu.matmul %29, %31, %cst_16 {dimension_numbers = #tpu.dot_dimension_numbers<[1], [0], [0], [1], [0, 0, 1, 1], [], []>} : vector<8x64xbf16>, vector<64x256xbf16>, vector<8x256xf32> -> vector<8x256xf32>
    %33 = arith.addf %28, %32 : vector<8x256xf32>
    %34 = vector.extract_strided_slice %33 {offsets = [0, 0], sizes = [8, 192], strides = [1, 1]} : vector<8x256xf32> to vector<8x192xf32>
    %cst_17 = arith.constant 5.000000e-01 : f32
    %35 = vector.broadcast %cst_17 : f32 to vector<8x192xf32>
    %36 = arith.mulf %35, %34 : vector<8x192xf32>
    %37 = math.tanh %36 : vector<8x192xf32>
    %cst_18 = arith.constant 1.000000e+00 : f32
    %38 = vector.broadcast %cst_18 : f32 to vector<8x192xf32>
    %39 = arith.addf %37, %38 : vector<8x192xf32>
    %cst_19 = arith.constant 5.000000e-01 : f32
    %40 = vector.broadcast %cst_19 : f32 to vector<8x192xf32>
    %41 = arith.mulf %40, %39 : vector<8x192xf32>
    %42 = vector.extract_strided_slice %33 {offsets = [0, 192], sizes = [8, 64], strides = [1, 1]} : vector<8x256xf32> to vector<8x64xf32>
    %43 = math.tanh %42 : vector<8x64xf32>
    %44 = vector.extract_strided_slice %41 {offsets = [0, 64], sizes = [8, 64], strides = [1, 1]} : vector<8x192xf32> to vector<8x64xf32>
    %45 = arith.mulf %44, %23 : vector<8x64xf32>
    %46 = vector.extract_strided_slice %41 {offsets = [0, 0], sizes = [8, 64], strides = [1, 1]} : vector<8x192xf32> to vector<8x64xf32>
    %47 = arith.mulf %46, %43 : vector<8x64xf32>
    %48 = arith.addf %45, %47 : vector<8x64xf32>
    %49 = vector.extract_strided_slice %41 {offsets = [0, 128], sizes = [8, 64], strides = [1, 1]} : vector<8x192xf32> to vector<8x64xf32>
    %50 = math.tanh %48 : vector<8x64xf32>
    %51 = arith.mulf %49, %50 : vector<8x64xf32>
    %52 = arith.truncf %26 : vector<8x64xf32> to vector<8x64xbf16>
    %c0_20 = arith.constant 0 : index
    %c0_21 = arith.constant 0 : index
    %c0_22 = arith.constant 0 : index
    %53 = vector.load %arg5[%c0_20, %c0_21, %c0_22] : memref<2x64x256xbf16, #tpu.memory_space<vmem>>, vector<1x64x256xbf16>
    %54 = vector.shape_cast %53 : vector<1x64x256xbf16> to vector<64x256xbf16>
    %cst_23 = arith.constant dense<0.000000e+00> : vector<8x256xf32>
    %55 = tpu.matmul %52, %54, %cst_23 {dimension_numbers = #tpu.dot_dimension_numbers<[1], [0], [0], [1], [0, 0, 1, 1], [], []>} : vector<8x64xbf16>, vector<64x256xbf16>, vector<8x256xf32> -> vector<8x256xf32>
    %56 = arith.truncf %1 : vector<8x64xf32> to vector<8x64xbf16>
    %c1_24 = arith.constant 1 : index
    %c0_25 = arith.constant 0 : index
    %c0_26 = arith.constant 0 : index
    %57 = vector.load %arg4[%c1_24, %c0_25, %c0_26] : memref<3x64x256xbf16, #tpu.memory_space<vmem>>, vector<1x64x256xbf16>
    %58 = vector.shape_cast %57 : vector<1x64x256xbf16> to vector<64x256xbf16>
    %cst_27 = arith.constant dense<0.000000e+00> : vector<8x256xf32>
    %59 = tpu.matmul %56, %58, %cst_27 {dimension_numbers = #tpu.dot_dimension_numbers<[1], [0], [0], [1], [0, 0, 1, 1], [], []>} : vector<8x64xbf16>, vector<64x256xbf16>, vector<8x256xf32> -> vector<8x256xf32>
    %60 = arith.addf %55, %59 : vector<8x256xf32>
    %c0_28 = arith.constant 0 : index
    %c0_29 = arith.constant 0 : index
    %c0_30 = arith.constant 0 : index
    %61 = vector.load %arg6[%c0_28, %c0_29, %c0_30] : memref<2x1x256xf32, #tpu.memory_space<vmem>>, vector<1x1x256xf32>
    %62 = vector.shape_cast %61 : vector<1x1x256xf32> to vector<1x256xf32>
    %63 = vector.broadcast %62 : vector<1x256xf32> to vector<8x256xf32>
    %64 = arith.addf %60, %63 : vector<8x256xf32>
    %65 = vector.extract_strided_slice %64 {offsets = [0, 0], sizes = [8, 192], strides = [1, 1]} : vector<8x256xf32> to vector<8x192xf32>
    %cst_31 = arith.constant 5.000000e-01 : f32
    %66 = vector.broadcast %cst_31 : f32 to vector<8x192xf32>
    %67 = arith.mulf %66, %65 : vector<8x192xf32>
    %68 = math.tanh %67 : vector<8x192xf32>
    %cst_32 = arith.constant 1.000000e+00 : f32
    %69 = vector.broadcast %cst_32 : f32 to vector<8x192xf32>
    %70 = arith.addf %68, %69 : vector<8x192xf32>
    %cst_33 = arith.constant 5.000000e-01 : f32
    %71 = vector.broadcast %cst_33 : f32 to vector<8x192xf32>
    %72 = arith.mulf %71, %70 : vector<8x192xf32>
    %73 = vector.extract_strided_slice %64 {offsets = [0, 192], sizes = [8, 64], strides = [1, 1]} : vector<8x256xf32> to vector<8x64xf32>
    %74 = math.tanh %73 : vector<8x64xf32>
    %75 = vector.extract_strided_slice %72 {offsets = [0, 64], sizes = [8, 64], strides = [1, 1]} : vector<8x192xf32> to vector<8x64xf32>
    %76 = arith.mulf %75, %1 : vector<8x64xf32>
    %77 = vector.extract_strided_slice %72 {offsets = [0, 0], sizes = [8, 64], strides = [1, 1]} : vector<8x192xf32> to vector<8x64xf32>
    %78 = arith.mulf %77, %74 : vector<8x64xf32>
    %79 = arith.addf %76, %78 : vector<8x64xf32>
    %80 = vector.extract_strided_slice %72 {offsets = [0, 128], sizes = [8, 64], strides = [1, 1]} : vector<8x192xf32> to vector<8x64xf32>
    %81 = math.tanh %79 : vector<8x64xf32>
    %82 = arith.mulf %80, %81 : vector<8x64xf32>
    %c2 = arith.constant 2 : index
    %c0_34 = arith.constant 0 : index
    %c0_35 = arith.constant 0 : index
    %83 = vector.load %arg1[%c2, %c0_34, %c0_35] : memref<8x8x256xf32, #tpu.memory_space<vmem>>, vector<1x8x256xf32>
    %84 = vector.shape_cast %83 : vector<1x8x256xf32> to vector<8x256xf32>
    %85 = arith.truncf %51 : vector<8x64xf32> to vector<8x64xbf16>
    %c0_36 = arith.constant 0 : index
    %c0_37 = arith.constant 0 : index
    %c0_38 = arith.constant 0 : index
    %86 = vector.load %arg4[%c0_36, %c0_37, %c0_38] : memref<3x64x256xbf16, #tpu.memory_space<vmem>>, vector<1x64x256xbf16>
    %87 = vector.shape_cast %86 : vector<1x64x256xbf16> to vector<64x256xbf16>
    %cst_39 = arith.constant dense<0.000000e+00> : vector<8x256xf32>
    %88 = tpu.matmul %85, %87, %cst_39 {dimension_numbers = #tpu.dot_dimension_numbers<[1], [0], [0], [1], [0, 0, 1, 1], [], []>} : vector<8x64xbf16>, vector<64x256xbf16>, vector<8x256xf32> -> vector<8x256xf32>
    %89 = arith.addf %84, %88 : vector<8x256xf32>
    %90 = vector.extract_strided_slice %89 {offsets = [0, 0], sizes = [8, 192], strides = [1, 1]} : vector<8x256xf32> to vector<8x192xf32>
    %cst_40 = arith.constant 5.000000e-01 : f32
    %91 = vector.broadcast %cst_40 : f32 to vector<8x192xf32>
    %92 = arith.mulf %91, %90 : vector<8x192xf32>
    %93 = math.tanh %92 : vector<8x192xf32>
    %cst_41 = arith.constant 1.000000e+00 : f32
    %94 = vector.broadcast %cst_41 : f32 to vector<8x192xf32>
    %95 = arith.addf %93, %94 : vector<8x192xf32>
    %cst_42 = arith.constant 5.000000e-01 : f32
    %96 = vector.broadcast %cst_42 : f32 to vector<8x192xf32>
    %97 = arith.mulf %96, %95 : vector<8x192xf32>
    %98 = vector.extract_strided_slice %89 {offsets = [0, 192], sizes = [8, 64], strides = [1, 1]} : vector<8x256xf32> to vector<8x64xf32>
    %99 = math.tanh %98 : vector<8x64xf32>
    %100 = vector.extract_strided_slice %97 {offsets = [0, 64], sizes = [8, 64], strides = [1, 1]} : vector<8x192xf32> to vector<8x64xf32>
    %101 = arith.mulf %100, %48 : vector<8x64xf32>
    %102 = vector.extract_strided_slice %97 {offsets = [0, 0], sizes = [8, 64], strides = [1, 1]} : vector<8x192xf32> to vector<8x64xf32>
    %103 = arith.mulf %102, %99 : vector<8x64xf32>
    %104 = arith.addf %101, %103 : vector<8x64xf32>
    %105 = vector.extract_strided_slice %97 {offsets = [0, 128], sizes = [8, 64], strides = [1, 1]} : vector<8x192xf32> to vector<8x64xf32>
    %106 = math.tanh %104 : vector<8x64xf32>
    %107 = arith.mulf %105, %106 : vector<8x64xf32>
    %108 = arith.truncf %51 : vector<8x64xf32> to vector<8x64xbf16>
    %c0_43 = arith.constant 0 : index
    %c0_44 = arith.constant 0 : index
    %c0_45 = arith.constant 0 : index
    %109 = vector.load %arg5[%c0_43, %c0_44, %c0_45] : memref<2x64x256xbf16, #tpu.memory_space<vmem>>, vector<1x64x256xbf16>
    %110 = vector.shape_cast %109 : vector<1x64x256xbf16> to vector<64x256xbf16>
    %cst_46 = arith.constant dense<0.000000e+00> : vector<8x256xf32>
    %111 = tpu.matmul %108, %110, %cst_46 {dimension_numbers = #tpu.dot_dimension_numbers<[1], [0], [0], [1], [0, 0, 1, 1], [], []>} : vector<8x64xbf16>, vector<64x256xbf16>, vector<8x256xf32> -> vector<8x256xf32>
    %112 = arith.truncf %82 : vector<8x64xf32> to vector<8x64xbf16>
    %c1_47 = arith.constant 1 : index
    %c0_48 = arith.constant 0 : index
    %c0_49 = arith.constant 0 : index
    %113 = vector.load %arg4[%c1_47, %c0_48, %c0_49] : memref<3x64x256xbf16, #tpu.memory_space<vmem>>, vector<1x64x256xbf16>
    %114 = vector.shape_cast %113 : vector<1x64x256xbf16> to vector<64x256xbf16>
    %cst_50 = arith.constant dense<0.000000e+00> : vector<8x256xf32>
    %115 = tpu.matmul %112, %114, %cst_50 {dimension_numbers = #tpu.dot_dimension_numbers<[1], [0], [0], [1], [0, 0, 1, 1], [], []>} : vector<8x64xbf16>, vector<64x256xbf16>, vector<8x256xf32> -> vector<8x256xf32>
    %116 = arith.addf %111, %115 : vector<8x256xf32>
    %c0_51 = arith.constant 0 : index
    %c0_52 = arith.constant 0 : index
    %c0_53 = arith.constant 0 : index
    %117 = vector.load %arg6[%c0_51, %c0_52, %c0_53] : memref<2x1x256xf32, #tpu.memory_space<vmem>>, vector<1x1x256xf32>
    %118 = vector.shape_cast %117 : vector<1x1x256xf32> to vector<1x256xf32>
    %119 = vector.broadcast %118 : vector<1x256xf32> to vector<8x256xf32>
    %120 = arith.addf %116, %119 : vector<8x256xf32>
    %121 = vector.extract_strided_slice %120 {offsets = [0, 0], sizes = [8, 192], strides = [1, 1]} : vector<8x256xf32> to vector<8x192xf32>
    %cst_54 = arith.constant 5.000000e-01 : f32
    %122 = vector.broadcast %cst_54 : f32 to vector<8x192xf32>
    %123 = arith.mulf %122, %121 : vector<8x192xf32>
    %124 = math.tanh %123 : vector<8x192xf32>
    %cst_55 = arith.constant 1.000000e+00 : f32
    %125 = vector.broadcast %cst_55 : f32 to vector<8x192xf32>
    %126 = arith.addf %124, %125 : vector<8x192xf32>
    %cst_56 = arith.constant 5.000000e-01 : f32
    %127 = vector.broadcast %cst_56 : f32 to vector<8x192xf32>
    %128 = arith.mulf %127, %126 : vector<8x192xf32>
    %129 = vector.extract_strided_slice %120 {offsets = [0, 192], sizes = [8, 64], strides = [1, 1]} : vector<8x256xf32> to vector<8x64xf32>
    %130 = math.tanh %129 : vector<8x64xf32>
    %131 = vector.extract_strided_slice %128 {offsets = [0, 64], sizes = [8, 64], strides = [1, 1]} : vector<8x192xf32> to vector<8x64xf32>
    %132 = arith.mulf %131, %79 : vector<8x64xf32>
    %133 = vector.extract_strided_slice %128 {offsets = [0, 0], sizes = [8, 64], strides = [1, 1]} : vector<8x192xf32> to vector<8x64xf32>
    %134 = arith.mulf %133, %130 : vector<8x64xf32>
    %135 = arith.addf %132, %134 : vector<8x64xf32>
    %136 = vector.extract_strided_slice %128 {offsets = [0, 128], sizes = [8, 64], strides = [1, 1]} : vector<8x192xf32> to vector<8x64xf32>
    %137 = math.tanh %135 : vector<8x64xf32>
    %138 = arith.mulf %136, %137 : vector<8x64xf32>
    %139 = arith.truncf %82 : vector<8x64xf32> to vector<8x64xbf16>
    %c1_57 = arith.constant 1 : index
    %c0_58 = arith.constant 0 : index
    %c0_59 = arith.constant 0 : index
    %140 = vector.load %arg5[%c1_57, %c0_58, %c0_59] : memref<2x64x256xbf16, #tpu.memory_space<vmem>>, vector<1x64x256xbf16>
    %141 = vector.shape_cast %140 : vector<1x64x256xbf16> to vector<64x256xbf16>
    %cst_60 = arith.constant dense<0.000000e+00> : vector<8x256xf32>
    %142 = tpu.matmul %139, %141, %cst_60 {dimension_numbers = #tpu.dot_dimension_numbers<[1], [0], [0], [1], [0, 0, 1, 1], [], []>} : vector<8x64xbf16>, vector<64x256xbf16>, vector<8x256xf32> -> vector<8x256xf32>
    %143 = arith.truncf %1 : vector<8x64xf32> to vector<8x64xbf16>
    %c2_61 = arith.constant 2 : index
    %c0_62 = arith.constant 0 : index
    %c0_63 = arith.constant 0 : index
    %144 = vector.load %arg4[%c2_61, %c0_62, %c0_63] : memref<3x64x256xbf16, #tpu.memory_space<vmem>>, vector<1x64x256xbf16>
    %145 = vector.shape_cast %144 : vector<1x64x256xbf16> to vector<64x256xbf16>
    %cst_64 = arith.constant dense<0.000000e+00> : vector<8x256xf32>
    %146 = tpu.matmul %143, %145, %cst_64 {dimension_numbers = #tpu.dot_dimension_numbers<[1], [0], [0], [1], [0, 0, 1, 1], [], []>} : vector<8x64xbf16>, vector<64x256xbf16>, vector<8x256xf32> -> vector<8x256xf32>
    %147 = arith.addf %142, %146 : vector<8x256xf32>
    %c1_65 = arith.constant 1 : index
    %c0_66 = arith.constant 0 : index
    %c0_67 = arith.constant 0 : index
    %148 = vector.load %arg6[%c1_65, %c0_66, %c0_67] : memref<2x1x256xf32, #tpu.memory_space<vmem>>, vector<1x1x256xf32>
    %149 = vector.shape_cast %148 : vector<1x1x256xf32> to vector<1x256xf32>
    %150 = vector.broadcast %149 : vector<1x256xf32> to vector<8x256xf32>
    %151 = arith.addf %147, %150 : vector<8x256xf32>
    %152 = vector.extract_strided_slice %151 {offsets = [0, 0], sizes = [8, 192], strides = [1, 1]} : vector<8x256xf32> to vector<8x192xf32>
    %cst_68 = arith.constant 5.000000e-01 : f32
    %153 = vector.broadcast %cst_68 : f32 to vector<8x192xf32>
    %154 = arith.mulf %153, %152 : vector<8x192xf32>
    %155 = math.tanh %154 : vector<8x192xf32>
    %cst_69 = arith.constant 1.000000e+00 : f32
    %156 = vector.broadcast %cst_69 : f32 to vector<8x192xf32>
    %157 = arith.addf %155, %156 : vector<8x192xf32>
    %cst_70 = arith.constant 5.000000e-01 : f32
    %158 = vector.broadcast %cst_70 : f32 to vector<8x192xf32>
    %159 = arith.mulf %158, %157 : vector<8x192xf32>
    %160 = vector.extract_strided_slice %151 {offsets = [0, 192], sizes = [8, 64], strides = [1, 1]} : vector<8x256xf32> to vector<8x64xf32>
    %161 = math.tanh %160 : vector<8x64xf32>
    %162 = vector.extract_strided_slice %159 {offsets = [0, 64], sizes = [8, 64], strides = [1, 1]} : vector<8x192xf32> to vector<8x64xf32>
    %163 = arith.mulf %162, %1 : vector<8x64xf32>
    %164 = vector.extract_strided_slice %159 {offsets = [0, 0], sizes = [8, 64], strides = [1, 1]} : vector<8x192xf32> to vector<8x64xf32>
    %165 = arith.mulf %164, %161 : vector<8x64xf32>
    %166 = arith.addf %163, %165 : vector<8x64xf32>
    %167 = vector.extract_strided_slice %159 {offsets = [0, 128], sizes = [8, 64], strides = [1, 1]} : vector<8x192xf32> to vector<8x64xf32>
    %168 = math.tanh %166 : vector<8x64xf32>
    %169 = arith.mulf %167, %168 : vector<8x64xf32>
    %c0_i32 = arith.constant 0 : i32
    %170 = vector.broadcast %c0_i32 : i32 to vector<8x1xi32>
    %171 = arith.cmpi eq, %0, %170 : vector<8x1xi32>
    %172 = vector.shape_cast %171 : vector<8x1xi1> to vector<8x1xi1>
    %173 = vector.broadcast %172 : vector<8x1xi1> to vector<8x64xi1>
    %174 = arith.select %173, %169, %1 : vector<8x64xi1>, vector<8x64xf32>
    %c3 = arith.constant 3 : index
    %c0_71 = arith.constant 0 : index
    %c0_72 = arith.constant 0 : index
    %175 = vector.load %arg1[%c3, %c0_71, %c0_72] : memref<8x8x256xf32, #tpu.memory_space<vmem>>, vector<1x8x256xf32>
    %176 = vector.shape_cast %175 : vector<1x8x256xf32> to vector<8x256xf32>
    %177 = arith.truncf %107 : vector<8x64xf32> to vector<8x64xbf16>
    %c0_73 = arith.constant 0 : index
    %c0_74 = arith.constant 0 : index
    %c0_75 = arith.constant 0 : index
    %178 = vector.load %arg4[%c0_73, %c0_74, %c0_75] : memref<3x64x256xbf16, #tpu.memory_space<vmem>>, vector<1x64x256xbf16>
    %179 = vector.shape_cast %178 : vector<1x64x256xbf16> to vector<64x256xbf16>
    %cst_76 = arith.constant dense<0.000000e+00> : vector<8x256xf32>
    %180 = tpu.matmul %177, %179, %cst_76 {dimension_numbers = #tpu.dot_dimension_numbers<[1], [0], [0], [1], [0, 0, 1, 1], [], []>} : vector<8x64xbf16>, vector<64x256xbf16>, vector<8x256xf32> -> vector<8x256xf32>
    %181 = arith.addf %176, %180 : vector<8x256xf32>
    %182 = vector.extract_strided_slice %181 {offsets = [0, 0], sizes = [8, 192], strides = [1, 1]} : vector<8x256xf32> to vector<8x192xf32>
    %cst_77 = arith.constant 5.000000e-01 : f32
    %183 = vector.broadcast %cst_77 : f32 to vector<8x192xf32>
    %184 = arith.mulf %183, %182 : vector<8x192xf32>
    %185 = math.tanh %184 : vector<8x192xf32>
    %cst_78 = arith.constant 1.000000e+00 : f32
    %186 = vector.broadcast %cst_78 : f32 to vector<8x192xf32>
    %187 = arith.addf %185, %186 : vector<8x192xf32>
    %cst_79 = arith.constant 5.000000e-01 : f32
    %188 = vector.broadcast %cst_79 : f32 to vector<8x192xf32>
    %189 = arith.mulf %188, %187 : vector<8x192xf32>
    %190 = vector.extract_strided_slice %181 {offsets = [0, 192], sizes = [8, 64], strides = [1, 1]} : vector<8x256xf32> to vector<8x64xf32>
    %191 = math.tanh %190 : vector<8x64xf32>
    %192 = vector.extract_strided_slice %189 {offsets = [0, 64], sizes = [8, 64], strides = [1, 1]} : vector<8x192xf32> to vector<8x64xf32>
    %193 = arith.mulf %192, %104 : vector<8x64xf32>
    %194 = vector.extract_strided_slice %189 {offsets = [0, 0], sizes = [8, 64], strides = [1, 1]} : vector<8x192xf32> to vector<8x64xf32>
    %195 = arith.mulf %194, %191 : vector<8x64xf32>
    %196 = arith.addf %193, %195 : vector<8x64xf32>
    %197 = vector.extract_strided_slice %189 {offsets = [0, 128], sizes = [8, 64], strides = [1, 1]} : vector<8x192xf32> to vector<8x64xf32>
    %198 = math.tanh %196 : vector<8x64xf32>
    %199 = arith.mulf %197, %198 : vector<8x64xf32>
    %200 = arith.truncf %107 : vector<8x64xf32> to vector<8x64xbf16>
    %c0_80 = arith.constant 0 : index
    %c0_81 = arith.constant 0 : index
    %c0_82 = arith.constant 0 : index
    %201 = vector.load %arg5[%c0_80, %c0_81, %c0_82] : memref<2x64x256xbf16, #tpu.memory_space<vmem>>, vector<1x64x256xbf16>
    %202 = vector.shape_cast %201 : vector<1x64x256xbf16> to vector<64x256xbf16>
    %cst_83 = arith.constant dense<0.000000e+00> : vector<8x256xf32>
    %203 = tpu.matmul %200, %202, %cst_83 {dimension_numbers = #tpu.dot_dimension_numbers<[1], [0], [0], [1], [0, 0, 1, 1], [], []>} : vector<8x64xbf16>, vector<64x256xbf16>, vector<8x256xf32> -> vector<8x256xf32>
    %204 = arith.truncf %138 : vector<8x64xf32> to vector<8x64xbf16>
    %c1_84 = arith.constant 1 : index
    %c0_85 = arith.constant 0 : index
    %c0_86 = arith.constant 0 : index
    %205 = vector.load %arg4[%c1_84, %c0_85, %c0_86] : memref<3x64x256xbf16, #tpu.memory_space<vmem>>, vector<1x64x256xbf16>
    %206 = vector.shape_cast %205 : vector<1x64x256xbf16> to vector<64x256xbf16>
    %cst_87 = arith.constant dense<0.000000e+00> : vector<8x256xf32>
    %207 = tpu.matmul %204, %206, %cst_87 {dimension_numbers = #tpu.dot_dimension_numbers<[1], [0], [0], [1], [0, 0, 1, 1], [], []>} : vector<8x64xbf16>, vector<64x256xbf16>, vector<8x256xf32> -> vector<8x256xf32>
    %208 = arith.addf %203, %207 : vector<8x256xf32>
    %c0_88 = arith.constant 0 : index
    %c0_89 = arith.constant 0 : index
    %c0_90 = arith.constant 0 : index
    %209 = vector.load %arg6[%c0_88, %c0_89, %c0_90] : memref<2x1x256xf32, #tpu.memory_space<vmem>>, vector<1x1x256xf32>
    %210 = vector.shape_cast %209 : vector<1x1x256xf32> to vector<1x256xf32>
    %211 = vector.broadcast %210 : vector<1x256xf32> to vector<8x256xf32>
    %212 = arith.addf %208, %211 : vector<8x256xf32>
    %213 = vector.extract_strided_slice %212 {offsets = [0, 0], sizes = [8, 192], strides = [1, 1]} : vector<8x256xf32> to vector<8x192xf32>
    %cst_91 = arith.constant 5.000000e-01 : f32
    %214 = vector.broadcast %cst_91 : f32 to vector<8x192xf32>
    %215 = arith.mulf %214, %213 : vector<8x192xf32>
    %216 = math.tanh %215 : vector<8x192xf32>
    %cst_92 = arith.constant 1.000000e+00 : f32
    %217 = vector.broadcast %cst_92 : f32 to vector<8x192xf32>
    %218 = arith.addf %216, %217 : vector<8x192xf32>
    %cst_93 = arith.constant 5.000000e-01 : f32
    %219 = vector.broadcast %cst_93 : f32 to vector<8x192xf32>
    %220 = arith.mulf %219, %218 : vector<8x192xf32>
    %221 = vector.extract_strided_slice %212 {offsets = [0, 192], sizes = [8, 64], strides = [1, 1]} : vector<8x256xf32> to vector<8x64xf32>
    %222 = math.tanh %221 : vector<8x64xf32>
    %223 = vector.extract_strided_slice %220 {offsets = [0, 64], sizes = [8, 64], strides = [1, 1]} : vector<8x192xf32> to vector<8x64xf32>
    %224 = arith.mulf %223, %135 : vector<8x64xf32>
    %225 = vector.extract_strided_slice %220 {offsets = [0, 0], sizes = [8, 64], strides = [1, 1]} : vector<8x192xf32> to vector<8x64xf32>
    %226 = arith.mulf %225, %222 : vector<8x64xf32>
    %227 = arith.addf %224, %226 : vector<8x64xf32>
    %228 = vector.extract_strided_slice %220 {offsets = [0, 128], sizes = [8, 64], strides = [1, 1]} : vector<8x192xf32> to vector<8x64xf32>
    %229 = math.tanh %227 : vector<8x64xf32>
    %230 = arith.mulf %228, %229 : vector<8x64xf32>
    %231 = arith.truncf %138 : vector<8x64xf32> to vector<8x64xbf16>
    %c1_94 = arith.constant 1 : index
    %c0_95 = arith.constant 0 : index
    %c0_96 = arith.constant 0 : index
    %232 = vector.load %arg5[%c1_94, %c0_95, %c0_96] : memref<2x64x256xbf16, #tpu.memory_space<vmem>>, vector<1x64x256xbf16>
    %233 = vector.shape_cast %232 : vector<1x64x256xbf16> to vector<64x256xbf16>
    %cst_97 = arith.constant dense<0.000000e+00> : vector<8x256xf32>
    %234 = tpu.matmul %231, %233, %cst_97 {dimension_numbers = #tpu.dot_dimension_numbers<[1], [0], [0], [1], [0, 0, 1, 1], [], []>} : vector<8x64xbf16>, vector<64x256xbf16>, vector<8x256xf32> -> vector<8x256xf32>
    %235 = arith.truncf %169 : vector<8x64xf32> to vector<8x64xbf16>
    %c2_98 = arith.constant 2 : index
    %c0_99 = arith.constant 0 : index
    %c0_100 = arith.constant 0 : index
    %236 = vector.load %arg4[%c2_98, %c0_99, %c0_100] : memref<3x64x256xbf16, #tpu.memory_space<vmem>>, vector<1x64x256xbf16>
    %237 = vector.shape_cast %236 : vector<1x64x256xbf16> to vector<64x256xbf16>
    %cst_101 = arith.constant dense<0.000000e+00> : vector<8x256xf32>
    %238 = tpu.matmul %235, %237, %cst_101 {dimension_numbers = #tpu.dot_dimension_numbers<[1], [0], [0], [1], [0, 0, 1, 1], [], []>} : vector<8x64xbf16>, vector<64x256xbf16>, vector<8x256xf32> -> vector<8x256xf32>
    %239 = arith.addf %234, %238 : vector<8x256xf32>
    %c1_102 = arith.constant 1 : index
    %c0_103 = arith.constant 0 : index
    %c0_104 = arith.constant 0 : index
    %240 = vector.load %arg6[%c1_102, %c0_103, %c0_104] : memref<2x1x256xf32, #tpu.memory_space<vmem>>, vector<1x1x256xf32>
    %241 = vector.shape_cast %240 : vector<1x1x256xf32> to vector<1x256xf32>
    %242 = vector.broadcast %241 : vector<1x256xf32> to vector<8x256xf32>
    %243 = arith.addf %239, %242 : vector<8x256xf32>
    %244 = vector.extract_strided_slice %243 {offsets = [0, 0], sizes = [8, 192], strides = [1, 1]} : vector<8x256xf32> to vector<8x192xf32>
    %cst_105 = arith.constant 5.000000e-01 : f32
    %245 = vector.broadcast %cst_105 : f32 to vector<8x192xf32>
    %246 = arith.mulf %245, %244 : vector<8x192xf32>
    %247 = math.tanh %246 : vector<8x192xf32>
    %cst_106 = arith.constant 1.000000e+00 : f32
    %248 = vector.broadcast %cst_106 : f32 to vector<8x192xf32>
    %249 = arith.addf %247, %248 : vector<8x192xf32>
    %cst_107 = arith.constant 5.000000e-01 : f32
    %250 = vector.broadcast %cst_107 : f32 to vector<8x192xf32>
    %251 = arith.mulf %250, %249 : vector<8x192xf32>
    %252 = vector.extract_strided_slice %243 {offsets = [0, 192], sizes = [8, 64], strides = [1, 1]} : vector<8x256xf32> to vector<8x64xf32>
    %253 = math.tanh %252 : vector<8x64xf32>
    %254 = vector.extract_strided_slice %251 {offsets = [0, 64], sizes = [8, 64], strides = [1, 1]} : vector<8x192xf32> to vector<8x64xf32>
    %255 = arith.mulf %254, %166 : vector<8x64xf32>
    %256 = vector.extract_strided_slice %251 {offsets = [0, 0], sizes = [8, 64], strides = [1, 1]} : vector<8x192xf32> to vector<8x64xf32>
    %257 = arith.mulf %256, %253 : vector<8x64xf32>
    %258 = arith.addf %255, %257 : vector<8x64xf32>
    %259 = vector.extract_strided_slice %251 {offsets = [0, 128], sizes = [8, 64], strides = [1, 1]} : vector<8x192xf32> to vector<8x64xf32>
    %260 = math.tanh %258 : vector<8x64xf32>
    %261 = arith.mulf %259, %260 : vector<8x64xf32>
    %c1_i32 = arith.constant 1 : i32
    %262 = vector.broadcast %c1_i32 : i32 to vector<8x1xi32>
    %263 = arith.cmpi eq, %0, %262 : vector<8x1xi32>
    %264 = vector.shape_cast %263 : vector<8x1xi1> to vector<8x1xi1>
    %265 = vector.broadcast %264 : vector<8x1xi1> to vector<8x64xi1>
    %266 = arith.select %265, %261, %174 : vector<8x64xi1>, vector<8x64xf32>
    %c4 = arith.constant 4 : index
    %c0_108 = arith.constant 0 : index
    %c0_109 = arith.constant 0 : index
    %267 = vector.load %arg1[%c4, %c0_108, %c0_109] : memref<8x8x256xf32, #tpu.memory_space<vmem>>, vector<1x8x256xf32>
    %268 = vector.shape_cast %267 : vector<1x8x256xf32> to vector<8x256xf32>
    %269 = arith.truncf %199 : vector<8x64xf32> to vector<8x64xbf16>
    %c0_110 = arith.constant 0 : index
    %c0_111 = arith.constant 0 : index
    %c0_112 = arith.constant 0 : index
    %270 = vector.load %arg4[%c0_110, %c0_111, %c0_112] : memref<3x64x256xbf16, #tpu.memory_space<vmem>>, vector<1x64x256xbf16>
    %271 = vector.shape_cast %270 : vector<1x64x256xbf16> to vector<64x256xbf16>
    %cst_113 = arith.constant dense<0.000000e+00> : vector<8x256xf32>
    %272 = tpu.matmul %269, %271, %cst_113 {dimension_numbers = #tpu.dot_dimension_numbers<[1], [0], [0], [1], [0, 0, 1, 1], [], []>} : vector<8x64xbf16>, vector<64x256xbf16>, vector<8x256xf32> -> vector<8x256xf32>
    %273 = arith.addf %268, %272 : vector<8x256xf32>
    %274 = vector.extract_strided_slice %273 {offsets = [0, 0], sizes = [8, 192], strides = [1, 1]} : vector<8x256xf32> to vector<8x192xf32>
    %cst_114 = arith.constant 5.000000e-01 : f32
    %275 = vector.broadcast %cst_114 : f32 to vector<8x192xf32>
    %276 = arith.mulf %275, %274 : vector<8x192xf32>
    %277 = math.tanh %276 : vector<8x192xf32>
    %cst_115 = arith.constant 1.000000e+00 : f32
    %278 = vector.broadcast %cst_115 : f32 to vector<8x192xf32>
    %279 = arith.addf %277, %278 : vector<8x192xf32>
    %cst_116 = arith.constant 5.000000e-01 : f32
    %280 = vector.broadcast %cst_116 : f32 to vector<8x192xf32>
    %281 = arith.mulf %280, %279 : vector<8x192xf32>
    %282 = vector.extract_strided_slice %273 {offsets = [0, 192], sizes = [8, 64], strides = [1, 1]} : vector<8x256xf32> to vector<8x64xf32>
    %283 = math.tanh %282 : vector<8x64xf32>
    %284 = vector.extract_strided_slice %281 {offsets = [0, 64], sizes = [8, 64], strides = [1, 1]} : vector<8x192xf32> to vector<8x64xf32>
    %285 = arith.mulf %284, %196 : vector<8x64xf32>
    %286 = vector.extract_strided_slice %281 {offsets = [0, 0], sizes = [8, 64], strides = [1, 1]} : vector<8x192xf32> to vector<8x64xf32>
    %287 = arith.mulf %286, %283 : vector<8x64xf32>
    %288 = arith.addf %285, %287 : vector<8x64xf32>
    %289 = vector.extract_strided_slice %281 {offsets = [0, 128], sizes = [8, 64], strides = [1, 1]} : vector<8x192xf32> to vector<8x64xf32>
    %290 = math.tanh %288 : vector<8x64xf32>
    %291 = arith.mulf %289, %290 : vector<8x64xf32>
    %292 = arith.truncf %199 : vector<8x64xf32> to vector<8x64xbf16>
    %c0_117 = arith.constant 0 : index
    %c0_118 = arith.constant 0 : index
    %c0_119 = arith.constant 0 : index
    %293 = vector.load %arg5[%c0_117, %c0_118, %c0_119] : memref<2x64x256xbf16, #tpu.memory_space<vmem>>, vector<1x64x256xbf16>
    %294 = vector.shape_cast %293 : vector<1x64x256xbf16> to vector<64x256xbf16>
    %cst_120 = arith.constant dense<0.000000e+00> : vector<8x256xf32>
    %295 = tpu.matmul %292, %294, %cst_120 {dimension_numbers = #tpu.dot_dimension_numbers<[1], [0], [0], [1], [0, 0, 1, 1], [], []>} : vector<8x64xbf16>, vector<64x256xbf16>, vector<8x256xf32> -> vector<8x256xf32>
    %296 = arith.truncf %230 : vector<8x64xf32> to vector<8x64xbf16>
    %c1_121 = arith.constant 1 : index
    %c0_122 = arith.constant 0 : index
    %c0_123 = arith.constant 0 : index
    %297 = vector.load %arg4[%c1_121, %c0_122, %c0_123] : memref<3x64x256xbf16, #tpu.memory_space<vmem>>, vector<1x64x256xbf16>
    %298 = vector.shape_cast %297 : vector<1x64x256xbf16> to vector<64x256xbf16>
    %cst_124 = arith.constant dense<0.000000e+00> : vector<8x256xf32>
    %299 = tpu.matmul %296, %298, %cst_124 {dimension_numbers = #tpu.dot_dimension_numbers<[1], [0], [0], [1], [0, 0, 1, 1], [], []>} : vector<8x64xbf16>, vector<64x256xbf16>, vector<8x256xf32> -> vector<8x256xf32>
    %300 = arith.addf %295, %299 : vector<8x256xf32>
    %c0_125 = arith.constant 0 : index
    %c0_126 = arith.constant 0 : index
    %c0_127 = arith.constant 0 : index
    %301 = vector.load %arg6[%c0_125, %c0_126, %c0_127] : memref<2x1x256xf32, #tpu.memory_space<vmem>>, vector<1x1x256xf32>
    %302 = vector.shape_cast %301 : vector<1x1x256xf32> to vector<1x256xf32>
    %303 = vector.broadcast %302 : vector<1x256xf32> to vector<8x256xf32>
    %304 = arith.addf %300, %303 : vector<8x256xf32>
    %305 = vector.extract_strided_slice %304 {offsets = [0, 0], sizes = [8, 192], strides = [1, 1]} : vector<8x256xf32> to vector<8x192xf32>
    %cst_128 = arith.constant 5.000000e-01 : f32
    %306 = vector.broadcast %cst_128 : f32 to vector<8x192xf32>
    %307 = arith.mulf %306, %305 : vector<8x192xf32>
    %308 = math.tanh %307 : vector<8x192xf32>
    %cst_129 = arith.constant 1.000000e+00 : f32
    %309 = vector.broadcast %cst_129 : f32 to vector<8x192xf32>
    %310 = arith.addf %308, %309 : vector<8x192xf32>
    %cst_130 = arith.constant 5.000000e-01 : f32
    %311 = vector.broadcast %cst_130 : f32 to vector<8x192xf32>
    %312 = arith.mulf %311, %310 : vector<8x192xf32>
    %313 = vector.extract_strided_slice %304 {offsets = [0, 192], sizes = [8, 64], strides = [1, 1]} : vector<8x256xf32> to vector<8x64xf32>
    %314 = math.tanh %313 : vector<8x64xf32>
    %315 = vector.extract_strided_slice %312 {offsets = [0, 64], sizes = [8, 64], strides = [1, 1]} : vector<8x192xf32> to vector<8x64xf32>
    %316 = arith.mulf %315, %227 : vector<8x64xf32>
    %317 = vector.extract_strided_slice %312 {offsets = [0, 0], sizes = [8, 64], strides = [1, 1]} : vector<8x192xf32> to vector<8x64xf32>
    %318 = arith.mulf %317, %314 : vector<8x64xf32>
    %319 = arith.addf %316, %318 : vector<8x64xf32>
    %320 = vector.extract_strided_slice %312 {offsets = [0, 128], sizes = [8, 64], strides = [1, 1]} : vector<8x192xf32> to vector<8x64xf32>
    %321 = math.tanh %319 : vector<8x64xf32>
    %322 = arith.mulf %320, %321 : vector<8x64xf32>
    %323 = arith.truncf %230 : vector<8x64xf32> to vector<8x64xbf16>
    %c1_131 = arith.constant 1 : index
    %c0_132 = arith.constant 0 : index
    %c0_133 = arith.constant 0 : index
    %324 = vector.load %arg5[%c1_131, %c0_132, %c0_133] : memref<2x64x256xbf16, #tpu.memory_space<vmem>>, vector<1x64x256xbf16>
    %325 = vector.shape_cast %324 : vector<1x64x256xbf16> to vector<64x256xbf16>
    %cst_134 = arith.constant dense<0.000000e+00> : vector<8x256xf32>
    %326 = tpu.matmul %323, %325, %cst_134 {dimension_numbers = #tpu.dot_dimension_numbers<[1], [0], [0], [1], [0, 0, 1, 1], [], []>} : vector<8x64xbf16>, vector<64x256xbf16>, vector<8x256xf32> -> vector<8x256xf32>
    %327 = arith.truncf %261 : vector<8x64xf32> to vector<8x64xbf16>
    %c2_135 = arith.constant 2 : index
    %c0_136 = arith.constant 0 : index
    %c0_137 = arith.constant 0 : index
    %328 = vector.load %arg4[%c2_135, %c0_136, %c0_137] : memref<3x64x256xbf16, #tpu.memory_space<vmem>>, vector<1x64x256xbf16>
    %329 = vector.shape_cast %328 : vector<1x64x256xbf16> to vector<64x256xbf16>
    %cst_138 = arith.constant dense<0.000000e+00> : vector<8x256xf32>
    %330 = tpu.matmul %327, %329, %cst_138 {dimension_numbers = #tpu.dot_dimension_numbers<[1], [0], [0], [1], [0, 0, 1, 1], [], []>} : vector<8x64xbf16>, vector<64x256xbf16>, vector<8x256xf32> -> vector<8x256xf32>
    %331 = arith.addf %326, %330 : vector<8x256xf32>
    %c1_139 = arith.constant 1 : index
    %c0_140 = arith.constant 0 : index
    %c0_141 = arith.constant 0 : index
    %332 = vector.load %arg6[%c1_139, %c0_140, %c0_141] : memref<2x1x256xf32, #tpu.memory_space<vmem>>, vector<1x1x256xf32>
    %333 = vector.shape_cast %332 : vector<1x1x256xf32> to vector<1x256xf32>
    %334 = vector.broadcast %333 : vector<1x256xf32> to vector<8x256xf32>
    %335 = arith.addf %331, %334 : vector<8x256xf32>
    %336 = vector.extract_strided_slice %335 {offsets = [0, 0], sizes = [8, 192], strides = [1, 1]} : vector<8x256xf32> to vector<8x192xf32>
    %cst_142 = arith.constant 5.000000e-01 : f32
    %337 = vector.broadcast %cst_142 : f32 to vector<8x192xf32>
    %338 = arith.mulf %337, %336 : vector<8x192xf32>
    %339 = math.tanh %338 : vector<8x192xf32>
    %cst_143 = arith.constant 1.000000e+00 : f32
    %340 = vector.broadcast %cst_143 : f32 to vector<8x192xf32>
    %341 = arith.addf %339, %340 : vector<8x192xf32>
    %cst_144 = arith.constant 5.000000e-01 : f32
    %342 = vector.broadcast %cst_144 : f32 to vector<8x192xf32>
    %343 = arith.mulf %342, %341 : vector<8x192xf32>
    %344 = vector.extract_strided_slice %335 {offsets = [0, 192], sizes = [8, 64], strides = [1, 1]} : vector<8x256xf32> to vector<8x64xf32>
    %345 = math.tanh %344 : vector<8x64xf32>
    %346 = vector.extract_strided_slice %343 {offsets = [0, 64], sizes = [8, 64], strides = [1, 1]} : vector<8x192xf32> to vector<8x64xf32>
    %347 = arith.mulf %346, %258 : vector<8x64xf32>
    %348 = vector.extract_strided_slice %343 {offsets = [0, 0], sizes = [8, 64], strides = [1, 1]} : vector<8x192xf32> to vector<8x64xf32>
    %349 = arith.mulf %348, %345 : vector<8x64xf32>
    %350 = arith.addf %347, %349 : vector<8x64xf32>
    %351 = vector.extract_strided_slice %343 {offsets = [0, 128], sizes = [8, 64], strides = [1, 1]} : vector<8x192xf32> to vector<8x64xf32>
    %352 = math.tanh %350 : vector<8x64xf32>
    %353 = arith.mulf %351, %352 : vector<8x64xf32>
    %c2_i32 = arith.constant 2 : i32
    %354 = vector.broadcast %c2_i32 : i32 to vector<8x1xi32>
    %355 = arith.cmpi eq, %0, %354 : vector<8x1xi32>
    %356 = vector.shape_cast %355 : vector<8x1xi1> to vector<8x1xi1>
    %357 = vector.broadcast %356 : vector<8x1xi1> to vector<8x64xi1>
    %358 = arith.select %357, %353, %266 : vector<8x64xi1>, vector<8x64xf32>
    %c5 = arith.constant 5 : index
    %c0_145 = arith.constant 0 : index
    %c0_146 = arith.constant 0 : index
    %359 = vector.load %arg1[%c5, %c0_145, %c0_146] : memref<8x8x256xf32, #tpu.memory_space<vmem>>, vector<1x8x256xf32>
    %360 = vector.shape_cast %359 : vector<1x8x256xf32> to vector<8x256xf32>
    %361 = arith.truncf %291 : vector<8x64xf32> to vector<8x64xbf16>
    %c0_147 = arith.constant 0 : index
    %c0_148 = arith.constant 0 : index
    %c0_149 = arith.constant 0 : index
    %362 = vector.load %arg4[%c0_147, %c0_148, %c0_149] : memref<3x64x256xbf16, #tpu.memory_space<vmem>>, vector<1x64x256xbf16>
    %363 = vector.shape_cast %362 : vector<1x64x256xbf16> to vector<64x256xbf16>
    %cst_150 = arith.constant dense<0.000000e+00> : vector<8x256xf32>
    %364 = tpu.matmul %361, %363, %cst_150 {dimension_numbers = #tpu.dot_dimension_numbers<[1], [0], [0], [1], [0, 0, 1, 1], [], []>} : vector<8x64xbf16>, vector<64x256xbf16>, vector<8x256xf32> -> vector<8x256xf32>
    %365 = arith.addf %360, %364 : vector<8x256xf32>
    %366 = vector.extract_strided_slice %365 {offsets = [0, 0], sizes = [8, 192], strides = [1, 1]} : vector<8x256xf32> to vector<8x192xf32>
    %cst_151 = arith.constant 5.000000e-01 : f32
    %367 = vector.broadcast %cst_151 : f32 to vector<8x192xf32>
    %368 = arith.mulf %367, %366 : vector<8x192xf32>
    %369 = math.tanh %368 : vector<8x192xf32>
    %cst_152 = arith.constant 1.000000e+00 : f32
    %370 = vector.broadcast %cst_152 : f32 to vector<8x192xf32>
    %371 = arith.addf %369, %370 : vector<8x192xf32>
    %cst_153 = arith.constant 5.000000e-01 : f32
    %372 = vector.broadcast %cst_153 : f32 to vector<8x192xf32>
    %373 = arith.mulf %372, %371 : vector<8x192xf32>
    %374 = vector.extract_strided_slice %365 {offsets = [0, 192], sizes = [8, 64], strides = [1, 1]} : vector<8x256xf32> to vector<8x64xf32>
    %375 = math.tanh %374 : vector<8x64xf32>
    %376 = vector.extract_strided_slice %373 {offsets = [0, 64], sizes = [8, 64], strides = [1, 1]} : vector<8x192xf32> to vector<8x64xf32>
    %377 = arith.mulf %376, %288 : vector<8x64xf32>
    %378 = vector.extract_strided_slice %373 {offsets = [0, 0], sizes = [8, 64], strides = [1, 1]} : vector<8x192xf32> to vector<8x64xf32>
    %379 = arith.mulf %378, %375 : vector<8x64xf32>
    %380 = arith.addf %377, %379 : vector<8x64xf32>
    %381 = vector.extract_strided_slice %373 {offsets = [0, 128], sizes = [8, 64], strides = [1, 1]} : vector<8x192xf32> to vector<8x64xf32>
    %382 = math.tanh %380 : vector<8x64xf32>
    %383 = arith.mulf %381, %382 : vector<8x64xf32>
    %384 = arith.truncf %291 : vector<8x64xf32> to vector<8x64xbf16>
    %c0_154 = arith.constant 0 : index
    %c0_155 = arith.constant 0 : index
    %c0_156 = arith.constant 0 : index
    %385 = vector.load %arg5[%c0_154, %c0_155, %c0_156] : memref<2x64x256xbf16, #tpu.memory_space<vmem>>, vector<1x64x256xbf16>
    %386 = vector.shape_cast %385 : vector<1x64x256xbf16> to vector<64x256xbf16>
    %cst_157 = arith.constant dense<0.000000e+00> : vector<8x256xf32>
    %387 = tpu.matmul %384, %386, %cst_157 {dimension_numbers = #tpu.dot_dimension_numbers<[1], [0], [0], [1], [0, 0, 1, 1], [], []>} : vector<8x64xbf16>, vector<64x256xbf16>, vector<8x256xf32> -> vector<8x256xf32>
    %388 = arith.truncf %322 : vector<8x64xf32> to vector<8x64xbf16>
    %c1_158 = arith.constant 1 : index
    %c0_159 = arith.constant 0 : index
    %c0_160 = arith.constant 0 : index
    %389 = vector.load %arg4[%c1_158, %c0_159, %c0_160] : memref<3x64x256xbf16, #tpu.memory_space<vmem>>, vector<1x64x256xbf16>
    %390 = vector.shape_cast %389 : vector<1x64x256xbf16> to vector<64x256xbf16>
    %cst_161 = arith.constant dense<0.000000e+00> : vector<8x256xf32>
    %391 = tpu.matmul %388, %390, %cst_161 {dimension_numbers = #tpu.dot_dimension_numbers<[1], [0], [0], [1], [0, 0, 1, 1], [], []>} : vector<8x64xbf16>, vector<64x256xbf16>, vector<8x256xf32> -> vector<8x256xf32>
    %392 = arith.addf %387, %391 : vector<8x256xf32>
    %c0_162 = arith.constant 0 : index
    %c0_163 = arith.constant 0 : index
    %c0_164 = arith.constant 0 : index
    %393 = vector.load %arg6[%c0_162, %c0_163, %c0_164] : memref<2x1x256xf32, #tpu.memory_space<vmem>>, vector<1x1x256xf32>
    %394 = vector.shape_cast %393 : vector<1x1x256xf32> to vector<1x256xf32>
    %395 = vector.broadcast %394 : vector<1x256xf32> to vector<8x256xf32>
    %396 = arith.addf %392, %395 : vector<8x256xf32>
    %397 = vector.extract_strided_slice %396 {offsets = [0, 0], sizes = [8, 192], strides = [1, 1]} : vector<8x256xf32> to vector<8x192xf32>
    %cst_165 = arith.constant 5.000000e-01 : f32
    %398 = vector.broadcast %cst_165 : f32 to vector<8x192xf32>
    %399 = arith.mulf %398, %397 : vector<8x192xf32>
    %400 = math.tanh %399 : vector<8x192xf32>
    %cst_166 = arith.constant 1.000000e+00 : f32
    %401 = vector.broadcast %cst_166 : f32 to vector<8x192xf32>
    %402 = arith.addf %400, %401 : vector<8x192xf32>
    %cst_167 = arith.constant 5.000000e-01 : f32
    %403 = vector.broadcast %cst_167 : f32 to vector<8x192xf32>
    %404 = arith.mulf %403, %402 : vector<8x192xf32>
    %405 = vector.extract_strided_slice %396 {offsets = [0, 192], sizes = [8, 64], strides = [1, 1]} : vector<8x256xf32> to vector<8x64xf32>
    %406 = math.tanh %405 : vector<8x64xf32>
    %407 = vector.extract_strided_slice %404 {offsets = [0, 64], sizes = [8, 64], strides = [1, 1]} : vector<8x192xf32> to vector<8x64xf32>
    %408 = arith.mulf %407, %319 : vector<8x64xf32>
    %409 = vector.extract_strided_slice %404 {offsets = [0, 0], sizes = [8, 64], strides = [1, 1]} : vector<8x192xf32> to vector<8x64xf32>
    %410 = arith.mulf %409, %406 : vector<8x64xf32>
    %411 = arith.addf %408, %410 : vector<8x64xf32>
    %412 = vector.extract_strided_slice %404 {offsets = [0, 128], sizes = [8, 64], strides = [1, 1]} : vector<8x192xf32> to vector<8x64xf32>
    %413 = math.tanh %411 : vector<8x64xf32>
    %414 = arith.mulf %412, %413 : vector<8x64xf32>
    %415 = arith.truncf %322 : vector<8x64xf32> to vector<8x64xbf16>
    %c1_168 = arith.constant 1 : index
    %c0_169 = arith.constant 0 : index
    %c0_170 = arith.constant 0 : index
    %416 = vector.load %arg5[%c1_168, %c0_169, %c0_170] : memref<2x64x256xbf16, #tpu.memory_space<vmem>>, vector<1x64x256xbf16>
    %417 = vector.shape_cast %416 : vector<1x64x256xbf16> to vector<64x256xbf16>
    %cst_171 = arith.constant dense<0.000000e+00> : vector<8x256xf32>
    %418 = tpu.matmul %415, %417, %cst_171 {dimension_numbers = #tpu.dot_dimension_numbers<[1], [0], [0], [1], [0, 0, 1, 1], [], []>} : vector<8x64xbf16>, vector<64x256xbf16>, vector<8x256xf32> -> vector<8x256xf32>
    %419 = arith.truncf %353 : vector<8x64xf32> to vector<8x64xbf16>
    %c2_172 = arith.constant 2 : index
    %c0_173 = arith.constant 0 : index
    %c0_174 = arith.constant 0 : index
    %420 = vector.load %arg4[%c2_172, %c0_173, %c0_174] : memref<3x64x256xbf16, #tpu.memory_space<vmem>>, vector<1x64x256xbf16>
    %421 = vector.shape_cast %420 : vector<1x64x256xbf16> to vector<64x256xbf16>
    %cst_175 = arith.constant dense<0.000000e+00> : vector<8x256xf32>
    %422 = tpu.matmul %419, %421, %cst_175 {dimension_numbers = #tpu.dot_dimension_numbers<[1], [0], [0], [1], [0, 0, 1, 1], [], []>} : vector<8x64xbf16>, vector<64x256xbf16>, vector<8x256xf32> -> vector<8x256xf32>
    %423 = arith.addf %418, %422 : vector<8x256xf32>
    %c1_176 = arith.constant 1 : index
    %c0_177 = arith.constant 0 : index
    %c0_178 = arith.constant 0 : index
    %424 = vector.load %arg6[%c1_176, %c0_177, %c0_178] : memref<2x1x256xf32, #tpu.memory_space<vmem>>, vector<1x1x256xf32>
    %425 = vector.shape_cast %424 : vector<1x1x256xf32> to vector<1x256xf32>
    %426 = vector.broadcast %425 : vector<1x256xf32> to vector<8x256xf32>
    %427 = arith.addf %423, %426 : vector<8x256xf32>
    %428 = vector.extract_strided_slice %427 {offsets = [0, 0], sizes = [8, 192], strides = [1, 1]} : vector<8x256xf32> to vector<8x192xf32>
    %cst_179 = arith.constant 5.000000e-01 : f32
    %429 = vector.broadcast %cst_179 : f32 to vector<8x192xf32>
    %430 = arith.mulf %429, %428 : vector<8x192xf32>
    %431 = math.tanh %430 : vector<8x192xf32>
    %cst_180 = arith.constant 1.000000e+00 : f32
    %432 = vector.broadcast %cst_180 : f32 to vector<8x192xf32>
    %433 = arith.addf %431, %432 : vector<8x192xf32>
    %cst_181 = arith.constant 5.000000e-01 : f32
    %434 = vector.broadcast %cst_181 : f32 to vector<8x192xf32>
    %435 = arith.mulf %434, %433 : vector<8x192xf32>
    %436 = vector.extract_strided_slice %427 {offsets = [0, 192], sizes = [8, 64], strides = [1, 1]} : vector<8x256xf32> to vector<8x64xf32>
    %437 = math.tanh %436 : vector<8x64xf32>
    %438 = vector.extract_strided_slice %435 {offsets = [0, 64], sizes = [8, 64], strides = [1, 1]} : vector<8x192xf32> to vector<8x64xf32>
    %439 = arith.mulf %438, %350 : vector<8x64xf32>
    %440 = vector.extract_strided_slice %435 {offsets = [0, 0], sizes = [8, 64], strides = [1, 1]} : vector<8x192xf32> to vector<8x64xf32>
    %441 = arith.mulf %440, %437 : vector<8x64xf32>
    %442 = arith.addf %439, %441 : vector<8x64xf32>
    %443 = vector.extract_strided_slice %435 {offsets = [0, 128], sizes = [8, 64], strides = [1, 1]} : vector<8x192xf32> to vector<8x64xf32>
    %444 = math.tanh %442 : vector<8x64xf32>
    %445 = arith.mulf %443, %444 : vector<8x64xf32>
    %c3_i32 = arith.constant 3 : i32
    %446 = vector.broadcast %c3_i32 : i32 to vector<8x1xi32>
    %447 = arith.cmpi eq, %0, %446 : vector<8x1xi32>
    %448 = vector.shape_cast %447 : vector<8x1xi1> to vector<8x1xi1>
    %449 = vector.broadcast %448 : vector<8x1xi1> to vector<8x64xi1>
    %450 = arith.select %449, %445, %358 : vector<8x64xi1>, vector<8x64xf32>
    %c6 = arith.constant 6 : index
    %c0_182 = arith.constant 0 : index
    %c0_183 = arith.constant 0 : index
    %451 = vector.load %arg1[%c6, %c0_182, %c0_183] : memref<8x8x256xf32, #tpu.memory_space<vmem>>, vector<1x8x256xf32>
    %452 = vector.shape_cast %451 : vector<1x8x256xf32> to vector<8x256xf32>
    %453 = arith.truncf %383 : vector<8x64xf32> to vector<8x64xbf16>
    %c0_184 = arith.constant 0 : index
    %c0_185 = arith.constant 0 : index
    %c0_186 = arith.constant 0 : index
    %454 = vector.load %arg4[%c0_184, %c0_185, %c0_186] : memref<3x64x256xbf16, #tpu.memory_space<vmem>>, vector<1x64x256xbf16>
    %455 = vector.shape_cast %454 : vector<1x64x256xbf16> to vector<64x256xbf16>
    %cst_187 = arith.constant dense<0.000000e+00> : vector<8x256xf32>
    %456 = tpu.matmul %453, %455, %cst_187 {dimension_numbers = #tpu.dot_dimension_numbers<[1], [0], [0], [1], [0, 0, 1, 1], [], []>} : vector<8x64xbf16>, vector<64x256xbf16>, vector<8x256xf32> -> vector<8x256xf32>
    %457 = arith.addf %452, %456 : vector<8x256xf32>
    %458 = vector.extract_strided_slice %457 {offsets = [0, 0], sizes = [8, 192], strides = [1, 1]} : vector<8x256xf32> to vector<8x192xf32>
    %cst_188 = arith.constant 5.000000e-01 : f32
    %459 = vector.broadcast %cst_188 : f32 to vector<8x192xf32>
    %460 = arith.mulf %459, %458 : vector<8x192xf32>
    %461 = math.tanh %460 : vector<8x192xf32>
    %cst_189 = arith.constant 1.000000e+00 : f32
    %462 = vector.broadcast %cst_189 : f32 to vector<8x192xf32>
    %463 = arith.addf %461, %462 : vector<8x192xf32>
    %cst_190 = arith.constant 5.000000e-01 : f32
    %464 = vector.broadcast %cst_190 : f32 to vector<8x192xf32>
    %465 = arith.mulf %464, %463 : vector<8x192xf32>
    %466 = vector.extract_strided_slice %457 {offsets = [0, 192], sizes = [8, 64], strides = [1, 1]} : vector<8x256xf32> to vector<8x64xf32>
    %467 = math.tanh %466 : vector<8x64xf32>
    %468 = vector.extract_strided_slice %465 {offsets = [0, 64], sizes = [8, 64], strides = [1, 1]} : vector<8x192xf32> to vector<8x64xf32>
    %469 = arith.mulf %468, %380 : vector<8x64xf32>
    %470 = vector.extract_strided_slice %465 {offsets = [0, 0], sizes = [8, 64], strides = [1, 1]} : vector<8x192xf32> to vector<8x64xf32>
    %471 = arith.mulf %470, %467 : vector<8x64xf32>
    %472 = arith.addf %469, %471 : vector<8x64xf32>
    %473 = vector.extract_strided_slice %465 {offsets = [0, 128], sizes = [8, 64], strides = [1, 1]} : vector<8x192xf32> to vector<8x64xf32>
    %474 = math.tanh %472 : vector<8x64xf32>
    %475 = arith.mulf %473, %474 : vector<8x64xf32>
    %476 = arith.truncf %383 : vector<8x64xf32> to vector<8x64xbf16>
    %c0_191 = arith.constant 0 : index
    %c0_192 = arith.constant 0 : index
    %c0_193 = arith.constant 0 : index
    %477 = vector.load %arg5[%c0_191, %c0_192, %c0_193] : memref<2x64x256xbf16, #tpu.memory_space<vmem>>, vector<1x64x256xbf16>
    %478 = vector.shape_cast %477 : vector<1x64x256xbf16> to vector<64x256xbf16>
    %cst_194 = arith.constant dense<0.000000e+00> : vector<8x256xf32>
    %479 = tpu.matmul %476, %478, %cst_194 {dimension_numbers = #tpu.dot_dimension_numbers<[1], [0], [0], [1], [0, 0, 1, 1], [], []>} : vector<8x64xbf16>, vector<64x256xbf16>, vector<8x256xf32> -> vector<8x256xf32>
    %480 = arith.truncf %414 : vector<8x64xf32> to vector<8x64xbf16>
    %c1_195 = arith.constant 1 : index
    %c0_196 = arith.constant 0 : index
    %c0_197 = arith.constant 0 : index
    %481 = vector.load %arg4[%c1_195, %c0_196, %c0_197] : memref<3x64x256xbf16, #tpu.memory_space<vmem>>, vector<1x64x256xbf16>
    %482 = vector.shape_cast %481 : vector<1x64x256xbf16> to vector<64x256xbf16>
    %cst_198 = arith.constant dense<0.000000e+00> : vector<8x256xf32>
    %483 = tpu.matmul %480, %482, %cst_198 {dimension_numbers = #tpu.dot_dimension_numbers<[1], [0], [0], [1], [0, 0, 1, 1], [], []>} : vector<8x64xbf16>, vector<64x256xbf16>, vector<8x256xf32> -> vector<8x256xf32>
    %484 = arith.addf %479, %483 : vector<8x256xf32>
    %c0_199 = arith.constant 0 : index
    %c0_200 = arith.constant 0 : index
    %c0_201 = arith.constant 0 : index
    %485 = vector.load %arg6[%c0_199, %c0_200, %c0_201] : memref<2x1x256xf32, #tpu.memory_space<vmem>>, vector<1x1x256xf32>
    %486 = vector.shape_cast %485 : vector<1x1x256xf32> to vector<1x256xf32>
    %487 = vector.broadcast %486 : vector<1x256xf32> to vector<8x256xf32>
    %488 = arith.addf %484, %487 : vector<8x256xf32>
    %489 = vector.extract_strided_slice %488 {offsets = [0, 0], sizes = [8, 192], strides = [1, 1]} : vector<8x256xf32> to vector<8x192xf32>
    %cst_202 = arith.constant 5.000000e-01 : f32
    %490 = vector.broadcast %cst_202 : f32 to vector<8x192xf32>
    %491 = arith.mulf %490, %489 : vector<8x192xf32>
    %492 = math.tanh %491 : vector<8x192xf32>
    %cst_203 = arith.constant 1.000000e+00 : f32
    %493 = vector.broadcast %cst_203 : f32 to vector<8x192xf32>
    %494 = arith.addf %492, %493 : vector<8x192xf32>
    %cst_204 = arith.constant 5.000000e-01 : f32
    %495 = vector.broadcast %cst_204 : f32 to vector<8x192xf32>
    %496 = arith.mulf %495, %494 : vector<8x192xf32>
    %497 = vector.extract_strided_slice %488 {offsets = [0, 192], sizes = [8, 64], strides = [1, 1]} : vector<8x256xf32> to vector<8x64xf32>
    %498 = math.tanh %497 : vector<8x64xf32>
    %499 = vector.extract_strided_slice %496 {offsets = [0, 64], sizes = [8, 64], strides = [1, 1]} : vector<8x192xf32> to vector<8x64xf32>
    %500 = arith.mulf %499, %411 : vector<8x64xf32>
    %501 = vector.extract_strided_slice %496 {offsets = [0, 0], sizes = [8, 64], strides = [1, 1]} : vector<8x192xf32> to vector<8x64xf32>
    %502 = arith.mulf %501, %498 : vector<8x64xf32>
    %503 = arith.addf %500, %502 : vector<8x64xf32>
    %504 = vector.extract_strided_slice %496 {offsets = [0, 128], sizes = [8, 64], strides = [1, 1]} : vector<8x192xf32> to vector<8x64xf32>
    %505 = math.tanh %503 : vector<8x64xf32>
    %506 = arith.mulf %504, %505 : vector<8x64xf32>
    %507 = arith.truncf %414 : vector<8x64xf32> to vector<8x64xbf16>
    %c1_205 = arith.constant 1 : index
    %c0_206 = arith.constant 0 : index
    %c0_207 = arith.constant 0 : index
    %508 = vector.load %arg5[%c1_205, %c0_206, %c0_207] : memref<2x64x256xbf16, #tpu.memory_space<vmem>>, vector<1x64x256xbf16>
    %509 = vector.shape_cast %508 : vector<1x64x256xbf16> to vector<64x256xbf16>
    %cst_208 = arith.constant dense<0.000000e+00> : vector<8x256xf32>
    %510 = tpu.matmul %507, %509, %cst_208 {dimension_numbers = #tpu.dot_dimension_numbers<[1], [0], [0], [1], [0, 0, 1, 1], [], []>} : vector<8x64xbf16>, vector<64x256xbf16>, vector<8x256xf32> -> vector<8x256xf32>
    %511 = arith.truncf %445 : vector<8x64xf32> to vector<8x64xbf16>
    %c2_209 = arith.constant 2 : index
    %c0_210 = arith.constant 0 : index
    %c0_211 = arith.constant 0 : index
    %512 = vector.load %arg4[%c2_209, %c0_210, %c0_211] : memref<3x64x256xbf16, #tpu.memory_space<vmem>>, vector<1x64x256xbf16>
    %513 = vector.shape_cast %512 : vector<1x64x256xbf16> to vector<64x256xbf16>
    %cst_212 = arith.constant dense<0.000000e+00> : vector<8x256xf32>
    %514 = tpu.matmul %511, %513, %cst_212 {dimension_numbers = #tpu.dot_dimension_numbers<[1], [0], [0], [1], [0, 0, 1, 1], [], []>} : vector<8x64xbf16>, vector<64x256xbf16>, vector<8x256xf32> -> vector<8x256xf32>
    %515 = arith.addf %510, %514 : vector<8x256xf32>
    %c1_213 = arith.constant 1 : index
    %c0_214 = arith.constant 0 : index
    %c0_215 = arith.constant 0 : index
    %516 = vector.load %arg6[%c1_213, %c0_214, %c0_215] : memref<2x1x256xf32, #tpu.memory_space<vmem>>, vector<1x1x256xf32>
    %517 = vector.shape_cast %516 : vector<1x1x256xf32> to vector<1x256xf32>
    %518 = vector.broadcast %517 : vector<1x256xf32> to vector<8x256xf32>
    %519 = arith.addf %515, %518 : vector<8x256xf32>
    %520 = vector.extract_strided_slice %519 {offsets = [0, 0], sizes = [8, 192], strides = [1, 1]} : vector<8x256xf32> to vector<8x192xf32>
    %cst_216 = arith.constant 5.000000e-01 : f32
    %521 = vector.broadcast %cst_216 : f32 to vector<8x192xf32>
    %522 = arith.mulf %521, %520 : vector<8x192xf32>
    %523 = math.tanh %522 : vector<8x192xf32>
    %cst_217 = arith.constant 1.000000e+00 : f32
    %524 = vector.broadcast %cst_217 : f32 to vector<8x192xf32>
    %525 = arith.addf %523, %524 : vector<8x192xf32>
    %cst_218 = arith.constant 5.000000e-01 : f32
    %526 = vector.broadcast %cst_218 : f32 to vector<8x192xf32>
    %527 = arith.mulf %526, %525 : vector<8x192xf32>
    %528 = vector.extract_strided_slice %519 {offsets = [0, 192], sizes = [8, 64], strides = [1, 1]} : vector<8x256xf32> to vector<8x64xf32>
    %529 = math.tanh %528 : vector<8x64xf32>
    %530 = vector.extract_strided_slice %527 {offsets = [0, 64], sizes = [8, 64], strides = [1, 1]} : vector<8x192xf32> to vector<8x64xf32>
    %531 = arith.mulf %530, %442 : vector<8x64xf32>
    %532 = vector.extract_strided_slice %527 {offsets = [0, 0], sizes = [8, 64], strides = [1, 1]} : vector<8x192xf32> to vector<8x64xf32>
    %533 = arith.mulf %532, %529 : vector<8x64xf32>
    %534 = arith.addf %531, %533 : vector<8x64xf32>
    %535 = vector.extract_strided_slice %527 {offsets = [0, 128], sizes = [8, 64], strides = [1, 1]} : vector<8x192xf32> to vector<8x64xf32>
    %536 = math.tanh %534 : vector<8x64xf32>
    %537 = arith.mulf %535, %536 : vector<8x64xf32>
    %c4_i32 = arith.constant 4 : i32
    %538 = vector.broadcast %c4_i32 : i32 to vector<8x1xi32>
    %539 = arith.cmpi eq, %0, %538 : vector<8x1xi32>
    %540 = vector.shape_cast %539 : vector<8x1xi1> to vector<8x1xi1>
    %541 = vector.broadcast %540 : vector<8x1xi1> to vector<8x64xi1>
    %542 = arith.select %541, %537, %450 : vector<8x64xi1>, vector<8x64xf32>
    %c7 = arith.constant 7 : index
    %c0_219 = arith.constant 0 : index
    %c0_220 = arith.constant 0 : index
    %543 = vector.load %arg1[%c7, %c0_219, %c0_220] : memref<8x8x256xf32, #tpu.memory_space<vmem>>, vector<1x8x256xf32>
    %544 = vector.shape_cast %543 : vector<1x8x256xf32> to vector<8x256xf32>
    %545 = arith.truncf %475 : vector<8x64xf32> to vector<8x64xbf16>
    %c0_221 = arith.constant 0 : index
    %c0_222 = arith.constant 0 : index
    %c0_223 = arith.constant 0 : index
    %546 = vector.load %arg4[%c0_221, %c0_222, %c0_223] : memref<3x64x256xbf16, #tpu.memory_space<vmem>>, vector<1x64x256xbf16>
    %547 = vector.shape_cast %546 : vector<1x64x256xbf16> to vector<64x256xbf16>
    %cst_224 = arith.constant dense<0.000000e+00> : vector<8x256xf32>
    %548 = tpu.matmul %545, %547, %cst_224 {dimension_numbers = #tpu.dot_dimension_numbers<[1], [0], [0], [1], [0, 0, 1, 1], [], []>} : vector<8x64xbf16>, vector<64x256xbf16>, vector<8x256xf32> -> vector<8x256xf32>
    %549 = arith.addf %544, %548 : vector<8x256xf32>
    %550 = vector.extract_strided_slice %549 {offsets = [0, 0], sizes = [8, 192], strides = [1, 1]} : vector<8x256xf32> to vector<8x192xf32>
    %cst_225 = arith.constant 5.000000e-01 : f32
    %551 = vector.broadcast %cst_225 : f32 to vector<8x192xf32>
    %552 = arith.mulf %551, %550 : vector<8x192xf32>
    %553 = math.tanh %552 : vector<8x192xf32>
    %cst_226 = arith.constant 1.000000e+00 : f32
    %554 = vector.broadcast %cst_226 : f32 to vector<8x192xf32>
    %555 = arith.addf %553, %554 : vector<8x192xf32>
    %cst_227 = arith.constant 5.000000e-01 : f32
    %556 = vector.broadcast %cst_227 : f32 to vector<8x192xf32>
    %557 = arith.mulf %556, %555 : vector<8x192xf32>
    %558 = vector.extract_strided_slice %549 {offsets = [0, 192], sizes = [8, 64], strides = [1, 1]} : vector<8x256xf32> to vector<8x64xf32>
    %559 = math.tanh %558 : vector<8x64xf32>
    %560 = vector.extract_strided_slice %557 {offsets = [0, 64], sizes = [8, 64], strides = [1, 1]} : vector<8x192xf32> to vector<8x64xf32>
    %561 = arith.mulf %560, %472 : vector<8x64xf32>
    %562 = vector.extract_strided_slice %557 {offsets = [0, 0], sizes = [8, 64], strides = [1, 1]} : vector<8x192xf32> to vector<8x64xf32>
    %563 = arith.mulf %562, %559 : vector<8x64xf32>
    %564 = arith.addf %561, %563 : vector<8x64xf32>
    %565 = vector.extract_strided_slice %557 {offsets = [0, 128], sizes = [8, 64], strides = [1, 1]} : vector<8x192xf32> to vector<8x64xf32>
    %566 = math.tanh %564 : vector<8x64xf32>
    %567 = arith.mulf %565, %566 : vector<8x64xf32>
    %568 = arith.truncf %475 : vector<8x64xf32> to vector<8x64xbf16>
    %c0_228 = arith.constant 0 : index
    %c0_229 = arith.constant 0 : index
    %c0_230 = arith.constant 0 : index
    %569 = vector.load %arg5[%c0_228, %c0_229, %c0_230] : memref<2x64x256xbf16, #tpu.memory_space<vmem>>, vector<1x64x256xbf16>
    %570 = vector.shape_cast %569 : vector<1x64x256xbf16> to vector<64x256xbf16>
    %cst_231 = arith.constant dense<0.000000e+00> : vector<8x256xf32>
    %571 = tpu.matmul %568, %570, %cst_231 {dimension_numbers = #tpu.dot_dimension_numbers<[1], [0], [0], [1], [0, 0, 1, 1], [], []>} : vector<8x64xbf16>, vector<64x256xbf16>, vector<8x256xf32> -> vector<8x256xf32>
    %572 = arith.truncf %506 : vector<8x64xf32> to vector<8x64xbf16>
    %c1_232 = arith.constant 1 : index
    %c0_233 = arith.constant 0 : index
    %c0_234 = arith.constant 0 : index
    %573 = vector.load %arg4[%c1_232, %c0_233, %c0_234] : memref<3x64x256xbf16, #tpu.memory_space<vmem>>, vector<1x64x256xbf16>
    %574 = vector.shape_cast %573 : vector<1x64x256xbf16> to vector<64x256xbf16>
    %cst_235 = arith.constant dense<0.000000e+00> : vector<8x256xf32>
    %575 = tpu.matmul %572, %574, %cst_235 {dimension_numbers = #tpu.dot_dimension_numbers<[1], [0], [0], [1], [0, 0, 1, 1], [], []>} : vector<8x64xbf16>, vector<64x256xbf16>, vector<8x256xf32> -> vector<8x256xf32>
    %576 = arith.addf %571, %575 : vector<8x256xf32>
    %c0_236 = arith.constant 0 : index
    %c0_237 = arith.constant 0 : index
    %c0_238 = arith.constant 0 : index
    %577 = vector.load %arg6[%c0_236, %c0_237, %c0_238] : memref<2x1x256xf32, #tpu.memory_space<vmem>>, vector<1x1x256xf32>
    %578 = vector.shape_cast %577 : vector<1x1x256xf32> to vector<1x256xf32>
    %579 = vector.broadcast %578 : vector<1x256xf32> to vector<8x256xf32>
    %580 = arith.addf %576, %579 : vector<8x256xf32>
    %581 = vector.extract_strided_slice %580 {offsets = [0, 0], sizes = [8, 192], strides = [1, 1]} : vector<8x256xf32> to vector<8x192xf32>
    %cst_239 = arith.constant 5.000000e-01 : f32
    %582 = vector.broadcast %cst_239 : f32 to vector<8x192xf32>
    %583 = arith.mulf %582, %581 : vector<8x192xf32>
    %584 = math.tanh %583 : vector<8x192xf32>
    %cst_240 = arith.constant 1.000000e+00 : f32
    %585 = vector.broadcast %cst_240 : f32 to vector<8x192xf32>
    %586 = arith.addf %584, %585 : vector<8x192xf32>
    %cst_241 = arith.constant 5.000000e-01 : f32
    %587 = vector.broadcast %cst_241 : f32 to vector<8x192xf32>
    %588 = arith.mulf %587, %586 : vector<8x192xf32>
    %589 = vector.extract_strided_slice %580 {offsets = [0, 192], sizes = [8, 64], strides = [1, 1]} : vector<8x256xf32> to vector<8x64xf32>
    %590 = math.tanh %589 : vector<8x64xf32>
    %591 = vector.extract_strided_slice %588 {offsets = [0, 64], sizes = [8, 64], strides = [1, 1]} : vector<8x192xf32> to vector<8x64xf32>
    %592 = arith.mulf %591, %503 : vector<8x64xf32>
    %593 = vector.extract_strided_slice %588 {offsets = [0, 0], sizes = [8, 64], strides = [1, 1]} : vector<8x192xf32> to vector<8x64xf32>
    %594 = arith.mulf %593, %590 : vector<8x64xf32>
    %595 = arith.addf %592, %594 : vector<8x64xf32>
    %596 = vector.extract_strided_slice %588 {offsets = [0, 128], sizes = [8, 64], strides = [1, 1]} : vector<8x192xf32> to vector<8x64xf32>
    %597 = math.tanh %595 : vector<8x64xf32>
    %598 = arith.mulf %596, %597 : vector<8x64xf32>
    %599 = arith.truncf %506 : vector<8x64xf32> to vector<8x64xbf16>
    %c1_242 = arith.constant 1 : index
    %c0_243 = arith.constant 0 : index
    %c0_244 = arith.constant 0 : index
    %600 = vector.load %arg5[%c1_242, %c0_243, %c0_244] : memref<2x64x256xbf16, #tpu.memory_space<vmem>>, vector<1x64x256xbf16>
    %601 = vector.shape_cast %600 : vector<1x64x256xbf16> to vector<64x256xbf16>
    %cst_245 = arith.constant dense<0.000000e+00> : vector<8x256xf32>
    %602 = tpu.matmul %599, %601, %cst_245 {dimension_numbers = #tpu.dot_dimension_numbers<[1], [0], [0], [1], [0, 0, 1, 1], [], []>} : vector<8x64xbf16>, vector<64x256xbf16>, vector<8x256xf32> -> vector<8x256xf32>
    %603 = arith.truncf %537 : vector<8x64xf32> to vector<8x64xbf16>
    %c2_246 = arith.constant 2 : index
    %c0_247 = arith.constant 0 : index
    %c0_248 = arith.constant 0 : index
    %604 = vector.load %arg4[%c2_246, %c0_247, %c0_248] : memref<3x64x256xbf16, #tpu.memory_space<vmem>>, vector<1x64x256xbf16>
    %605 = vector.shape_cast %604 : vector<1x64x256xbf16> to vector<64x256xbf16>
    %cst_249 = arith.constant dense<0.000000e+00> : vector<8x256xf32>
    %606 = tpu.matmul %603, %605, %cst_249 {dimension_numbers = #tpu.dot_dimension_numbers<[1], [0], [0], [1], [0, 0, 1, 1], [], []>} : vector<8x64xbf16>, vector<64x256xbf16>, vector<8x256xf32> -> vector<8x256xf32>
    %607 = arith.addf %602, %606 : vector<8x256xf32>
    %c1_250 = arith.constant 1 : index
    %c0_251 = arith.constant 0 : index
    %c0_252 = arith.constant 0 : index
    %608 = vector.load %arg6[%c1_250, %c0_251, %c0_252] : memref<2x1x256xf32, #tpu.memory_space<vmem>>, vector<1x1x256xf32>
    %609 = vector.shape_cast %608 : vector<1x1x256xf32> to vector<1x256xf32>
    %610 = vector.broadcast %609 : vector<1x256xf32> to vector<8x256xf32>
    %611 = arith.addf %607, %610 : vector<8x256xf32>
    %612 = vector.extract_strided_slice %611 {offsets = [0, 0], sizes = [8, 192], strides = [1, 1]} : vector<8x256xf32> to vector<8x192xf32>
    %cst_253 = arith.constant 5.000000e-01 : f32
    %613 = vector.broadcast %cst_253 : f32 to vector<8x192xf32>
    %614 = arith.mulf %613, %612 : vector<8x192xf32>
    %615 = math.tanh %614 : vector<8x192xf32>
    %cst_254 = arith.constant 1.000000e+00 : f32
    %616 = vector.broadcast %cst_254 : f32 to vector<8x192xf32>
    %617 = arith.addf %615, %616 : vector<8x192xf32>
    %cst_255 = arith.constant 5.000000e-01 : f32
    %618 = vector.broadcast %cst_255 : f32 to vector<8x192xf32>
    %619 = arith.mulf %618, %617 : vector<8x192xf32>
    %620 = vector.extract_strided_slice %611 {offsets = [0, 192], sizes = [8, 64], strides = [1, 1]} : vector<8x256xf32> to vector<8x64xf32>
    %621 = math.tanh %620 : vector<8x64xf32>
    %622 = vector.extract_strided_slice %619 {offsets = [0, 64], sizes = [8, 64], strides = [1, 1]} : vector<8x192xf32> to vector<8x64xf32>
    %623 = arith.mulf %622, %534 : vector<8x64xf32>
    %624 = vector.extract_strided_slice %619 {offsets = [0, 0], sizes = [8, 64], strides = [1, 1]} : vector<8x192xf32> to vector<8x64xf32>
    %625 = arith.mulf %624, %621 : vector<8x64xf32>
    %626 = arith.addf %623, %625 : vector<8x64xf32>
    %627 = vector.extract_strided_slice %619 {offsets = [0, 128], sizes = [8, 64], strides = [1, 1]} : vector<8x192xf32> to vector<8x64xf32>
    %628 = math.tanh %626 : vector<8x64xf32>
    %629 = arith.mulf %627, %628 : vector<8x64xf32>
    %c5_i32 = arith.constant 5 : i32
    %630 = vector.broadcast %c5_i32 : i32 to vector<8x1xi32>
    %631 = arith.cmpi eq, %0, %630 : vector<8x1xi32>
    %632 = vector.shape_cast %631 : vector<8x1xi1> to vector<8x1xi1>
    %633 = vector.broadcast %632 : vector<8x1xi1> to vector<8x64xi1>
    %634 = arith.select %633, %629, %542 : vector<8x64xi1>, vector<8x64xf32>
    %635 = arith.truncf %567 : vector<8x64xf32> to vector<8x64xbf16>
    %c0_256 = arith.constant 0 : index
    %c0_257 = arith.constant 0 : index
    %c0_258 = arith.constant 0 : index
    %636 = vector.load %arg5[%c0_256, %c0_257, %c0_258] : memref<2x64x256xbf16, #tpu.memory_space<vmem>>, vector<1x64x256xbf16>
    %637 = vector.shape_cast %636 : vector<1x64x256xbf16> to vector<64x256xbf16>
    %cst_259 = arith.constant dense<0.000000e+00> : vector<8x256xf32>
    %638 = tpu.matmul %635, %637, %cst_259 {dimension_numbers = #tpu.dot_dimension_numbers<[1], [0], [0], [1], [0, 0, 1, 1], [], []>} : vector<8x64xbf16>, vector<64x256xbf16>, vector<8x256xf32> -> vector<8x256xf32>
    %639 = arith.truncf %598 : vector<8x64xf32> to vector<8x64xbf16>
    %c1_260 = arith.constant 1 : index
    %c0_261 = arith.constant 0 : index
    %c0_262 = arith.constant 0 : index
    %640 = vector.load %arg4[%c1_260, %c0_261, %c0_262] : memref<3x64x256xbf16, #tpu.memory_space<vmem>>, vector<1x64x256xbf16>
    %641 = vector.shape_cast %640 : vector<1x64x256xbf16> to vector<64x256xbf16>
    %cst_263 = arith.constant dense<0.000000e+00> : vector<8x256xf32>
    %642 = tpu.matmul %639, %641, %cst_263 {dimension_numbers = #tpu.dot_dimension_numbers<[1], [0], [0], [1], [0, 0, 1, 1], [], []>} : vector<8x64xbf16>, vector<64x256xbf16>, vector<8x256xf32> -> vector<8x256xf32>
    %643 = arith.addf %638, %642 : vector<8x256xf32>
    %c0_264 = arith.constant 0 : index
    %c0_265 = arith.constant 0 : index
    %c0_266 = arith.constant 0 : index
    %644 = vector.load %arg6[%c0_264, %c0_265, %c0_266] : memref<2x1x256xf32, #tpu.memory_space<vmem>>, vector<1x1x256xf32>
    %645 = vector.shape_cast %644 : vector<1x1x256xf32> to vector<1x256xf32>
    %646 = vector.broadcast %645 : vector<1x256xf32> to vector<8x256xf32>
    %647 = arith.addf %643, %646 : vector<8x256xf32>
    %648 = vector.extract_strided_slice %647 {offsets = [0, 0], sizes = [8, 192], strides = [1, 1]} : vector<8x256xf32> to vector<8x192xf32>
    %cst_267 = arith.constant 5.000000e-01 : f32
    %649 = vector.broadcast %cst_267 : f32 to vector<8x192xf32>
    %650 = arith.mulf %649, %648 : vector<8x192xf32>
    %651 = math.tanh %650 : vector<8x192xf32>
    %cst_268 = arith.constant 1.000000e+00 : f32
    %652 = vector.broadcast %cst_268 : f32 to vector<8x192xf32>
    %653 = arith.addf %651, %652 : vector<8x192xf32>
    %cst_269 = arith.constant 5.000000e-01 : f32
    %654 = vector.broadcast %cst_269 : f32 to vector<8x192xf32>
    %655 = arith.mulf %654, %653 : vector<8x192xf32>
    %656 = vector.extract_strided_slice %647 {offsets = [0, 192], sizes = [8, 64], strides = [1, 1]} : vector<8x256xf32> to vector<8x64xf32>
    %657 = math.tanh %656 : vector<8x64xf32>
    %658 = vector.extract_strided_slice %655 {offsets = [0, 64], sizes = [8, 64], strides = [1, 1]} : vector<8x192xf32> to vector<8x64xf32>
    %659 = arith.mulf %658, %595 : vector<8x64xf32>
    %660 = vector.extract_strided_slice %655 {offsets = [0, 0], sizes = [8, 64], strides = [1, 1]} : vector<8x192xf32> to vector<8x64xf32>
    %661 = arith.mulf %660, %657 : vector<8x64xf32>
    %662 = arith.addf %659, %661 : vector<8x64xf32>
    %663 = vector.extract_strided_slice %655 {offsets = [0, 128], sizes = [8, 64], strides = [1, 1]} : vector<8x192xf32> to vector<8x64xf32>
    %664 = math.tanh %662 : vector<8x64xf32>
    %665 = arith.mulf %663, %664 : vector<8x64xf32>
    %666 = arith.truncf %598 : vector<8x64xf32> to vector<8x64xbf16>
    %c1_270 = arith.constant 1 : index
    %c0_271 = arith.constant 0 : index
    %c0_272 = arith.constant 0 : index
    %667 = vector.load %arg5[%c1_270, %c0_271, %c0_272] : memref<2x64x256xbf16, #tpu.memory_space<vmem>>, vector<1x64x256xbf16>
    %668 = vector.shape_cast %667 : vector<1x64x256xbf16> to vector<64x256xbf16>
    %cst_273 = arith.constant dense<0.000000e+00> : vector<8x256xf32>
    %669 = tpu.matmul %666, %668, %cst_273 {dimension_numbers = #tpu.dot_dimension_numbers<[1], [0], [0], [1], [0, 0, 1, 1], [], []>} : vector<8x64xbf16>, vector<64x256xbf16>, vector<8x256xf32> -> vector<8x256xf32>
    %670 = arith.truncf %629 : vector<8x64xf32> to vector<8x64xbf16>
    %c2_274 = arith.constant 2 : index
    %c0_275 = arith.constant 0 : index
    %c0_276 = arith.constant 0 : index
    %671 = vector.load %arg4[%c2_274, %c0_275, %c0_276] : memref<3x64x256xbf16, #tpu.memory_space<vmem>>, vector<1x64x256xbf16>
    %672 = vector.shape_cast %671 : vector<1x64x256xbf16> to vector<64x256xbf16>
    %cst_277 = arith.constant dense<0.000000e+00> : vector<8x256xf32>
    %673 = tpu.matmul %670, %672, %cst_277 {dimension_numbers = #tpu.dot_dimension_numbers<[1], [0], [0], [1], [0, 0, 1, 1], [], []>} : vector<8x64xbf16>, vector<64x256xbf16>, vector<8x256xf32> -> vector<8x256xf32>
    %674 = arith.addf %669, %673 : vector<8x256xf32>
    %c1_278 = arith.constant 1 : index
    %c0_279 = arith.constant 0 : index
    %c0_280 = arith.constant 0 : index
    %675 = vector.load %arg6[%c1_278, %c0_279, %c0_280] : memref<2x1x256xf32, #tpu.memory_space<vmem>>, vector<1x1x256xf32>
    %676 = vector.shape_cast %675 : vector<1x1x256xf32> to vector<1x256xf32>
    %677 = vector.broadcast %676 : vector<1x256xf32> to vector<8x256xf32>
    %678 = arith.addf %674, %677 : vector<8x256xf32>
    %679 = vector.extract_strided_slice %678 {offsets = [0, 0], sizes = [8, 192], strides = [1, 1]} : vector<8x256xf32> to vector<8x192xf32>
    %cst_281 = arith.constant 5.000000e-01 : f32
    %680 = vector.broadcast %cst_281 : f32 to vector<8x192xf32>
    %681 = arith.mulf %680, %679 : vector<8x192xf32>
    %682 = math.tanh %681 : vector<8x192xf32>
    %cst_282 = arith.constant 1.000000e+00 : f32
    %683 = vector.broadcast %cst_282 : f32 to vector<8x192xf32>
    %684 = arith.addf %682, %683 : vector<8x192xf32>
    %cst_283 = arith.constant 5.000000e-01 : f32
    %685 = vector.broadcast %cst_283 : f32 to vector<8x192xf32>
    %686 = arith.mulf %685, %684 : vector<8x192xf32>
    %687 = vector.extract_strided_slice %678 {offsets = [0, 192], sizes = [8, 64], strides = [1, 1]} : vector<8x256xf32> to vector<8x64xf32>
    %688 = math.tanh %687 : vector<8x64xf32>
    %689 = vector.extract_strided_slice %686 {offsets = [0, 64], sizes = [8, 64], strides = [1, 1]} : vector<8x192xf32> to vector<8x64xf32>
    %690 = arith.mulf %689, %626 : vector<8x64xf32>
    %691 = vector.extract_strided_slice %686 {offsets = [0, 0], sizes = [8, 64], strides = [1, 1]} : vector<8x192xf32> to vector<8x64xf32>
    %692 = arith.mulf %691, %688 : vector<8x64xf32>
    %693 = arith.addf %690, %692 : vector<8x64xf32>
    %694 = vector.extract_strided_slice %686 {offsets = [0, 128], sizes = [8, 64], strides = [1, 1]} : vector<8x192xf32> to vector<8x64xf32>
    %695 = math.tanh %693 : vector<8x64xf32>
    %696 = arith.mulf %694, %695 : vector<8x64xf32>
    %c6_i32 = arith.constant 6 : i32
    %697 = vector.broadcast %c6_i32 : i32 to vector<8x1xi32>
    %698 = arith.cmpi eq, %0, %697 : vector<8x1xi32>
    %699 = vector.shape_cast %698 : vector<8x1xi1> to vector<8x1xi1>
    %700 = vector.broadcast %699 : vector<8x1xi1> to vector<8x64xi1>
    %701 = arith.select %700, %696, %634 : vector<8x64xi1>, vector<8x64xf32>
    %702 = arith.truncf %665 : vector<8x64xf32> to vector<8x64xbf16>
    %c1_284 = arith.constant 1 : index
    %c0_285 = arith.constant 0 : index
    %c0_286 = arith.constant 0 : index
    %703 = vector.load %arg5[%c1_284, %c0_285, %c0_286] : memref<2x64x256xbf16, #tpu.memory_space<vmem>>, vector<1x64x256xbf16>
    %704 = vector.shape_cast %703 : vector<1x64x256xbf16> to vector<64x256xbf16>
    %cst_287 = arith.constant dense<0.000000e+00> : vector<8x256xf32>
    %705 = tpu.matmul %702, %704, %cst_287 {dimension_numbers = #tpu.dot_dimension_numbers<[1], [0], [0], [1], [0, 0, 1, 1], [], []>} : vector<8x64xbf16>, vector<64x256xbf16>, vector<8x256xf32> -> vector<8x256xf32>
    %706 = arith.truncf %696 : vector<8x64xf32> to vector<8x64xbf16>
    %c2_288 = arith.constant 2 : index
    %c0_289 = arith.constant 0 : index
    %c0_290 = arith.constant 0 : index
    %707 = vector.load %arg4[%c2_288, %c0_289, %c0_290] : memref<3x64x256xbf16, #tpu.memory_space<vmem>>, vector<1x64x256xbf16>
    %708 = vector.shape_cast %707 : vector<1x64x256xbf16> to vector<64x256xbf16>
    %cst_291 = arith.constant dense<0.000000e+00> : vector<8x256xf32>
    %709 = tpu.matmul %706, %708, %cst_291 {dimension_numbers = #tpu.dot_dimension_numbers<[1], [0], [0], [1], [0, 0, 1, 1], [], []>} : vector<8x64xbf16>, vector<64x256xbf16>, vector<8x256xf32> -> vector<8x256xf32>
    %710 = arith.addf %705, %709 : vector<8x256xf32>
    %c1_292 = arith.constant 1 : index
    %c0_293 = arith.constant 0 : index
    %c0_294 = arith.constant 0 : index
    %711 = vector.load %arg6[%c1_292, %c0_293, %c0_294] : memref<2x1x256xf32, #tpu.memory_space<vmem>>, vector<1x1x256xf32>
    %712 = vector.shape_cast %711 : vector<1x1x256xf32> to vector<1x256xf32>
    %713 = vector.broadcast %712 : vector<1x256xf32> to vector<8x256xf32>
    %714 = arith.addf %710, %713 : vector<8x256xf32>
    %715 = vector.extract_strided_slice %714 {offsets = [0, 0], sizes = [8, 192], strides = [1, 1]} : vector<8x256xf32> to vector<8x192xf32>
    %cst_295 = arith.constant 5.000000e-01 : f32
    %716 = vector.broadcast %cst_295 : f32 to vector<8x192xf32>
    %717 = arith.mulf %716, %715 : vector<8x192xf32>
    %718 = math.tanh %717 : vector<8x192xf32>
    %cst_296 = arith.constant 1.000000e+00 : f32
    %719 = vector.broadcast %cst_296 : f32 to vector<8x192xf32>
    %720 = arith.addf %718, %719 : vector<8x192xf32>
    %cst_297 = arith.constant 5.000000e-01 : f32
    %721 = vector.broadcast %cst_297 : f32 to vector<8x192xf32>
    %722 = arith.mulf %721, %720 : vector<8x192xf32>
    %723 = vector.extract_strided_slice %714 {offsets = [0, 192], sizes = [8, 64], strides = [1, 1]} : vector<8x256xf32> to vector<8x64xf32>
    %724 = math.tanh %723 : vector<8x64xf32>
    %725 = vector.extract_strided_slice %722 {offsets = [0, 64], sizes = [8, 64], strides = [1, 1]} : vector<8x192xf32> to vector<8x64xf32>
    %726 = arith.mulf %725, %693 : vector<8x64xf32>
    %727 = vector.extract_strided_slice %722 {offsets = [0, 0], sizes = [8, 64], strides = [1, 1]} : vector<8x192xf32> to vector<8x64xf32>
    %728 = arith.mulf %727, %724 : vector<8x64xf32>
    %729 = arith.addf %726, %728 : vector<8x64xf32>
    %730 = vector.extract_strided_slice %722 {offsets = [0, 128], sizes = [8, 64], strides = [1, 1]} : vector<8x192xf32> to vector<8x64xf32>
    %731 = math.tanh %729 : vector<8x64xf32>
    %732 = arith.mulf %730, %731 : vector<8x64xf32>
    %c7_i32 = arith.constant 7 : i32
    %733 = vector.broadcast %c7_i32 : i32 to vector<8x1xi32>
    %734 = arith.cmpi eq, %0, %733 : vector<8x1xi32>
    %735 = vector.shape_cast %734 : vector<8x1xi1> to vector<8x1xi1>
    %736 = vector.broadcast %735 : vector<8x1xi1> to vector<8x64xi1>
    %737 = arith.select %736, %732, %701 : vector<8x64xi1>, vector<8x64xf32>
    %738 = arith.truncf %737 : vector<8x64xf32> to vector<8x64xbf16>
    %c0_298 = arith.constant 0 : index
    %c0_299 = arith.constant 0 : index
    %739 = vector.load %arg7[%c0_298, %c0_299] : memref<64x5xbf16, #tpu.memory_space<vmem>>, vector<64x5xbf16>
    %cst_300 = arith.constant dense<0.000000e+00> : vector<8x5xf32>
    %740 = tpu.matmul %738, %739, %cst_300 {dimension_numbers = #tpu.dot_dimension_numbers<[1], [0], [0], [1], [0, 0, 1, 1], [], []>} : vector<8x64xbf16>, vector<64x5xbf16>, vector<8x5xf32> -> vector<8x5xf32>
    %c0_301 = arith.constant 0 : index
    %c0_302 = arith.constant 0 : index
    %741 = vector.load %arg8[%c0_301, %c0_302] : memref<1x5xf32, #tpu.memory_space<vmem>>, vector<1x5xf32>
    %742 = vector.broadcast %741 : vector<1x5xf32> to vector<8x5xf32>
    %743 = arith.addf %740, %742 : vector<8x5xf32>
    %744 = tpu.iota {dimensions = array<i32: 1>} : vector<8x5xi32>
    %c0_i32_303 = arith.constant 0 : i32
    %745 = vector.broadcast %c0_i32_303 : i32 to vector<8x5xi32>
    %746 = arith.cmpi eq, %744, %745 : vector<8x5xi32>
    %c0_304 = arith.constant 0 : index
    %c0_305 = arith.constant 0 : index
    %747 = vector.load %arg3[%c0_304, %c0_305] : memref<8x1xf32, #tpu.memory_space<vmem>>, vector<8x1xf32>
    %cst_306 = arith.constant 0.000000e+00 : f32
    %748 = vector.shape_cast %747 : vector<8x1xf32> to vector<8x1xf32>
    %749 = vector.broadcast %748 : vector<8x1xf32> to vector<8x5xf32>
    %750 = vector.broadcast %cst_306 : f32 to vector<8x5xf32>
    %751 = arith.select %746, %749, %750 : vector<8x5xi1>, vector<8x5xf32>
    %752 = arith.addf %743, %751 : vector<8x5xf32>
    %c0_307 = arith.constant 0 : index
    %c0_308 = arith.constant 0 : index
    %753 = vector.load %arg9[%c0_307, %c0_308] : memref<8x5xf32, #tpu.memory_space<vmem>>, vector<8x5xf32>
    tpu.vector_store %arg9[%c0_307, %c0_308], %752 {strides = array<i32>} : memref<8x5xf32, #tpu.memory_space<vmem>>, vector<8x5xf32>,
    return
  }
  func.func @transform_0(%arg0: i32) -> (i32, i32, i32) {
    %c0_i32 = arith.constant 0 : i32
    %c0_i32_0 = arith.constant 0 : i32
    %c0_i32_1 = arith.constant 0 : i32
    return %c0_i32, %arg0, %c0_i32_0 : i32, i32, i32
  }
  func.func @transform_1(%arg0: i32) -> (i32, i32) {
    %c0_i32 = arith.constant 0 : i32
    %c0_i32_0 = arith.constant 0 : i32
    return %arg0, %c0_i32 : i32, i32
  }
  func.func @transform_2(%arg0: i32) -> (i32, i32) {
    %c0_i32 = arith.constant 0 : i32
    %c0_i32_0 = arith.constant 0 : i32
    return %arg0, %c0_i32 : i32, i32
  }
  func.func @transform_3(%arg0: i32) -> (i32, i32, i32) {
    %c0_i32 = arith.constant 0 : i32
    %c0_i32_0 = arith.constant 0 : i32
    %c0_i32_1 = arith.constant 0 : i32
    %c0_i32_2 = arith.constant 0 : i32
    return %c0_i32, %c0_i32_0, %c0_i32_1 : i32, i32, i32
  }
  func.func @transform_4(%arg0: i32) -> (i32, i32, i32) {
    %c0_i32 = arith.constant 0 : i32
    %c0_i32_0 = arith.constant 0 : i32
    %c0_i32_1 = arith.constant 0 : i32
    %c0_i32_2 = arith.constant 0 : i32
    return %c0_i32, %c0_i32_0, %c0_i32_1 : i32, i32, i32
  }
  func.func @transform_5(%arg0: i32) -> (i32, i32, i32) {
    %c0_i32 = arith.constant 0 : i32
    %c0_i32_0 = arith.constant 0 : i32
    %c0_i32_1 = arith.constant 0 : i32
    %c0_i32_2 = arith.constant 0 : i32
    return %c0_i32, %c0_i32_0, %c0_i32_1 : i32, i32, i32
  }
  func.func @transform_6(%arg0: i32) -> (i32, i32) {
    %c0_i32 = arith.constant 0 : i32
    %c0_i32_0 = arith.constant 0 : i32
    %c0_i32_1 = arith.constant 0 : i32
    return %c0_i32, %c0_i32_0 : i32, i32
  }
  func.func @transform_7(%arg0: i32) -> (i32, i32) {
    %c0_i32 = arith.constant 0 : i32
    %c0_i32_0 = arith.constant 0 : i32
    %c0_i32_1 = arith.constant 0 : i32
    return %c0_i32, %c0_i32_0 : i32, i32
  }
  func.func @transform_8(%arg0: i32) -> (i32, i32) {
    %c0_i32 = arith.constant 0 : i32
    %c0_i32_0 = arith.constant 0 : i32
    return %arg0, %c0_i32 : i32, i32
  }
}

</mosaic_0001>

<llo_original>
// kernel: tpu_custom_call.1
$region0: #{tpu_custom_call.1}
  #allocation0 [shape = 'u32[]', space=smem, size = 0x4, offset = 0x4, fixed_abs, tag = 'smem constant byte address 0x4 - core index']
  #allocation1 [shape = 'u32[144,128]{1,0:T(1,128)}', space=vmem, size = 0x12000, scoped, tag = 'internal scratch']
  %s0 = inlined_call_operand.hbm [shape: f32[8,8,256], index: 0, kind: input, shape index: {}]
  %s1 = inlined_call_operand.vmem [shape: s32[8,1], index: 1, kind: input, shape index: {}]
  %s2 = inlined_call_operand.vmem [shape: f32[8,1], index: 2, kind: input, shape index: {}]
  %s3 = inlined_call_operand.hbm [shape: bf16[3,64,256], index: 3, kind: input, shape index: {}]
  %s4 = inlined_call_operand.hbm [shape: bf16[2,64,256], index: 4, kind: input, shape index: {}]
  %s5 = inlined_call_operand.vmem [shape: f32[2,1,256], index: 5, kind: input, shape index: {}]
  %s6 = inlined_call_operand.vmem [shape: bf16[64,5], index: 6, kind: input, shape index: {}]
  %s7 = inlined_call_operand.vmem [shape: f32[1,5], index: 7, kind: input, shape index: {}]
  %s8 = inlined_call_operand.hbm [shape: f32[8,5], index: 8, kind: output, shape index: {}]
  %s9 = sld [smem:[#allocation0]]
  $region54: #{tpu_custom_call.1} parent=0
    _
  %s11 = ssub.s32 1, %s9
  %s12 = scalar_select 0, %s11, %s9
  $region1: #{tpu_custom_call.1} parent=0
    #allocation2 [shape = 'u8[65536]{0}', space=vmem, size = 0x10000, scoped, tag = 'input window, operand 0, single buffered']
    #allocation3 [shape = 's32[1]{0}', space=sflag, size = 0x4, scoped, tag = 'scoped memory for tpu_custom_call.1']
    #allocation4 [shape = 's32[1]{0}', space=sflag, size = 0x4, scoped, tag = 'scoped memory for tpu_custom_call.1']
    #allocation5 [shape = 'u8[98304]{0}', space=vmem, size = 0x18000, scoped, tag = 'input window, operand 3, single buffered']
    #allocation6 [shape = 's32[1]{0}', space=sflag, size = 0x4, scoped, tag = 'scoped memory for tpu_custom_call.1']
    #allocation7 [shape = 'u8[65536]{0}', space=vmem, size = 0x10000, scoped, tag = 'input window, operand 4, single buffered']
    #allocation8 [shape = 'u8[4096]{0}', space=vmem, size = 0x1000, scoped, tag = 'output window, operand 0, single buffered']
    %13 = vsyncpa [#allocation3], 0
    %14 = vsyncpa [#allocation6], 0
    %15 = vsyncpa [#allocation4], 0
    // Predicated region
    $region2: #{tpu_custom_call.1} parent=1 // pred_check
      _
    $region3: #{tpu_custom_call.1} parent=1 // pred_check_branch
      %17 = sbr.rel (0) target = $region5
    $region4: #{tpu_custom_call.1} parent=1 // pred_region
      %s19 = ssub.s32 2048, 2048
      %20 = vsyncadd [#allocation3], %s19
      %s21 = sshll.u32 [#allocation2], 4
      %s22 = int_to_ptr.vmem [resolvable:$true] %s21
      %27 = dma.hbm_to_vmem [thread:$0]  %s0, 2048, %s22, [#allocation3], 256, 256, 16
    $region5: #{tpu_custom_call.1} parent=1 // pred_fallthru
      _
    // Predicated region
    $region6: #{tpu_custom_call.1} parent=1 // pred_check
      _
    $region7: #{tpu_custom_call.1} parent=1 // pred_check_branch
      %29 = sbr.rel (0) target = $region9
    $region8: #{tpu_custom_call.1} parent=1 // pred_region
      _
    $region9: #{tpu_custom_call.1} parent=1 // pred_fallthru
      _
    // Predicated region
    $region10: #{tpu_custom_call.1} parent=1 // pred_check
      _
    $region11: #{tpu_custom_call.1} parent=1 // pred_check_branch
      %31 = sbr.rel (0) target = $region13
    $region12: #{tpu_custom_call.1} parent=1 // pred_region
      _
    $region13: #{tpu_custom_call.1} parent=1 // pred_fallthru
      _
    // Predicated region
    $region14: #{tpu_custom_call.1} parent=1 // pred_check
      _
    $region15: #{tpu_custom_call.1} parent=1 // pred_check_branch
      %33 = sbr.rel (0) target = $region17
    $region16: #{tpu_custom_call.1} parent=1 // pred_region
      %s35 = ssub.s32 3072, 3072
      %36 = vsyncadd [#allocation6], %s35
      %s37 = sshll.u32 [#allocation5], 4
      %s38 = int_to_ptr.vmem [resolvable:$true] %s37
      %43 = dma.hbm_to_vmem [thread:$0]  %s3, 3072, %s38, [#allocation6], 128, 128, 8
    $region17: #{tpu_custom_call.1} parent=1 // pred_fallthru
      _
    // Predicated region
    $region18: #{tpu_custom_call.1} parent=1 // pred_check
      _
    $region19: #{tpu_custom_call.1} parent=1 // pred_check_branch
      %45 = sbr.rel (0) target = $region21
    $region20: #{tpu_custom_call.1} parent=1 // pred_region
      %s47 = ssub.s32 2048, 2048
      %48 = vsyncadd [#allocation6], %s47
      %s49 = sshll.u32 [#allocation7], 4
      %s50 = int_to_ptr.vmem [resolvable:$true] %s49
      %55 = dma.hbm_to_vmem [thread:$0]  %s4, 2048, %s50, [#allocation6], 128, 128, 8
    $region21: #{tpu_custom_call.1} parent=1 // pred_fallthru
      _
    // Predicated region
    $region22: #{tpu_custom_call.1} parent=1 // pred_check
      _
    $region23: #{tpu_custom_call.1} parent=1 // pred_check_branch
      %57 = sbr.rel (0) target = $region25
    $region24: #{tpu_custom_call.1} parent=1 // pred_region
      _
    $region25: #{tpu_custom_call.1} parent=1 // pred_fallthru
      _
    // Predicated region
    $region26: #{tpu_custom_call.1} parent=1 // pred_check
      _
    $region27: #{tpu_custom_call.1} parent=1 // pred_check_branch
      %59 = sbr.rel (0) target = $region29
    $region28: #{tpu_custom_call.1} parent=1 // pred_region
      _
    $region29: #{tpu_custom_call.1} parent=1 // pred_fallthru
      _
    // Predicated region
    $region30: #{tpu_custom_call.1} parent=1 // pred_check
      _
    $region31: #{tpu_custom_call.1} parent=1 // pred_check_branch
      %61 = sbr.rel (0) target = $region33
    $region32: #{tpu_custom_call.1} parent=1 // pred_region
      _
    $region33: #{tpu_custom_call.1} parent=1 // pred_fallthru
      _
    // Predicated region
    $region34: #{tpu_custom_call.1} parent=1 // pred_check
      _
    $region35: #{tpu_custom_call.1} parent=1 // pred_check_branch
      %63 = sbr.rel (0) target = $region37
    $region36: #{tpu_custom_call.1} parent=1 // pred_region
      %64 = dma.done [#allocation3], 2048
    $region37: #{tpu_custom_call.1} parent=1 // pred_fallthru
      _
    // Predicated region
    $region38: #{tpu_custom_call.1} parent=1 // pred_check
      _
    $region39: #{tpu_custom_call.1} parent=1 // pred_check_branch
      %66 = sbr.rel (0) target = $region41
    $region40: #{tpu_custom_call.1} parent=1 // pred_region
      %67 = dma.done [#allocation6], 3072
    $region41: #{tpu_custom_call.1} parent=1 // pred_fallthru
      _
    // Predicated region
    $region42: #{tpu_custom_call.1} parent=1 // pred_check
      _
    $region43: #{tpu_custom_call.1} parent=1 // pred_check_branch
      %69 = sbr.rel (0) target = $region45
    $region44: #{tpu_custom_call.1} parent=1 // pred_region
      %70 = dma.done [#allocation6], 2048
    $region45: #{tpu_custom_call.1} parent=1 // pred_fallthru
      _
    %v72 = vld [vmem:[%s1] sm:$0xff]
    %v73 = vld [vmem:[#allocation2] sm:$0xff]
    %v74 = vld [vmem:[#allocation2 + $0x8] sm:$0xff]
    %v75 = vld [vmem:[#allocation5] sm:$0xff]
    %v76 = vld [vmem:[#allocation5 + $0x8] sm:$0xff]
    %v77 = vld [vmem:[#allocation5 + $0x10] sm:$0xff]
    %v78 = vld [vmem:[#allocation5 + $0x18] sm:$0xff]
    %v79 = vld [vmem:[#allocation5 + $0x20] sm:$0xff]
    %v80 = vld [vmem:[#allocation5 + $0x28] sm:$0xff]
    %v81 = vld [vmem:[#allocation5 + $0x30] sm:$0xff]
    %v82 = vld [vmem:[#allocation5 + $0x38] sm:$0xff]
    %v91 = vunpack.c.l.b16 %v75
    %v92 = vunpack.c.h.b16 %v75
    %v93 = vunpack.c.l.b16 %v76
    %v94 = vunpack.c.h.b16 %v76
    %v95 = vunpack.c.l.b16 %v77
    %v96 = vunpack.c.h.b16 %v77
    %v97 = vunpack.c.l.b16 %v78
    %v98 = vunpack.c.h.b16 %v78
    %v99 = vunpack.c.l.b16 %v79
    %v100 = vunpack.c.h.b16 %v79
    %v101 = vunpack.c.l.b16 %v80
    %v102 = vunpack.c.h.b16 %v80
    %v103 = vunpack.c.l.b16 %v81
    %v104 = vunpack.c.h.b16 %v81
    %v105 = vunpack.c.l.b16 %v82
    %v106 = vunpack.c.h.b16 %v82
    %v107 = vpack.c.b16 %v93, %v91
    %v108 = vpack.c.b16 %v94, %v92
    %v109 = vpack.c.b16 %v97, %v95
    %v110 = vpack.c.b16 %v98, %v96
    %v111 = vpack.c.b16 %v101, %v99
    %v112 = vpack.c.b16 %v102, %v100
    %v113 = vpack.c.b16 %v105, %v103
    %v114 = vpack.c.b16 %v106, %v104
    %vm123 = vcmask 523264
    %v125 = vsel %vm123, 0, 0
    %127 = vmatprep.subr.bf16.mxu0 0
    %128 = vmatpush1.bf16.msra.mxu0 0
    %129 = vmatprep.subr.bf16.mxu0 0
    %130 = vmatpush1.bf16.msra.mxu0 0
    %131 = vmatprep.subr.bf16.mxu0 0
    %132 = vmatpush1.bf16.msra.mxu0 0
    %133 = vmatprep.subr.bf16.mxu0 0
    %134 = vmatpush1.bf16.msra.mxu0 0
    %135 = vmatprep.subr.bf16.mxu0 %v114
    %136 = vmatpush1.bf16.msra.mxu0 %v113
    %137 = vmatprep.subr.bf16.mxu0 %v112
    %138 = vmatpush1.bf16.msra.mxu0 %v111
    %139 = vmatprep.subr.bf16.mxu0 %v110
    %140 = vmatpush1.bf16.msra.mxu0 %v109
    %141 = vmatprep.subr.bf16.mxu0 %v108
    %142 = vmatpush1.bf16.msra.mxu0 %v107
    %143 = vmatprep.subr.bf16.mxu0 0
    %144 = vmatpush2.bf16.msra.mxu0 0
    %145 = vmatprep.subr.bf16.mxu0 0
    %146 = vmatpush2.bf16.msra.mxu0 0
    %147 = vmatprep.subr.bf16.mxu0 0
    %148 = vmatpush2.bf16.msra.mxu0 0
    %149 = vmatprep.subr.bf16.mxu0 0
    %150 = vmatpush2.bf16.msra.mxu0 0
    %151 = vmatprep.subr.bf16.mxu0 0
    %152 = vmatpush2.bf16.msra.mxu0 0
    %153 = vmatprep.subr.bf16.mxu0 0
    %154 = vmatpush2.bf16.msra.mxu0 0
    %155 = vmatprep.subr.bf16.mxu0 0
    %156 = vmatpush2.bf16.msra.mxu0 0
    %157 = vmatprep.subr.bf16.mxu0 0
    %158 = vmatpush2.bf16.msra.mxu0 0
    %159 = vmatprep.mubr.bf16.mxu0 0
    %160 = vmatmul.mubr.bf16.gmra.mxu0 %v125
    %v161 = vpop.f32.mrf.mxu0
    %v162 = vadd.f32 0.0, %v161
    %v163 = vpop.f32.mrf.mxu0
    %v164 = vadd.f32 0.0, %v163
    %v165 = vpop.f32.mrf.mxu0
    %v166 = vpop.f32.mrf.mxu0
    %167 = vdwg.mxu0
    %v168 = vadd.f32 %v73, %v162
    %v169 = vadd.f32 %v74, %v164
    %v170 = vmul.f32 %v168, 0.5
    %v171 = vmul.f32 %v169, 0.5
    %v172 = vtanh.pop %v170
    %v173 = vtanh.pop %v171
    %v174 = vadd.f32 %v172, 1.0
    %v175 = vadd.f32 %v173, 1.0
    %v176 = vmul.f32 %v174, 0.5
    %v177 = vmul.f32 %v175, 0.5
    %v178 = vtanh.pop %v169
    %v179 = vmul.f32 %v176, 0.0
    %181 = vrot.lane.b32.xlu0 %v178, 64
    %v182 = vpop.permute.xlu0 %181
    %v184 = vmul.f32 %v176, %v182
    %186 = vrot.lane.b32.xlu0 %v184, 64
    %v187 = vpop.permute.xlu0 %186
    %v189 = vadd.f32 %v179, %v187
    %v190 = vtanh.pop %v189
    %192 = vrot.lane.b32.xlu0 %v190, 64
    %v193 = vpop.permute.xlu0 %192
    %v195 = vmul.f32 %v177, %v193
    %s196 = scalar_lea.vmem [#allocation2], 16
    %v197 = vld [vmem:[%s196] sm:$0xff]
    %v198 = vld [vmem:[%s196 + $0x8] sm:$0xff]
    %v199 = vpack.c.bf16 %v195, %v195
    %v201 = vsel %vm123, %v199, 0
    %203 = vmatprep.subr.bf16.mxu0 0
    %204 = vmatpush1.bf16.msra.mxu0 0
    %205 = vmatprep.subr.bf16.mxu0 0
    %206 = vmatpush1.bf16.msra.mxu0 0
    %207 = vmatprep.subr.bf16.mxu0 0
    %208 = vmatpush1.bf16.msra.mxu0 0
    %209 = vmatprep.subr.bf16.mxu0 0
    %210 = vmatpush1.bf16.msra.mxu0 0
    %211 = vmatprep.subr.bf16.mxu0 %v114
    %212 = vmatpush1.bf16.msra.mxu0 %v113
    %213 = vmatprep.subr.bf16.mxu0 %v112
    %214 = vmatpush1.bf16.msra.mxu0 %v111
    %215 = vmatprep.subr.bf16.mxu0 %v110
    %216 = vmatpush1.bf16.msra.mxu0 %v109
    %217 = vmatprep.subr.bf16.mxu0 %v108
    %218 = vmatpush1.bf16.msra.mxu0 %v107
    %219 = vmatprep.subr.bf16.mxu0 0
    %220 = vmatpush2.bf16.msra.mxu0 0
    %221 = vmatprep.subr.bf16.mxu0 0
    %222 = vmatpush2.bf16.msra.mxu0 0
    %223 = vmatprep.subr.bf16.mxu0 0
    %224 = vmatpush2.bf16.msra.mxu0 0
    %225 = vmatprep.subr.bf16.mxu0 0
    %226 = vmatpush2.bf16.msra.mxu0 0
    %227 = vmatprep.subr.bf16.mxu0 0
    %228 = vmatpush2.bf16.msra.mxu0 0
    %229 = vmatprep.subr.bf16.mxu0 0
    %230 = vmatpush2.bf16.msra.mxu0 0
    %231 = vmatprep.subr.bf16.mxu0 0
    %232 = vmatpush2.bf16.msra.mxu0 0
    %233 = vmatprep.subr.bf16.mxu0 0
    %234 = vmatpush2.bf16.msra.mxu0 0
    %235 = vmatprep.mubr.bf16.mxu0 0
    %236 = vmatmul.mubr.bf16.gmra.mxu0 %v201
    %v237 = vpop.f32.mrf.mxu0
    %v238 = vadd.f32 0.0, %v237
    %v239 = vpop.f32.mrf.mxu0
    %v240 = vadd.f32 0.0, %v239
    %v241 = vpop.f32.mrf.mxu0
    %v242 = vpop.f32.mrf.mxu0
    %243 = vdwg.mxu0
    %v244 = vadd.f32 %v197, %v238
    %v245 = vadd.f32 %v198, %v240
    %v246 = vmul.f32 %v244, 0.5
    %v247 = vmul.f32 %v245, 0.5
    %v248 = vtanh.pop %v246
    %v249 = vtanh.pop %v247
    %v250 = vadd.f32 %v248, 1.0
    %v251 = vadd.f32 %v249, 1.0
    %v252 = vmul.f32 %v250, 0.5
    %v253 = vmul.f32 %v251, 0.5
    %v254 = vtanh.pop %v245
    %v255 = vmul.f32 %v252, %v189
    %257 = vrot.lane.b32.xlu0 %v254, 64
    %v258 = vpop.permute.xlu0 %257
    %v260 = vmul.f32 %v252, %v258
    %262 = vrot.lane.b32.xlu0 %v260, 64
    %v263 = vpop.permute.xlu0 %262
    %v265 = vadd.f32 %v255, %v263
    %v266 = vtanh.pop %v265
    %268 = vrot.lane.b32.xlu0 %v266, 64
    %v269 = vpop.permute.xlu0 %268
    %v271 = vmul.f32 %v253, %v269
    %v272 = vld [vmem:[#allocation7] sm:$0xff]
    %v273 = vld [vmem:[#allocation7 + $0x8] sm:$0xff]
    %v274 = vld [vmem:[#allocation7 + $0x10] sm:$0xff]
    %v275 = vld [vmem:[#allocation7 + $0x18] sm:$0xff]
    %v276 = vld [vmem:[#allocation7 + $0x20] sm:$0xff]
    %v277 = vld [vmem:[#allocation7 + $0x28] sm:$0xff]
    %v278 = vld [vmem:[#allocation7 + $0x30] sm:$0xff]
    %v279 = vld [vmem:[#allocation7 + $0x38] sm:$0xff]
    %s280 = scalar_lea.vmem [#allocation5], 64
    %v281 = vld [vmem:[%s280] sm:$0xff]
    %v282 = vld [vmem:[%s280 + $0x8] sm:$0xff]
    %v283 = vld [vmem:[%s280 + $0x10] sm:$0xff]
    %v284 = vld [vmem:[%s280 + $0x18] sm:$0xff]
    %v285 = vld [vmem:[%s280 + $0x20] sm:$0xff]
    %v286 = vld [vmem:[%s280 + $0x28] sm:$0xff]
    %v287 = vld [vmem:[%s280 + $0x30] sm:$0xff]
    %v288 = vld [vmem:[%s280 + $0x38] sm:$0xff]
    %v297 = vunpack.c.l.b16 %v281
    %v298 = vunpack.c.h.b16 %v281
    %v299 = vunpack.c.l.b16 %v282
    %v300 = vunpack.c.h.b16 %v282
    %v301 = vunpack.c.l.b16 %v283
    %v302 = vunpack.c.h.b16 %v283
    %v303 = vunpack.c.l.b16 %v284
    %v304 = vunpack.c.h.b16 %v284
    %v305 = vunpack.c.l.b16 %v285
    %v306 = vunpack.c.h.b16 %v285
    %v307 = vunpack.c.l.b16 %v286
    %v308 = vunpack.c.h.b16 %v286
    %v309 = vunpack.c.l.b16 %v287
    %v310 = vunpack.c.h.b16 %v287
    %v311 = vunpack.c.l.b16 %v288
    %v312 = vunpack.c.h.b16 %v288
    %v313 = vpack.c.b16 %v299, %v297
    %v314 = vpack.c.b16 %v300, %v298
    %v315 = vpack.c.b16 %v303, %v301
    %v316 = vpack.c.b16 %v304, %v302
    %v317 = vpack.c.b16 %v307, %v305
    %v318 = vpack.c.b16 %v308, %v306
    %v319 = vpack.c.b16 %v311, %v309
    %v320 = vpack.c.b16 %v312, %v310
    %329 = vmatprep.subr.bf16.mxu0 0
    %330 = vmatpush1.bf16.msra.mxu0 0
    %331 = vmatprep.subr.bf16.mxu0 0
    %332 = vmatpush1.bf16.msra.mxu0 0
    %333 = vmatprep.subr.bf16.mxu0 0
    %334 = vmatpush1.bf16.msra.mxu0 0
    %335 = vmatprep.subr.bf16.mxu0 0
    %336 = vmatpush1.bf16.msra.mxu0 0
    %337 = vmatprep.subr.bf16.mxu0 %v320
    %338 = vmatpush1.bf16.msra.mxu0 %v319
    %339 = vmatprep.subr.bf16.mxu0 %v318
    %340 = vmatpush1.bf16.msra.mxu0 %v317
    %341 = vmatprep.subr.bf16.mxu0 %v316
    %342 = vmatpush1.bf16.msra.mxu0 %v315
    %343 = vmatprep.subr.bf16.mxu0 %v314
    %344 = vmatpush1.bf16.msra.mxu0 %v313
    %345 = vmatprep.subr.bf16.mxu0 0
    %346 = vmatpush2.bf16.msra.mxu0 0
    %347 = vmatprep.subr.bf16.mxu0 0
    %348 = vmatpush2.bf16.msra.mxu0 0
    %349 = vmatprep.subr.bf16.mxu0 0
    %350 = vmatpush2.bf16.msra.mxu0 0
    %351 = vmatprep.subr.bf16.mxu0 0
    %352 = vmatpush2.bf16.msra.mxu0 0
    %353 = vmatprep.subr.bf16.mxu0 0
    %354 = vmatpush2.bf16.msra.mxu0 0
    %355 = vmatprep.subr.bf16.mxu0 0
    %356 = vmatpush2.bf16.msra.mxu0 0
    %357 = vmatprep.subr.bf16.mxu0 0
    %358 = vmatpush2.bf16.msra.mxu0 0
    %359 = vmatprep.subr.bf16.mxu0 0
    %360 = vmatpush2.bf16.msra.mxu0 0
    %361 = vmatprep.mubr.bf16.mxu0 0
    %362 = vmatmul.mubr.bf16.gmra.mxu0 %v125
    %v363 = vpop.f32.mrf.mxu0
    %v364 = vadd.f32 0.0, %v363
    %v365 = vpop.f32.mrf.mxu0
    %v366 = vadd.f32 0.0, %v365
    %v367 = vpop.f32.mrf.mxu0
    %v368 = vpop.f32.mrf.mxu0
    %369 = vdwg.mxu0
    %v378 = vunpack.c.l.b16 %v272
    %v379 = vunpack.c.h.b16 %v272
    %v380 = vunpack.c.l.b16 %v273
    %v381 = vunpack.c.h.b16 %v273
    %v382 = vunpack.c.l.b16 %v274
    %v383 = vunpack.c.h.b16 %v274
    %v384 = vunpack.c.l.b16 %v275
    %v385 = vunpack.c.h.b16 %v275
    %v386 = vunpack.c.l.b16 %v276
    %v387 = vunpack.c.h.b16 %v276
    %v388 = vunpack.c.l.b16 %v277
    %v389 = vunpack.c.h.b16 %v277
    %v390 = vunpack.c.l.b16 %v278
    %v391 = vunpack.c.h.b16 %v278
    %v392 = vunpack.c.l.b16 %v279
    %v393 = vunpack.c.h.b16 %v279
    %v394 = vpack.c.b16 %v380, %v378
    %v395 = vpack.c.b16 %v381, %v379
    %v396 = vpack.c.b16 %v384, %v382
    %v397 = vpack.c.b16 %v385, %v383
    %v398 = vpack.c.b16 %v388, %v386
    %v399 = vpack.c.b16 %v389, %v387
    %v400 = vpack.c.b16 %v392, %v390
    %v401 = vpack.c.b16 %v393, %v391
    %410 = vmatprep.subr.bf16.mxu0 0
    %411 = vmatpush1.bf16.msra.mxu0 0
    %412 = vmatprep.subr.bf16.mxu0 0
    %413 = vmatpush1.bf16.msra.mxu0 0
    %414 = vmatprep.subr.bf16.mxu0 0
    %415 = vmatpush1.bf16.msra.mxu0 0
    %416 = vmatprep.subr.bf16.mxu0 0
    %417 = vmatpush1.bf16.msra.mxu0 0
    %418 = vmatprep.subr.bf16.mxu0 %v401
    %419 = vmatpush1.bf16.msra.mxu0 %v400
    %420 = vmatprep.subr.bf16.mxu0 %v399
    %421 = vmatpush1.bf16.msra.mxu0 %v398
    %422 = vmatprep.subr.bf16.mxu0 %v397
    %423 = vmatpush1.bf16.msra.mxu0 %v396
    %424 = vmatprep.subr.bf16.mxu0 %v395
    %425 = vmatpush1.bf16.msra.mxu0 %v394
    %426 = vmatprep.subr.bf16.mxu0 0
    %427 = vmatpush2.bf16.msra.mxu0 0
    %428 = vmatprep.subr.bf16.mxu0 0
    %429 = vmatpush2.bf16.msra.mxu0 0
    %430 = vmatprep.subr.bf16.mxu0 0
    %431 = vmatpush2.bf16.msra.mxu0 0
    %432 = vmatprep.subr.bf16.mxu0 0
    %433 = vmatpush2.bf16.msra.mxu0 0
    %434 = vmatprep.subr.bf16.mxu0 0
    %435 = vmatpush2.bf16.msra.mxu0 0
    %436 = vmatprep.subr.bf16.mxu0 0
    %437 = vmatpush2.bf16.msra.mxu0 0
    %438 = vmatprep.subr.bf16.mxu0 0
    %439 = vmatpush2.bf16.msra.mxu0 0
    %440 = vmatprep.subr.bf16.mxu0 0
    %441 = vmatpush2.bf16.msra.mxu0 0
    %442 = vmatprep.mubr.bf16.mxu0 0
    %443 = vmatmul.mubr.bf16.gmra.mxu0 %v201
    %v444 = vpop.f32.mrf.mxu0
    %v445 = vadd.f32 %v364, %v444
    %v446 = vpop.f32.mrf.mxu0
    %v447 = vadd.f32 %v366, %v446
    %v448 = vpop.f32.mrf.mxu0
    %v449 = vpop.f32.mrf.mxu0
    %450 = vdwg.mxu0
    %v451 = vld [vmem:[%s5] sm:$0x3]
    %v453 = vlaneseq
    %v454 = vshrl.u32 %v453, 7
    %v455 = vsub.s32 0, %v454
    %v456 = vrot.slane %v451, %v455
    %v457 = vlaneseq
    %v458 = vshrl.u32 %v457, 7
    %v459 = vsub.s32 1, %v458
    %v460 = vrot.slane %v451, %v459
    %v463 = vadd.f32 %v445, %v456
    %v464 = vadd.f32 %v447, %v460
    %v465 = vmul.f32 %v463, 0.5
    %v466 = vmul.f32 %v464, 0.5
    %v467 = vtanh.pop %v465
    %v468 = vtanh.pop %v466
    %v469 = vadd.f32 %v467, 1.0
    %v470 = vadd.f32 %v468, 1.0
    %v471 = vmul.f32 %v469, 0.5
    %v472 = vmul.f32 %v470, 0.5
    %v473 = vtanh.pop %v464
    %v474 = vmul.f32 %v471, 0.0
    %476 = vrot.lane.b32.xlu0 %v473, 64
    %v477 = vpop.permute.xlu0 %476
    %v479 = vmul.f32 %v471, %v477
    %481 = vrot.lane.b32.xlu0 %v479, 64
    %v482 = vpop.permute.xlu0 %481
    %v484 = vadd.f32 %v474, %v482
    %v485 = vtanh.pop %v484
    %487 = vrot.lane.b32.xlu0 %v485, 64
    %v488 = vpop.permute.xlu0 %487
    %v490 = vmul.f32 %v472, %v488
    %s491 = scalar_lea.vmem [#allocation2], 32
    %v492 = vld [vmem:[%s491] sm:$0xff]
    %v493 = vld [vmem:[%s491 + $0x8] sm:$0xff]
    %v494 = vpack.c.bf16 %v271, %v271
    %v496 = vsel %vm123, %v494, 0
    %498 = vmatprep.subr.bf16.mxu0 0
    %499 = vmatpush1.bf16.msra.mxu0 0
    %500 = vmatprep.subr.bf16.mxu0 0
    %501 = vmatpush1.bf16.msra.mxu0 0
    %502 = vmatprep.subr.bf16.mxu0 0
    %503 = vmatpush1.bf16.msra.mxu0 0
    %504 = vmatprep.subr.bf16.mxu0 0
    %505 = vmatpush1.bf16.msra.mxu0 0
    %506 = vmatprep.subr.bf16.mxu0 %v114
    %507 = vmatpush1.bf16.msra.mxu0 %v113
    %508 = vmatprep.subr.bf16.mxu0 %v112
    %509 = vmatpush1.bf16.msra.mxu0 %v111
    %510 = vmatprep.subr.bf16.mxu0 %v110
    %511 = vmatpush1.bf16.msra.mxu0 %v109
    %512 = vmatprep.subr.bf16.mxu0 %v108
    %513 = vmatpush1.bf16.msra.mxu0 %v107
    %514 = vmatprep.subr.bf16.mxu0 0
    %515 = vmatpush2.bf16.msra.mxu0 0
    %516 = vmatprep.subr.bf16.mxu0 0
    %517 = vmatpush2.bf16.msra.mxu0 0
    %518 = vmatprep.subr.bf16.mxu0 0
    %519 = vmatpush2.bf16.msra.mxu0 0
    %520 = vmatprep.subr.bf16.mxu0 0
    %521 = vmatpush2.bf16.msra.mxu0 0
    %522 = vmatprep.subr.bf16.mxu0 0
    %523 = vmatpush2.bf16.msra.mxu0 0
    %524 = vmatprep.subr.bf16.mxu0 0
    %525 = vmatpush2.bf16.msra.mxu0 0
    %526 = vmatprep.subr.bf16.mxu0 0
    %527 = vmatpush2.bf16.msra.mxu0 0
    %528 = vmatprep.subr.bf16.mxu0 0
    %529 = vmatpush2.bf16.msra.mxu0 0
    %530 = vmatprep.mubr.bf16.mxu0 0
    %531 = vmatmul.mubr.bf16.gmra.mxu0 %v496
    %v532 = vpop.f32.mrf.mxu0
    %v533 = vadd.f32 0.0, %v532
    %v534 = vpop.f32.mrf.mxu0
    %v535 = vadd.f32 0.0, %v534
    %v536 = vpop.f32.mrf.mxu0
    %v537 = vpop.f32.mrf.mxu0
    %538 = vdwg.mxu0
    %v539 = vadd.f32 %v492, %v533
    %v540 = vadd.f32 %v493, %v535
    %v541 = vmul.f32 %v539, 0.5
    %v542 = vmul.f32 %v540, 0.5
    %v543 = vtanh.pop %v541
    %v544 = vtanh.pop %v542
    %v545 = vadd.f32 %v543, 1.0
    %v546 = vadd.f32 %v544, 1.0
    %v547 = vmul.f32 %v545, 0.5
    %v548 = vmul.f32 %v546, 0.5
    %v549 = vtanh.pop %v540
    %v550 = vmul.f32 %v547, %v265
    %552 = vrot.lane.b32.xlu0 %v549, 64
    %v553 = vpop.permute.xlu0 %552
    %v555 = vmul.f32 %v547, %v553
    %557 = vrot.lane.b32.xlu0 %v555, 64
    %v558 = vpop.permute.xlu0 %557
    %v560 = vadd.f32 %v550, %v558
    %v561 = vtanh.pop %v560
    %563 = vrot.lane.b32.xlu0 %v561, 64
    %v564 = vpop.permute.xlu0 %563
    %v566 = vmul.f32 %v548, %v564
    %v567 = vpack.c.bf16 %v490, %v490
    %v569 = vsel %vm123, %v567, 0
    %571 = vmatprep.subr.bf16.mxu0 0
    %572 = vmatpush1.bf16.msra.mxu0 0
    %573 = vmatprep.subr.bf16.mxu0 0
    %574 = vmatpush1.bf16.msra.mxu0 0
    %575 = vmatprep.subr.bf16.mxu0 0
    %576 = vmatpush1.bf16.msra.mxu0 0
    %577 = vmatprep.subr.bf16.mxu0 0
    %578 = vmatpush1.bf16.msra.mxu0 0
    %579 = vmatprep.subr.bf16.mxu0 %v320
    %580 = vmatpush1.bf16.msra.mxu0 %v319
    %581 = vmatprep.subr.bf16.mxu0 %v318
    %582 = vmatpush1.bf16.msra.mxu0 %v317
    %583 = vmatprep.subr.bf16.mxu0 %v316
    %584 = vmatpush1.bf16.msra.mxu0 %v315
    %585 = vmatprep.subr.bf16.mxu0 %v314
    %586 = vmatpush1.bf16.msra.mxu0 %v313
    %587 = vmatprep.subr.bf16.mxu0 0
    %588 = vmatpush2.bf16.msra.mxu0 0
    %589 = vmatprep.subr.bf16.mxu0 0
    %590 = vmatpush2.bf16.msra.mxu0 0
    %591 = vmatprep.subr.bf16.mxu0 0
    %592 = vmatpush2.bf16.msra.mxu0 0
    %593 = vmatprep.subr.bf16.mxu0 0
    %594 = vmatpush2.bf16.msra.mxu0 0
    %595 = vmatprep.subr.bf16.mxu0 0
    %596 = vmatpush2.bf16.msra.mxu0 0
    %597 = vmatprep.subr.bf16.mxu0 0
    %598 = vmatpush2.bf16.msra.mxu0 0
    %599 = vmatprep.subr.bf16.mxu0 0
    %600 = vmatpush2.bf16.msra.mxu0 0
    %601 = vmatprep.subr.bf16.mxu0 0
    %602 = vmatpush2.bf16.msra.mxu0 0
    %603 = vmatprep.mubr.bf16.mxu0 0
    %604 = vmatmul.mubr.bf16.gmra.mxu0 %v569
    %v605 = vpop.f32.mrf.mxu0
    %v606 = vadd.f32 0.0, %v605
    %v607 = vpop.f32.mrf.mxu0
    %v608 = vadd.f32 0.0, %v607
    %v609 = vpop.f32.mrf.mxu0
    %v610 = vpop.f32.mrf.mxu0
    %611 = vdwg.mxu0
    %612 = vmatprep.subr.bf16.mxu0 0
    %613 = vmatpush1.bf16.msra.mxu0 0
    %614 = vmatprep.subr.bf16.mxu0 0
    %615 = vmatpush1.bf16.msra.mxu0 0
    %616 = vmatprep.subr.bf16.mxu0 0
    %617 = vmatpush1.bf16.msra.mxu0 0
    %618 = vmatprep.subr.bf16.mxu0 0
    %619 = vmatpush1.bf16.msra.mxu0 0
    %620 = vmatprep.subr.bf16.mxu0 %v401
    %621 = vmatpush1.bf16.msra.mxu0 %v400
    %622 = vmatprep.subr.bf16.mxu0 %v399
    %623 = vmatpush1.bf16.msra.mxu0 %v398
    %624 = vmatprep.subr.bf16.mxu0 %v397
    %625 = vmatpush1.bf16.msra.mxu0 %v396
    %626 = vmatprep.subr.bf16.mxu0 %v395
    %627 = vmatpush1.bf16.msra.mxu0 %v394
    %628 = vmatprep.subr.bf16.mxu0 0
    %629 = vmatpush2.bf16.msra.mxu0 0
    %630 = vmatprep.subr.bf16.mxu0 0
    %631 = vmatpush2.bf16.msra.mxu0 0
    %632 = vmatprep.subr.bf16.mxu0 0
    %633 = vmatpush2.bf16.msra.mxu0 0
    %634 = vmatprep.subr.bf16.mxu0 0
    %635 = vmatpush2.bf16.msra.mxu0 0
    %636 = vmatprep.subr.bf16.mxu0 0
    %637 = vmatpush2.bf16.msra.mxu0 0
    %638 = vmatprep.subr.bf16.mxu0 0
    %639 = vmatpush2.bf16.msra.mxu0 0
    %640 = vmatprep.subr.bf16.mxu0 0
    %641 = vmatpush2.bf16.msra.mxu0 0
    %642 = vmatprep.subr.bf16.mxu0 0
    %643 = vmatpush2.bf16.msra.mxu0 0
    %644 = vmatprep.mubr.bf16.mxu0 0
    %645 = vmatmul.mubr.bf16.gmra.mxu0 %v496
    %v646 = vpop.f32.mrf.mxu0
    %v647 = vadd.f32 %v606, %v646
    %v648 = vpop.f32.mrf.mxu0
    %v649 = vadd.f32 %v608, %v648
    %v650 = vpop.f32.mrf.mxu0
    %v651 = vpop.f32.mrf.mxu0
    %652 = vdwg.mxu0
    %v653 = vadd.f32 %v647, %v456
    %v654 = vadd.f32 %v649, %v460
    %v655 = vmul.f32 %v653, 0.5
    %v656 = vmul.f32 %v654, 0.5
    %v657 = vtanh.pop %v655
    %v658 = vtanh.pop %v656
    %v659 = vadd.f32 %v657, 1.0
    %v660 = vadd.f32 %v658, 1.0
    %v661 = vmul.f32 %v659, 0.5
    %v662 = vmul.f32 %v660, 0.5
    %v663 = vtanh.pop %v654
    %v664 = vmul.f32 %v661, %v484
    %666 = vrot.lane.b32.xlu0 %v663, 64
    %v667 = vpop.permute.xlu0 %666
    %v669 = vmul.f32 %v661, %v667
    %671 = vrot.lane.b32.xlu0 %v669, 64
    %v672 = vpop.permute.xlu0 %671
    %v674 = vadd.f32 %v664, %v672
    %v675 = vtanh.pop %v674
    %677 = vrot.lane.b32.xlu0 %v675, 64
    %v678 = vpop.permute.xlu0 %677
    %v680 = vmul.f32 %v662, %v678
    %s681 = scalar_lea.vmem [#allocation7], 64
    %v682 = vld [vmem:[%s681] sm:$0xff]
    %v683 = vld [vmem:[%s681 + $0x8] sm:$0xff]
    %v684 = vld [vmem:[%s681 + $0x10] sm:$0xff]
    %v685 = vld [vmem:[%s681 + $0x18] sm:$0xff]
    %v686 = vld [vmem:[%s681 + $0x20] sm:$0xff]
    %v687 = vld [vmem:[%s681 + $0x28] sm:$0xff]
    %v688 = vld [vmem:[%s681 + $0x30] sm:$0xff]
    %v689 = vld [vmem:[%s681 + $0x38] sm:$0xff]
    %s690 = scalar_lea.vmem [#allocation5], 128
    %v691 = vld [vmem:[%s690] sm:$0xff]
    %v692 = vld [vmem:[%s690 + $0x8] sm:$0xff]
    %v693 = vld [vmem:[%s690 + $0x10] sm:$0xff]
    %v694 = vld [vmem:[%s690 + $0x18] sm:$0xff]
    %v695 = vld [vmem:[%s690 + $0x20] sm:$0xff]
    %v696 = vld [vmem:[%s690 + $0x28] sm:$0xff]
    %v697 = vld [vmem:[%s690 + $0x30] sm:$0xff]
    %v698 = vld [vmem:[%s690 + $0x38] sm:$0xff]
    %v707 = vunpack.c.l.b16 %v691
    %v708 = vunpack.c.h.b16 %v691
    %v709 = vunpack.c.l.b16 %v692
    %v710 = vunpack.c.h.b16 %v692
    %v711 = vunpack.c.l.b16 %v693
    %v712 = vunpack.c.h.b16 %v693
    %v713 = vunpack.c.l.b16 %v694
    %v714 = vunpack.c.h.b16 %v694
    %v715 = vunpack.c.l.b16 %v695
    %v716 = vunpack.c.h.b16 %v695
    %v717 = vunpack.c.l.b16 %v696
    %v718 = vunpack.c.h.b16 %v696
    %v719 = vunpack.c.l.b16 %v697
    %v720 = vunpack.c.h.b16 %v697
    %v721 = vunpack.c.l.b16 %v698
    %v722 = vunpack.c.h.b16 %v698
    %v723 = vpack.c.b16 %v709, %v707
    %v724 = vpack.c.b16 %v710, %v708
    %v725 = vpack.c.b16 %v713, %v711
    %v726 = vpack.c.b16 %v714, %v712
    %v727 = vpack.c.b16 %v717, %v715
    %v728 = vpack.c.b16 %v718, %v716
    %v729 = vpack.c.b16 %v721, %v719
    %v730 = vpack.c.b16 %v722, %v720
    %739 = vmatprep.subr.bf16.mxu0 0
    %740 = vmatpush1.bf16.msra.mxu0 0
    %741 = vmatprep.subr.bf16.mxu0 0
    %742 = vmatpush1.bf16.msra.mxu0 0
    %743 = vmatprep.subr.bf16.mxu0 0
    %744 = vmatpush1.bf16.msra.mxu0 0
    %745 = vmatprep.subr.bf16.mxu0 0
    %746 = vmatpush1.bf16.msra.mxu0 0
    %747 = vmatprep.subr.bf16.mxu0 %v730
    %748 = vmatpush1.bf16.msra.mxu0 %v729
    %749 = vmatprep.subr.bf16.mxu0 %v728
    %750 = vmatpush1.bf16.msra.mxu0 %v727
    %751 = vmatprep.subr.bf16.mxu0 %v726
    %752 = vmatpush1.bf16.msra.mxu0 %v725
    %753 = vmatprep.subr.bf16.mxu0 %v724
    %754 = vmatpush1.bf16.msra.mxu0 %v723
    %755 = vmatprep.subr.bf16.mxu0 0
    %756 = vmatpush2.bf16.msra.mxu0 0
    %757 = vmatprep.subr.bf16.mxu0 0
    %758 = vmatpush2.bf16.msra.mxu0 0
    %759 = vmatprep.subr.bf16.mxu0 0
    %760 = vmatpush2.bf16.msra.mxu0 0
    %761 = vmatprep.subr.bf16.mxu0 0
    %762 = vmatpush2.bf16.msra.mxu0 0
    %763 = vmatprep.subr.bf16.mxu0 0
    %764 = vmatpush2.bf16.msra.mxu0 0
    %765 = vmatprep.subr.bf16.mxu0 0
    %766 = vmatpush2.bf16.msra.mxu0 0
    %767 = vmatprep.subr.bf16.mxu0 0
    %768 = vmatpush2.bf16.msra.mxu0 0
    %769 = vmatprep.subr.bf16.mxu0 0
    %770 = vmatpush2.bf16.msra.mxu0 0
    %771 = vmatprep.mubr.bf16.mxu0 0
    %772 = vmatmul.mubr.bf16.gmra.mxu0 %v125
    %v773 = vpop.f32.mrf.mxu0
    %v774 = vadd.f32 0.0, %v773
    %v775 = vpop.f32.mrf.mxu0
    %v776 = vadd.f32 0.0, %v775
    %v777 = vpop.f32.mrf.mxu0
    %v778 = vpop.f32.mrf.mxu0
    %779 = vdwg.mxu0
    %v788 = vunpack.c.l.b16 %v682
    %v789 = vunpack.c.h.b16 %v682
    %v790 = vunpack.c.l.b16 %v683
    %v791 = vunpack.c.h.b16 %v683
    %v792 = vunpack.c.l.b16 %v684
    %v793 = vunpack.c.h.b16 %v684
    %v794 = vunpack.c.l.b16 %v685
    %v795 = vunpack.c.h.b16 %v685
    %v796 = vunpack.c.l.b16 %v686
    %v797 = vunpack.c.h.b16 %v686
    %v798 = vunpack.c.l.b16 %v687
    %v799 = vunpack.c.h.b16 %v687
    %v800 = vunpack.c.l.b16 %v688
    %v801 = vunpack.c.h.b16 %v688
    %v802 = vunpack.c.l.b16 %v689
    %v803 = vunpack.c.h.b16 %v689
    %v804 = vpack.c.b16 %v790, %v788
    %v805 = vpack.c.b16 %v791, %v789
    %v806 = vpack.c.b16 %v794, %v792
    %v807 = vpack.c.b16 %v795, %v793
    %v808 = vpack.c.b16 %v798, %v796
    %v809 = vpack.c.b16 %v799, %v797
    %v810 = vpack.c.b16 %v802, %v800
    %v811 = vpack.c.b16 %v803, %v801
    %820 = vmatprep.subr.bf16.mxu0 0
    %821 = vmatpush1.bf16.msra.mxu0 0
    %822 = vmatprep.subr.bf16.mxu0 0
    %823 = vmatpush1.bf16.msra.mxu0 0
    %824 = vmatprep.subr.bf16.mxu0 0
    %825 = vmatpush1.bf16.msra.mxu0 0
    %826 = vmatprep.subr.bf16.mxu0 0
    %827 = vmatpush1.bf16.msra.mxu0 0
    %828 = vmatprep.subr.bf16.mxu0 %v811
    %829 = vmatpush1.bf16.msra.mxu0 %v810
    %830 = vmatprep.subr.bf16.mxu0 %v809
    %831 = vmatpush1.bf16.msra.mxu0 %v808
    %832 = vmatprep.subr.bf16.mxu0 %v807
    %833 = vmatpush1.bf16.msra.mxu0 %v806
    %834 = vmatprep.subr.bf16.mxu0 %v805
    %835 = vmatpush1.bf16.msra.mxu0 %v804
    %836 = vmatprep.subr.bf16.mxu0 0
    %837 = vmatpush2.bf16.msra.mxu0 0
    %838 = vmatprep.subr.bf16.mxu0 0
    %839 = vmatpush2.bf16.msra.mxu0 0
    %840 = vmatprep.subr.bf16.mxu0 0
    %841 = vmatpush2.bf16.msra.mxu0 0
    %842 = vmatprep.subr.bf16.mxu0 0
    %843 = vmatpush2.bf16.msra.mxu0 0
    %844 = vmatprep.subr.bf16.mxu0 0
    %845 = vmatpush2.bf16.msra.mxu0 0
    %846 = vmatprep.subr.bf16.mxu0 0
    %847 = vmatpush2.bf16.msra.mxu0 0
    %848 = vmatprep.subr.bf16.mxu0 0
    %849 = vmatpush2.bf16.msra.mxu0 0
    %850 = vmatprep.subr.bf16.mxu0 0
    %851 = vmatpush2.bf16.msra.mxu0 0
    %852 = vmatprep.mubr.bf16.mxu0 0
    %853 = vmatmul.mubr.bf16.gmra.mxu0 %v569
    %v854 = vpop.f32.mrf.mxu0
    %v855 = vadd.f32 %v774, %v854
    %v856 = vpop.f32.mrf.mxu0
    %v857 = vadd.f32 %v776, %v856
    %v858 = vpop.f32.mrf.mxu0
    %v859 = vpop.f32.mrf.mxu0
    %860 = vdwg.mxu0
    %s861 = scalar_lea.vmem %s5, 2
    %v862 = vld [vmem:[%s861] sm:$0x3]
    %v864 = vlaneseq
    %v865 = vshrl.u32 %v864, 7
    %v866 = vsub.s32 0, %v865
    %v867 = vrot.slane %v862, %v866
    %v868 = vlaneseq
    %v869 = vshrl.u32 %v868, 7
    %v870 = vsub.s32 1, %v869
    %v871 = vrot.slane %v862, %v870
    %v874 = vadd.f32 %v855, %v867
    %v875 = vadd.f32 %v857, %v871
    %v876 = vmul.f32 %v874, 0.5
    %v877 = vmul.f32 %v875, 0.5
    %v878 = vtanh.pop %v876
    %v879 = vtanh.pop %v877
    %v880 = vadd.f32 %v878, 1.0
    %v881 = vadd.f32 %v879, 1.0
    %v882 = vmul.f32 %v880, 0.5
    %v883 = vmul.f32 %v881, 0.5
    %v884 = vtanh.pop %v875
    %v885 = vmul.f32 %v882, 0.0
    %887 = vrot.lane.b32.xlu0 %v884, 64
    %v888 = vpop.permute.xlu0 %887
    %v890 = vmul.f32 %v882, %v888
    %892 = vrot.lane.b32.xlu0 %v890, 64
    %v893 = vpop.permute.xlu0 %892
    %v895 = vadd.f32 %v885, %v893
    %v896 = vtanh.pop %v895
    %898 = vrot.lane.b32.xlu0 %v896, 64
    %v899 = vpop.permute.xlu0 %898
    %v901 = vmul.f32 %v883, %v899
    %vm902 = vcmp.eq.s32.totalorder %v72, 0
    %v903 = vsel %vm902, 1, 0
    %904 = vset.pattern.permute.xlu0 0
    %905 = vperm.xlu0 %904, %v903
    %v906 = vpop.permute.xlu0 %905
    %vm907 = vcmp.eq.s32.totalorder %v906, 1
    %v908 = vsel %vm907, %v901, 0.0
    %s909 = scalar_lea.vmem [#allocation2], 48
    %v910 = vld [vmem:[%s909] sm:$0xff]
    %v911 = vld [vmem:[%s909 + $0x8] sm:$0xff]
    %v912 = vpack.c.bf16 %v566, %v566
    %v914 = vsel %vm123, %v912, 0
    %916 = vmatprep.subr.bf16.mxu0 0
    %917 = vmatpush1.bf16.msra.mxu0 0
    %918 = vmatprep.subr.bf16.mxu0 0
    %919 = vmatpush1.bf16.msra.mxu0 0
    %920 = vmatprep.subr.bf16.mxu0 0
    %921 = vmatpush1.bf16.msra.mxu0 0
    %922 = vmatprep.subr.bf16.mxu0 0
    %923 = vmatpush1.bf16.msra.mxu0 0
    %924 = vmatprep.subr.bf16.mxu0 %v114
    %925 = vmatpush1.bf16.msra.mxu0 %v113
    %926 = vmatprep.subr.bf16.mxu0 %v112
    %927 = vmatpush1.bf16.msra.mxu0 %v111
    %928 = vmatprep.subr.bf16.mxu0 %v110
    %929 = vmatpush1.bf16.msra.mxu0 %v109
    %930 = vmatprep.subr.bf16.mxu0 %v108
    %931 = vmatpush1.bf16.msra.mxu0 %v107
    %932 = vmatprep.subr.bf16.mxu0 0
    %933 = vmatpush2.bf16.msra.mxu0 0
    %934 = vmatprep.subr.bf16.mxu0 0
    %935 = vmatpush2.bf16.msra.mxu0 0
    %936 = vmatprep.subr.bf16.mxu0 0
    %937 = vmatpush2.bf16.msra.mxu0 0
    %938 = vmatprep.subr.bf16.mxu0 0
    %939 = vmatpush2.bf16.msra.mxu0 0
    %940 = vmatprep.subr.bf16.mxu0 0
    %941 = vmatpush2.bf16.msra.mxu0 0
    %942 = vmatprep.subr.bf16.mxu0 0
    %943 = vmatpush2.bf16.msra.mxu0 0
    %944 = vmatprep.subr.bf16.mxu0 0
    %945 = vmatpush2.bf16.msra.mxu0 0
    %946 = vmatprep.subr.bf16.mxu0 0
    %947 = vmatpush2.bf16.msra.mxu0 0
    %948 = vmatprep.mubr.bf16.mxu0 0
    %949 = vmatmul.mubr.bf16.gmra.mxu0 %v914
    %v950 = vpop.f32.mrf.mxu0
    %v951 = vadd.f32 0.0, %v950
    %v952 = vpop.f32.mrf.mxu0
    %v953 = vadd.f32 0.0, %v952
    %v954 = vpop.f32.mrf.mxu0
    %v955 = vpop.f32.mrf.mxu0
    %956 = vdwg.mxu0
    %v957 = vadd.f32 %v910, %v951
    %v958 = vadd.f32 %v911, %v953
    %v959 = vmul.f32 %v957, 0.5
    %v960 = vmul.f32 %v958, 0.5
    %v961 = vtanh.pop %v959
    %v962 = vtanh.pop %v960
    %v963 = vadd.f32 %v961, 1.0
    %v964 = vadd.f32 %v962, 1.0
    %v965 = vmul.f32 %v963, 0.5
    %v966 = vmul.f32 %v964, 0.5
    %v967 = vtanh.pop %v958
    %v968 = vmul.f32 %v965, %v560
    %970 = vrot.lane.b32.xlu0 %v967, 64
    %v971 = vpop.permute.xlu0 %970
    %v973 = vmul.f32 %v965, %v971
    %975 = vrot.lane.b32.xlu0 %v973, 64
    %v976 = vpop.permute.xlu0 %975
    %v978 = vadd.f32 %v968, %v976
    %v979 = vtanh.pop %v978
    %981 = vrot.lane.b32.xlu0 %v979, 64
    %v982 = vpop.permute.xlu0 %981
    %v984 = vmul.f32 %v966, %v982
    %v985 = vpack.c.bf16 %v680, %v680
    %v987 = vsel %vm123, %v985, 0
    %989 = vmatprep.subr.bf16.mxu0 0
    %990 = vmatpush1.bf16.msra.mxu0 0
    %991 = vmatprep.subr.bf16.mxu0 0
    %992 = vmatpush1.bf16.msra.mxu0 0
    %993 = vmatprep.subr.bf16.mxu0 0
    %994 = vmatpush1.bf16.msra.mxu0 0
    %995 = vmatprep.subr.bf16.mxu0 0
    %996 = vmatpush1.bf16.msra.mxu0 0
    %997 = vmatprep.subr.bf16.mxu0 %v320
    %998 = vmatpush1.bf16.msra.mxu0 %v319
    %999 = vmatprep.subr.bf16.mxu0 %v318
    %1000 = vmatpush1.bf16.msra.mxu0 %v317
    %1001 = vmatprep.subr.bf16.mxu0 %v316
    %1002 = vmatpush1.bf16.msra.mxu0 %v315
    %1003 = vmatprep.subr.bf16.mxu0 %v314
    %1004 = vmatpush1.bf16.msra.mxu0 %v313
    %1005 = vmatprep.subr.bf16.mxu0 0
    %1006 = vmatpush2.bf16.msra.mxu0 0
    %1007 = vmatprep.subr.bf16.mxu0 0
    %1008 = vmatpush2.bf16.msra.mxu0 0
    %1009 = vmatprep.subr.bf16.mxu0 0
    %1010 = vmatpush2.bf16.msra.mxu0 0
    %1011 = vmatprep.subr.bf16.mxu0 0
    %1012 = vmatpush2.bf16.msra.mxu0 0
    %1013 = vmatprep.subr.bf16.mxu0 0
    %1014 = vmatpush2.bf16.msra.mxu0 0
    %1015 = vmatprep.subr.bf16.mxu0 0
    %1016 = vmatpush2.bf16.msra.mxu0 0
    %1017 = vmatprep.subr.bf16.mxu0 0
    %1018 = vmatpush2.bf16.msra.mxu0 0
    %1019 = vmatprep.subr.bf16.mxu0 0
    %1020 = vmatpush2.bf16.msra.mxu0 0
    %1021 = vmatprep.mubr.bf16.mxu0 0
    %1022 = vmatmul.mubr.bf16.gmra.mxu0 %v987
    %v1023 = vpop.f32.mrf.mxu0
    %v1024 = vadd.f32 0.0, %v1023
    %v1025 = vpop.f32.mrf.mxu0
    %v1026 = vadd.f32 0.0, %v1025
    %v1027 = vpop.f32.mrf.mxu0
    %v1028 = vpop.f32.mrf.mxu0
    %1029 = vdwg.mxu0
    %1030 = vmatprep.subr.bf16.mxu0 0
    %1031 = vmatpush1.bf16.msra.mxu0 0
    %1032 = vmatprep.subr.bf16.mxu0 0
    %1033 = vmatpush1.bf16.msra.mxu0 0
    %1034 = vmatprep.subr.bf16.mxu0 0
    %1035 = vmatpush1.bf16.msra.mxu0 0
    %1036 = vmatprep.subr.bf16.mxu0 0
    %1037 = vmatpush1.bf16.msra.mxu0 0
    %1038 = vmatprep.subr.bf16.mxu0 %v401
    %1039 = vmatpush1.bf16.msra.mxu0 %v400
    %1040 = vmatprep.subr.bf16.mxu0 %v399
    %1041 = vmatpush1.bf16.msra.mxu0 %v398
    %1042 = vmatprep.subr.bf16.mxu0 %v397
    %1043 = vmatpush1.bf16.msra.mxu0 %v396
    %1044 = vmatprep.subr.bf16.mxu0 %v395
    %1045 = vmatpush1.bf16.msra.mxu0 %v394
    %1046 = vmatprep.subr.bf16.mxu0 0
    %1047 = vmatpush2.bf16.msra.mxu0 0
    %1048 = vmatprep.subr.bf16.mxu0 0
    %1049 = vmatpush2.bf16.msra.mxu0 0
    %1050 = vmatprep.subr.bf16.mxu0 0
    %1051 = vmatpush2.bf16.msra.mxu0 0
    %1052 = vmatprep.subr.bf16.mxu0 0
    %1053 = vmatpush2.bf16.msra.mxu0 0
    %1054 = vmatprep.subr.bf16.mxu0 0
    %1055 = vmatpush2.bf16.msra.mxu0 0
    %1056 = vmatprep.subr.bf16.mxu0 0
    %1057 = vmatpush2.bf16.msra.mxu0 0
    %1058 = vmatprep.subr.bf16.mxu0 0
    %1059 = vmatpush2.bf16.msra.mxu0 0
    %1060 = vmatprep.subr.bf16.mxu0 0
    %1061 = vmatpush2.bf16.msra.mxu0 0
    %1062 = vmatprep.mubr.bf16.mxu0 0
    %1063 = vmatmul.mubr.bf16.gmra.mxu0 %v914
    %v1064 = vpop.f32.mrf.mxu0
    %v1065 = vadd.f32 %v1024, %v1064
    %v1066 = vpop.f32.mrf.mxu0
    %v1067 = vadd.f32 %v1026, %v1066
    %v1068 = vpop.f32.mrf.mxu0
    %v1069 = vpop.f32.mrf.mxu0
    %1070 = vdwg.mxu0
    %v1071 = vadd.f32 %v1065, %v456
    %v1072 = vadd.f32 %v1067, %v460
    %v1073 = vmul.f32 %v1071, 0.5
    %v1074 = vmul.f32 %v1072, 0.5
    %v1075 = vtanh.pop %v1073
    %v1076 = vtanh.pop %v1074
    %v1077 = vadd.f32 %v1075, 1.0
    %v1078 = vadd.f32 %v1076, 1.0
    %v1079 = vmul.f32 %v1077, 0.5
    %v1080 = vmul.f32 %v1078, 0.5
    %v1081 = vtanh.pop %v1072
    %v1082 = vmul.f32 %v1079, %v674
    %1084 = vrot.lane.b32.xlu0 %v1081, 64
    %v1085 = vpop.permute.xlu0 %1084
    %v1087 = vmul.f32 %v1079, %v1085
    %1089 = vrot.lane.b32.xlu0 %v1087, 64
    %v1090 = vpop.permute.xlu0 %1089
    %v1092 = vadd.f32 %v1082, %v1090
    %v1093 = vtanh.pop %v1092
    %1095 = vrot.lane.b32.xlu0 %v1093, 64
    %v1096 = vpop.permute.xlu0 %1095
    %v1098 = vmul.f32 %v1080, %v1096
    %v1099 = vpack.c.bf16 %v901, %v901
    %v1101 = vsel %vm123, %v1099, 0
    %1103 = vmatprep.subr.bf16.mxu0 0
    %1104 = vmatpush1.bf16.msra.mxu0 0
    %1105 = vmatprep.subr.bf16.mxu0 0
    %1106 = vmatpush1.bf16.msra.mxu0 0
    %1107 = vmatprep.subr.bf16.mxu0 0
    %1108 = vmatpush1.bf16.msra.mxu0 0
    %1109 = vmatprep.subr.bf16.mxu0 0
    %1110 = vmatpush1.bf16.msra.mxu0 0
    %1111 = vmatprep.subr.bf16.mxu0 %v730
    %1112 = vmatpush1.bf16.msra.mxu0 %v729
    %1113 = vmatprep.subr.bf16.mxu0 %v728
    %1114 = vmatpush1.bf16.msra.mxu0 %v727
    %1115 = vmatprep.subr.bf16.mxu0 %v726
    %1116 = vmatpush1.bf16.msra.mxu0 %v725
    %1117 = vmatprep.subr.bf16.mxu0 %v724
    %1118 = vmatpush1.bf16.msra.mxu0 %v723
    %1119 = vmatprep.subr.bf16.mxu0 0
    %1120 = vmatpush2.bf16.msra.mxu0 0
    %1121 = vmatprep.subr.bf16.mxu0 0
    %1122 = vmatpush2.bf16.msra.mxu0 0
    %1123 = vmatprep.subr.bf16.mxu0 0
    %1124 = vmatpush2.bf16.msra.mxu0 0
    %1125 = vmatprep.subr.bf16.mxu0 0
    %1126 = vmatpush2.bf16.msra.mxu0 0
    %1127 = vmatprep.subr.bf16.mxu0 0
    %1128 = vmatpush2.bf16.msra.mxu0 0
    %1129 = vmatprep.subr.bf16.mxu0 0
    %1130 = vmatpush2.bf16.msra.mxu0 0
    %1131 = vmatprep.subr.bf16.mxu0 0
    %1132 = vmatpush2.bf16.msra.mxu0 0
    %1133 = vmatprep.subr.bf16.mxu0 0
    %1134 = vmatpush2.bf16.msra.mxu0 0
    %1135 = vmatprep.mubr.bf16.mxu0 0
    %1136 = vmatmul.mubr.bf16.gmra.mxu0 %v1101
    %v1137 = vpop.f32.mrf.mxu0
    %v1138 = vadd.f32 0.0, %v1137
    %v1139 = vpop.f32.mrf.mxu0
    %v1140 = vadd.f32 0.0, %v1139
    %v1141 = vpop.f32.mrf.mxu0
    %v1142 = vpop.f32.mrf.mxu0
    %1143 = vdwg.mxu0
    %1144 = vmatprep.subr.bf16.mxu0 0
    %1145 = vmatpush1.bf16.msra.mxu0 0
    %1146 = vmatprep.subr.bf16.mxu0 0
    %1147 = vmatpush1.bf16.msra.mxu0 0
    %1148 = vmatprep.subr.bf16.mxu0 0
    %1149 = vmatpush1.bf16.msra.mxu0 0
    %1150 = vmatprep.subr.bf16.mxu0 0
    %1151 = vmatpush1.bf16.msra.mxu0 0
    %1152 = vmatprep.subr.bf16.mxu0 %v811
    %1153 = vmatpush1.bf16.msra.mxu0 %v810
    %1154 = vmatprep.subr.bf16.mxu0 %v809
    %1155 = vmatpush1.bf16.msra.mxu0 %v808
    %1156 = vmatprep.subr.bf16.mxu0 %v807
    %1157 = vmatpush1.bf16.msra.mxu0 %v806
    %1158 = vmatprep.subr.bf16.mxu0 %v805
    %1159 = vmatpush1.bf16.msra.mxu0 %v804
    %1160 = vmatprep.subr.bf16.mxu0 0
    %1161 = vmatpush2.bf16.msra.mxu0 0
    %1162 = vmatprep.subr.bf16.mxu0 0
    %1163 = vmatpush2.bf16.msra.mxu0 0
    %1164 = vmatprep.subr.bf16.mxu0 0
    %1165 = vmatpush2.bf16.msra.mxu0 0
    %1166 = vmatprep.subr.bf16.mxu0 0
    %1167 = vmatpush2.bf16.msra.mxu0 0
    %1168 = vmatprep.subr.bf16.mxu0 0
    %1169 = vmatpush2.bf16.msra.mxu0 0
    %1170 = vmatprep.subr.bf16.mxu0 0
    %1171 = vmatpush2.bf16.msra.mxu0 0
    %1172 = vmatprep.subr.bf16.mxu0 0
    %1173 = vmatpush2.bf16.msra.mxu0 0
    %1174 = vmatprep.subr.bf16.mxu0 0
    %1175 = vmatpush2.bf16.msra.mxu0 0
    %1176 = vmatprep.mubr.bf16.mxu0 0
    %1177 = vmatmul.mubr.bf16.gmra.mxu0 %v987
    %v1178 = vpop.f32.mrf.mxu0
    %v1179 = vadd.f32 %v1138, %v1178
    %v1180 = vpop.f32.mrf.mxu0
    %v1181 = vadd.f32 %v1140, %v1180
    %v1182 = vpop.f32.mrf.mxu0
    %v1183 = vpop.f32.mrf.mxu0
    %1184 = vdwg.mxu0
    %v1185 = vadd.f32 %v1179, %v867
    %v1186 = vadd.f32 %v1181, %v871
    %v1187 = vmul.f32 %v1185, 0.5
    %v1188 = vmul.f32 %v1186, 0.5
    %v1189 = vtanh.pop %v1187
    %v1190 = vtanh.pop %v1188
    %v1191 = vadd.f32 %v1189, 1.0
    %v1192 = vadd.f32 %v1190, 1.0
    %v1193 = vmul.f32 %v1191, 0.5
    %v1194 = vmul.f32 %v1192, 0.5
    %v1195 = vtanh.pop %v1186
    %v1196 = vmul.f32 %v1193, %v895
    %1198 = vrot.lane.b32.xlu0 %v1195, 64
    %v1199 = vpop.permute.xlu0 %1198
    %v1201 = vmul.f32 %v1193, %v1199
    %1203 = vrot.lane.b32.xlu0 %v1201, 64
    %v1204 = vpop.permute.xlu0 %1203
    %v1206 = vadd.f32 %v1196, %v1204
    %v1207 = vtanh.pop %v1206
    %1209 = vrot.lane.b32.xlu0 %v1207, 64
    %v1210 = vpop.permute.xlu0 %1209
    %v1212 = vmul.f32 %v1194, %v1210
    %vm1213 = vcmp.eq.s32.totalorder %v72, 1
    %v1214 = vsel %vm1213, 1, 0
    %1215 = vset.pattern.permute.xlu0 0
    %1216 = vperm.xlu0 %1215, %v1214
    %v1217 = vpop.permute.xlu0 %1216
    %vm1218 = vcmp.eq.s32.totalorder %v1217, 1
    %v1219 = vsel %vm1218, %v1212, %v908
    %s1220 = scalar_lea.vmem [#allocation2], 64
    %v1221 = vld [vmem:[%s1220] sm:$0xff]
    %v1222 = vld [vmem:[%s1220 + $0x8] sm:$0xff]
    %v1223 = vpack.c.bf16 %v984, %v984
    %v1225 = vsel %vm123, %v1223, 0
    %1227 = vmatprep.subr.bf16.mxu0 0
    %1228 = vmatpush1.bf16.msra.mxu0 0
    %1229 = vmatprep.subr.bf16.mxu0 0
    %1230 = vmatpush1.bf16.msra.mxu0 0
    %1231 = vmatprep.subr.bf16.mxu0 0
    %1232 = vmatpush1.bf16.msra.mxu0 0
    %1233 = vmatprep.subr.bf16.mxu0 0
    %1234 = vmatpush1.bf16.msra.mxu0 0
    %1235 = vmatprep.subr.bf16.mxu0 %v114
    %1236 = vmatpush1.bf16.msra.mxu0 %v113
    %1237 = vmatprep.subr.bf16.mxu0 %v112
    %1238 = vmatpush1.bf16.msra.mxu0 %v111
    %1239 = vmatprep.subr.bf16.mxu0 %v110
    %1240 = vmatpush1.bf16.msra.mxu0 %v109
    %1241 = vmatprep.subr.bf16.mxu0 %v108
    %1242 = vmatpush1.bf16.msra.mxu0 %v107
    %1243 = vmatprep.subr.bf16.mxu0 0
    %1244 = vmatpush2.bf16.msra.mxu0 0
    %1245 = vmatprep.subr.bf16.mxu0 0
    %1246 = vmatpush2.bf16.msra.mxu0 0
    %1247 = vmatprep.subr.bf16.mxu0 0
    %1248 = vmatpush2.bf16.msra.mxu0 0
    %1249 = vmatprep.subr.bf16.mxu0 0
    %1250 = vmatpush2.bf16.msra.mxu0 0
    %1251 = vmatprep.subr.bf16.mxu0 0
    %1252 = vmatpush2.bf16.msra.mxu0 0
    %1253 = vmatprep.subr.bf16.mxu0 0
    %1254 = vmatpush2.bf16.msra.mxu0 0
    %1255 = vmatprep.subr.bf16.mxu0 0
    %1256 = vmatpush2.bf16.msra.mxu0 0
    %1257 = vmatprep.subr.bf16.mxu0 0
    %1258 = vmatpush2.bf16.msra.mxu0 0
    %1259 = vmatprep.mubr.bf16.mxu0 0
    %1260 = vmatmul.mubr.bf16.gmra.mxu0 %v1225
    %v1261 = vpop.f32.mrf.mxu0
    %v1262 = vadd.f32 0.0, %v1261
    %v1263 = vpop.f32.mrf.mxu0
    %v1264 = vadd.f32 0.0, %v1263
    %v1265 = vpop.f32.mrf.mxu0
    %v1266 = vpop.f32.mrf.mxu0
    %1267 = vdwg.mxu0
    %v1268 = vadd.f32 %v1221, %v1262
    %v1269 = vadd.f32 %v1222, %v1264
    %v1270 = vmul.f32 %v1268, 0.5
    %v1271 = vmul.f32 %v1269, 0.5
    %v1272 = vtanh.pop %v1270
    %v1273 = vtanh.pop %v1271
    %v1274 = vadd.f32 %v1272, 1.0
    %v1275 = vadd.f32 %v1273, 1.0
    %v1276 = vmul.f32 %v1274, 0.5
    %v1277 = vmul.f32 %v1275, 0.5
    %v1278 = vtanh.pop %v1269
    %v1279 = vmul.f32 %v1276, %v978
    %1281 = vrot.lane.b32.xlu0 %v1278, 64
    %v1282 = vpop.permute.xlu0 %1281
    %v1284 = vmul.f32 %v1276, %v1282
    %1286 = vrot.lane.b32.xlu0 %v1284, 64
    %v1287 = vpop.permute.xlu0 %1286
    %v1289 = vadd.f32 %v1279, %v1287
    %v1290 = vtanh.pop %v1289
    %1292 = vrot.lane.b32.xlu0 %v1290, 64
    %v1293 = vpop.permute.xlu0 %1292
    %v1295 = vmul.f32 %v1277, %v1293
    %v1296 = vpack.c.bf16 %v1098, %v1098
    %v1298 = vsel %vm123, %v1296, 0
    %1300 = vmatprep.subr.bf16.mxu0 0
    %1301 = vmatpush1.bf16.msra.mxu0 0
    %1302 = vmatprep.subr.bf16.mxu0 0
    %1303 = vmatpush1.bf16.msra.mxu0 0
    %1304 = vmatprep.subr.bf16.mxu0 0
    %1305 = vmatpush1.bf16.msra.mxu0 0
    %1306 = vmatprep.subr.bf16.mxu0 0
    %1307 = vmatpush1.bf16.msra.mxu0 0
    %1308 = vmatprep.subr.bf16.mxu0 %v320
    %1309 = vmatpush1.bf16.msra.mxu0 %v319
    %1310 = vmatprep.subr.bf16.mxu0 %v318
    %1311 = vmatpush1.bf16.msra.mxu0 %v317
    %1312 = vmatprep.subr.bf16.mxu0 %v316
    %1313 = vmatpush1.bf16.msra.mxu0 %v315
    %1314 = vmatprep.subr.bf16.mxu0 %v314
    %1315 = vmatpush1.bf16.msra.mxu0 %v313
    %1316 = vmatprep.subr.bf16.mxu0 0
    %1317 = vmatpush2.bf16.msra.mxu0 0
    %1318 = vmatprep.subr.bf16.mxu0 0
    %1319 = vmatpush2.bf16.msra.mxu0 0
    %1320 = vmatprep.subr.bf16.mxu0 0
    %1321 = vmatpush2.bf16.msra.mxu0 0
    %1322 = vmatprep.subr.bf16.mxu0 0
    %1323 = vmatpush2.bf16.msra.mxu0 0
    %1324 = vmatprep.subr.bf16.mxu0 0
    %1325 = vmatpush2.bf16.msra.mxu0 0
    %1326 = vmatprep.subr.bf16.mxu0 0
    %1327 = vmatpush2.bf16.msra.mxu0 0
    %1328 = vmatprep.subr.bf16.mxu0 0
    %1329 = vmatpush2.bf16.msra.mxu0 0
    %1330 = vmatprep.subr.bf16.mxu0 0
    %1331 = vmatpush2.bf16.msra.mxu0 0
    %1332 = vmatprep.mubr.bf16.mxu0 0
    %1333 = vmatmul.mubr.bf16.gmra.mxu0 %v1298
    %v1334 = vpop.f32.mrf.mxu0
    %v1335 = vadd.f32 0.0, %v1334
    %v1336 = vpop.f32.mrf.mxu0
    %v1337 = vadd.f32 0.0, %v1336
    %v1338 = vpop.f32.mrf.mxu0
    %v1339 = vpop.f32.mrf.mxu0
    %1340 = vdwg.mxu0
    %1341 = vmatprep.subr.bf16.mxu0 0
    %1342 = vmatpush1.bf16.msra.mxu0 0
    %1343 = vmatprep.subr.bf16.mxu0 0
    %1344 = vmatpush1.bf16.msra.mxu0 0
    %1345 = vmatprep.subr.bf16.mxu0 0
    %1346 = vmatpush1.bf16.msra.mxu0 0
    %1347 = vmatprep.subr.bf16.mxu0 0
    %1348 = vmatpush1.bf16.msra.mxu0 0
    %1349 = vmatprep.subr.bf16.mxu0 %v401
    %1350 = vmatpush1.bf16.msra.mxu0 %v400
    %1351 = vmatprep.subr.bf16.mxu0 %v399
    %1352 = vmatpush1.bf16.msra.mxu0 %v398
    %1353 = vmatprep.subr.bf16.mxu0 %v397
    %1354 = vmatpush1.bf16.msra.mxu0 %v396
    %1355 = vmatprep.subr.bf16.mxu0 %v395
    %1356 = vmatpush1.bf16.msra.mxu0 %v394
    %1357 = vmatprep.subr.bf16.mxu0 0
    %1358 = vmatpush2.bf16.msra.mxu0 0
    %1359 = vmatprep.subr.bf16.mxu0 0
    %1360 = vmatpush2.bf16.msra.mxu0 0
    %1361 = vmatprep.subr.bf16.mxu0 0
    %1362 = vmatpush2.bf16.msra.mxu0 0
    %1363 = vmatprep.subr.bf16.mxu0 0
    %1364 = vmatpush2.bf16.msra.mxu0 0
    %1365 = vmatprep.subr.bf16.mxu0 0
    %1366 = vmatpush2.bf16.msra.mxu0 0
    %1367 = vmatprep.subr.bf16.mxu0 0
    %1368 = vmatpush2.bf16.msra.mxu0 0
    %1369 = vmatprep.subr.bf16.mxu0 0
    %1370 = vmatpush2.bf16.msra.mxu0 0
    %1371 = vmatprep.subr.bf16.mxu0 0
    %1372 = vmatpush2.bf16.msra.mxu0 0
    %1373 = vmatprep.mubr.bf16.mxu0 0
    %1374 = vmatmul.mubr.bf16.gmra.mxu0 %v1225
    %v1375 = vpop.f32.mrf.mxu0
    %v1376 = vadd.f32 %v1335, %v1375
    %v1377 = vpop.f32.mrf.mxu0
    %v1378 = vadd.f32 %v1337, %v1377
    %v1379 = vpop.f32.mrf.mxu0
    %v1380 = vpop.f32.mrf.mxu0
    %1381 = vdwg.mxu0
    %v1382 = vadd.f32 %v1376, %v456
    %v1383 = vadd.f32 %v1378, %v460
    %v1384 = vmul.f32 %v1382, 0.5
    %v1385 = vmul.f32 %v1383, 0.5
    %v1386 = vtanh.pop %v1384
    %v1387 = vtanh.pop %v1385
    %v1388 = vadd.f32 %v1386, 1.0
    %v1389 = vadd.f32 %v1387, 1.0
    %v1390 = vmul.f32 %v1388, 0.5
    %v1391 = vmul.f32 %v1389, 0.5
    %v1392 = vtanh.pop %v1383
    %v1393 = vmul.f32 %v1390, %v1092
    %1395 = vrot.lane.b32.xlu0 %v1392, 64
    %v1396 = vpop.permute.xlu0 %1395
    %v1398 = vmul.f32 %v1390, %v1396
    %1400 = vrot.lane.b32.xlu0 %v1398, 64
    %v1401 = vpop.permute.xlu0 %1400
    %v1403 = vadd.f32 %v1393, %v1401
    %v1404 = vtanh.pop %v1403
    %1406 = vrot.lane.b32.xlu0 %v1404, 64
    %v1407 = vpop.permute.xlu0 %1406
    %v1409 = vmul.f32 %v1391, %v1407
    %v1410 = vpack.c.bf16 %v1212, %v1212
    %v1412 = vsel %vm123, %v1410, 0
    %1414 = vmatprep.subr.bf16.mxu0 0
    %1415 = vmatpush1.bf16.msra.mxu0 0
    %1416 = vmatprep.subr.bf16.mxu0 0
    %1417 = vmatpush1.bf16.msra.mxu0 0
    %1418 = vmatprep.subr.bf16.mxu0 0
    %1419 = vmatpush1.bf16.msra.mxu0 0
    %1420 = vmatprep.subr.bf16.mxu0 0
    %1421 = vmatpush1.bf16.msra.mxu0 0
    %1422 = vmatprep.subr.bf16.mxu0 %v730
    %1423 = vmatpush1.bf16.msra.mxu0 %v729
    %1424 = vmatprep.subr.bf16.mxu0 %v728
    %1425 = vmatpush1.bf16.msra.mxu0 %v727
    %1426 = vmatprep.subr.bf16.mxu0 %v726
    %1427 = vmatpush1.bf16.msra.mxu0 %v725
    %1428 = vmatprep.subr.bf16.mxu0 %v724
    %1429 = vmatpush1.bf16.msra.mxu0 %v723
    %1430 = vmatprep.subr.bf16.mxu0 0
    %1431 = vmatpush2.bf16.msra.mxu0 0
    %1432 = vmatprep.subr.bf16.mxu0 0
    %1433 = vmatpush2.bf16.msra.mxu0 0
    %1434 = vmatprep.subr.bf16.mxu0 0
    %1435 = vmatpush2.bf16.msra.mxu0 0
    %1436 = vmatprep.subr.bf16.mxu0 0
    %1437 = vmatpush2.bf16.msra.mxu0 0
    %1438 = vmatprep.subr.bf16.mxu0 0
    %1439 = vmatpush2.bf16.msra.mxu0 0
    %1440 = vmatprep.subr.bf16.mxu0 0
    %1441 = vmatpush2.bf16.msra.mxu0 0
    %1442 = vmatprep.subr.bf16.mxu0 0
    %1443 = vmatpush2.bf16.msra.mxu0 0
    %1444 = vmatprep.subr.bf16.mxu0 0
    %1445 = vmatpush2.bf16.msra.mxu0 0
    %1446 = vmatprep.mubr.bf16.mxu0 0
    %1447 = vmatmul.mubr.bf16.gmra.mxu0 %v1412
    %v1448 = vpop.f32.mrf.mxu0
    %v1449 = vadd.f32 0.0, %v1448
    %v1450 = vpop.f32.mrf.mxu0
    %v1451 = vadd.f32 0.0, %v1450
    %v1452 = vpop.f32.mrf.mxu0
    %v1453 = vpop.f32.mrf.mxu0
    %1454 = vdwg.mxu0
    %1455 = vmatprep.subr.bf16.mxu0 0
    %1456 = vmatpush1.bf16.msra.mxu0 0
    %1457 = vmatprep.subr.bf16.mxu0 0
    %1458 = vmatpush1.bf16.msra.mxu0 0
    %1459 = vmatprep.subr.bf16.mxu0 0
    %1460 = vmatpush1.bf16.msra.mxu0 0
    %1461 = vmatprep.subr.bf16.mxu0 0
    %1462 = vmatpush1.bf16.msra.mxu0 0
    %1463 = vmatprep.subr.bf16.mxu0 %v811
    %1464 = vmatpush1.bf16.msra.mxu0 %v810
    %1465 = vmatprep.subr.bf16.mxu0 %v809
    %1466 = vmatpush1.bf16.msra.mxu0 %v808
    %1467 = vmatprep.subr.bf16.mxu0 %v807
    %1468 = vmatpush1.bf16.msra.mxu0 %v806
    %1469 = vmatprep.subr.bf16.mxu0 %v805
    %1470 = vmatpush1.bf16.msra.mxu0 %v804
    %1471 = vmatprep.subr.bf16.mxu0 0
    %1472 = vmatpush2.bf16.msra.mxu0 0
    %1473 = vmatprep.subr.bf16.mxu0 0
    %1474 = vmatpush2.bf16.msra.mxu0 0
    %1475 = vmatprep.subr.bf16.mxu0 0
    %1476 = vmatpush2.bf16.msra.mxu0 0
    %1477 = vmatprep.subr.bf16.mxu0 0
    %1478 = vmatpush2.bf16.msra.mxu0 0
    %1479 = vmatprep.subr.bf16.mxu0 0
    %1480 = vmatpush2.bf16.msra.mxu0 0
    %1481 = vmatprep.subr.bf16.mxu0 0
    %1482 = vmatpush2.bf16.msra.mxu0 0
    %1483 = vmatprep.subr.bf16.mxu0 0
    %1484 = vmatpush2.bf16.msra.mxu0 0
    %1485 = vmatprep.subr.bf16.mxu0 0
    %1486 = vmatpush2.bf16.msra.mxu0 0
    %1487 = vmatprep.mubr.bf16.mxu0 0
    %1488 = vmatmul.mubr.bf16.gmra.mxu0 %v1298
    %v1489 = vpop.f32.mrf.mxu0
    %v1490 = vadd.f32 %v1449, %v1489
    %v1491 = vpop.f32.mrf.mxu0
    %v1492 = vadd.f32 %v1451, %v1491
    %v1493 = vpop.f32.mrf.mxu0
    %v1494 = vpop.f32.mrf.mxu0
    %1495 = vdwg.mxu0
    %v1496 = vadd.f32 %v1490, %v867
    %v1497 = vadd.f32 %v1492, %v871
    %v1498 = vmul.f32 %v1496, 0.5
    %v1499 = vmul.f32 %v1497, 0.5
    %v1500 = vtanh.pop %v1498
    %v1501 = vtanh.pop %v1499
    %v1502 = vadd.f32 %v1500, 1.0
    %v1503 = vadd.f32 %v1501, 1.0
    %v1504 = vmul.f32 %v1502, 0.5
    %v1505 = vmul.f32 %v1503, 0.5
    %v1506 = vtanh.pop %v1497
    %v1507 = vmul.f32 %v1504, %v1206
    %1509 = vrot.lane.b32.xlu0 %v1506, 64
    %v1510 = vpop.permute.xlu0 %1509
    %v1512 = vmul.f32 %v1504, %v1510
    %1514 = vrot.lane.b32.xlu0 %v1512, 64
    %v1515 = vpop.permute.xlu0 %1514
    %v1517 = vadd.f32 %v1507, %v1515
    %v1518 = vtanh.pop %v1517
    %1520 = vrot.lane.b32.xlu0 %v1518, 64
    %v1521 = vpop.permute.xlu0 %1520
    %v1523 = vmul.f32 %v1505, %v1521
    %vm1524 = vcmp.eq.s32.totalorder %v72, 2
    %v1525 = vsel %vm1524, 1, 0
    %1526 = vset.pattern.permute.xlu0 0
    %1527 = vperm.xlu0 %1526, %v1525
    %v1528 = vpop.permute.xlu0 %1527
    %vm1529 = vcmp.eq.s32.totalorder %v1528, 1
    %v1530 = vsel %vm1529, %v1523, %v1219
    %s1531 = scalar_lea.vmem [#allocation2], 80
    %v1532 = vld [vmem:[%s1531] sm:$0xff]
    %v1533 = vld [vmem:[%s1531 + $0x8] sm:$0xff]
    %v1534 = vpack.c.bf16 %v1295, %v1295
    %v1536 = vsel %vm123, %v1534, 0
    %1538 = vmatprep.subr.bf16.mxu0 0
    %1539 = vmatpush1.bf16.msra.mxu0 0
    %1540 = vmatprep.subr.bf16.mxu0 0
    %1541 = vmatpush1.bf16.msra.mxu0 0
    %1542 = vmatprep.subr.bf16.mxu0 0
    %1543 = vmatpush1.bf16.msra.mxu0 0
    %1544 = vmatprep.subr.bf16.mxu0 0
    %1545 = vmatpush1.bf16.msra.mxu0 0
    %1546 = vmatprep.subr.bf16.mxu0 %v114
    %1547 = vmatpush1.bf16.msra.mxu0 %v113
    %1548 = vmatprep.subr.bf16.mxu0 %v112
    %1549 = vmatpush1.bf16.msra.mxu0 %v111
    %1550 = vmatprep.subr.bf16.mxu0 %v110
    %1551 = vmatpush1.bf16.msra.mxu0 %v109
    %1552 = vmatprep.subr.bf16.mxu0 %v108
    %1553 = vmatpush1.bf16.msra.mxu0 %v107
    %1554 = vmatprep.subr.bf16.mxu0 0
    %1555 = vmatpush2.bf16.msra.mxu0 0
    %1556 = vmatprep.subr.bf16.mxu0 0
    %1557 = vmatpush2.bf16.msra.mxu0 0
    %1558 = vmatprep.subr.bf16.mxu0 0
    %1559 = vmatpush2.bf16.msra.mxu0 0
    %1560 = vmatprep.subr.bf16.mxu0 0
    %1561 = vmatpush2.bf16.msra.mxu0 0
    %1562 = vmatprep.subr.bf16.mxu0 0
    %1563 = vmatpush2.bf16.msra.mxu0 0
    %1564 = vmatprep.subr.bf16.mxu0 0
    %1565 = vmatpush2.bf16.msra.mxu0 0
    %1566 = vmatprep.subr.bf16.mxu0 0
    %1567 = vmatpush2.bf16.msra.mxu0 0
    %1568 = vmatprep.subr.bf16.mxu0 0
    %1569 = vmatpush2.bf16.msra.mxu0 0
    %1570 = vmatprep.mubr.bf16.mxu0 0
    %1571 = vmatmul.mubr.bf16.gmra.mxu0 %v1536
    %v1572 = vpop.f32.mrf.mxu0
    %v1573 = vadd.f32 0.0, %v1572
    %v1574 = vpop.f32.mrf.mxu0
    %v1575 = vadd.f32 0.0, %v1574
    %v1576 = vpop.f32.mrf.mxu0
    %v1577 = vpop.f32.mrf.mxu0
    %1578 = vdwg.mxu0
    %v1579 = vadd.f32 %v1532, %v1573
    %v1580 = vadd.f32 %v1533, %v1575
    %v1581 = vmul.f32 %v1579, 0.5
    %v1582 = vmul.f32 %v1580, 0.5
    %v1583 = vtanh.pop %v1581
    %v1584 = vtanh.pop %v1582
    %v1585 = vadd.f32 %v1583, 1.0
    %v1586 = vadd.f32 %v1584, 1.0
    %v1587 = vmul.f32 %v1585, 0.5
    %v1588 = vmul.f32 %v1586, 0.5
    %v1589 = vtanh.pop %v1580
    %v1590 = vmul.f32 %v1587, %v1289
    %1592 = vrot.lane.b32.xlu0 %v1589, 64
    %v1593 = vpop.permute.xlu0 %1592
    %v1595 = vmul.f32 %v1587, %v1593
    %1597 = vrot.lane.b32.xlu0 %v1595, 64
    %v1598 = vpop.permute.xlu0 %1597
    %v1600 = vadd.f32 %v1590, %v1598
    %v1601 = vtanh.pop %v1600
    %1603 = vrot.lane.b32.xlu0 %v1601, 64
    %v1604 = vpop.permute.xlu0 %1603
    %v1606 = vmul.f32 %v1588, %v1604
    %v1607 = vpack.c.bf16 %v1409, %v1409
    %v1609 = vsel %vm123, %v1607, 0
    %1611 = vmatprep.subr.bf16.mxu0 0
    %1612 = vmatpush1.bf16.msra.mxu0 0
    %1613 = vmatprep.subr.bf16.mxu0 0
    %1614 = vmatpush1.bf16.msra.mxu0 0
    %1615 = vmatprep.subr.bf16.mxu0 0
    %1616 = vmatpush1.bf16.msra.mxu0 0
    %1617 = vmatprep.subr.bf16.mxu0 0
    %1618 = vmatpush1.bf16.msra.mxu0 0
    %1619 = vmatprep.subr.bf16.mxu0 %v320
    %1620 = vmatpush1.bf16.msra.mxu0 %v319
    %1621 = vmatprep.subr.bf16.mxu0 %v318
    %1622 = vmatpush1.bf16.msra.mxu0 %v317
    %1623 = vmatprep.subr.bf16.mxu0 %v316
    %1624 = vmatpush1.bf16.msra.mxu0 %v315
    %1625 = vmatprep.subr.bf16.mxu0 %v314
    %1626 = vmatpush1.bf16.msra.mxu0 %v313
    %1627 = vmatprep.subr.bf16.mxu0 0
    %1628 = vmatpush2.bf16.msra.mxu0 0
    %1629 = vmatprep.subr.bf16.mxu0 0
    %1630 = vmatpush2.bf16.msra.mxu0 0
    %1631 = vmatprep.subr.bf16.mxu0 0
    %1632 = vmatpush2.bf16.msra.mxu0 0
    %1633 = vmatprep.subr.bf16.mxu0 0
    %1634 = vmatpush2.bf16.msra.mxu0 0
    %1635 = vmatprep.subr.bf16.mxu0 0
    %1636 = vmatpush2.bf16.msra.mxu0 0
    %1637 = vmatprep.subr.bf16.mxu0 0
    %1638 = vmatpush2.bf16.msra.mxu0 0
    %1639 = vmatprep.subr.bf16.mxu0 0
    %1640 = vmatpush2.bf16.msra.mxu0 0
    %1641 = vmatprep.subr.bf16.mxu0 0
    %1642 = vmatpush2.bf16.msra.mxu0 0
    %1643 = vmatprep.mubr.bf16.mxu0 0
    %1644 = vmatmul.mubr.bf16.gmra.mxu0 %v1609
    %v1645 = vpop.f32.mrf.mxu0
    %v1646 = vadd.f32 0.0, %v1645
    %v1647 = vpop.f32.mrf.mxu0
    %v1648 = vadd.f32 0.0, %v1647
    %v1649 = vpop.f32.mrf.mxu0
    %v1650 = vpop.f32.mrf.mxu0
    %1651 = vdwg.mxu0
    %1652 = vmatprep.subr.bf16.mxu0 0
    %1653 = vmatpush1.bf16.msra.mxu0 0
    %1654 = vmatprep.subr.bf16.mxu0 0
    %1655 = vmatpush1.bf16.msra.mxu0 0
    %1656 = vmatprep.subr.bf16.mxu0 0
    %1657 = vmatpush1.bf16.msra.mxu0 0
    %1658 = vmatprep.subr.bf16.mxu0 0
    %1659 = vmatpush1.bf16.msra.mxu0 0
    %1660 = vmatprep.subr.bf16.mxu0 %v401
    %1661 = vmatpush1.bf16.msra.mxu0 %v400
    %1662 = vmatprep.subr.bf16.mxu0 %v399
    %1663 = vmatpush1.bf16.msra.mxu0 %v398
    %1664 = vmatprep.subr.bf16.mxu0 %v397
    %1665 = vmatpush1.bf16.msra.mxu0 %v396
    %1666 = vmatprep.subr.bf16.mxu0 %v395
    %1667 = vmatpush1.bf16.msra.mxu0 %v394
    %1668 = vmatprep.subr.bf16.mxu0 0
    %1669 = vmatpush2.bf16.msra.mxu0 0
    %1670 = vmatprep.subr.bf16.mxu0 0
    %1671 = vmatpush2.bf16.msra.mxu0 0
    %1672 = vmatprep.subr.bf16.mxu0 0
    %1673 = vmatpush2.bf16.msra.mxu0 0
    %1674 = vmatprep.subr.bf16.mxu0 0
    %1675 = vmatpush2.bf16.msra.mxu0 0
    %1676 = vmatprep.subr.bf16.mxu0 0
    %1677 = vmatpush2.bf16.msra.mxu0 0
    %1678 = vmatprep.subr.bf16.mxu0 0
    %1679 = vmatpush2.bf16.msra.mxu0 0
    %1680 = vmatprep.subr.bf16.mxu0 0
    %1681 = vmatpush2.bf16.msra.mxu0 0
    %1682 = vmatprep.subr.bf16.mxu0 0
    %1683 = vmatpush2.bf16.msra.mxu0 0
    %1684 = vmatprep.mubr.bf16.mxu0 0
    %1685 = vmatmul.mubr.bf16.gmra.mxu0 %v1536
    %v1686 = vpop.f32.mrf.mxu0
    %v1687 = vadd.f32 %v1646, %v1686
    %v1688 = vpop.f32.mrf.mxu0
    %v1689 = vadd.f32 %v1648, %v1688
    %v1690 = vpop.f32.mrf.mxu0
    %v1691 = vpop.f32.mrf.mxu0
    %1692 = vdwg.mxu0
    %v1693 = vadd.f32 %v1687, %v456
    %v1694 = vadd.f32 %v1689, %v460
    %v1695 = vmul.f32 %v1693, 0.5
    %v1696 = vmul.f32 %v1694, 0.5
    %v1697 = vtanh.pop %v1695
    %v1698 = vtanh.pop %v1696
    %v1699 = vadd.f32 %v1697, 1.0
    %v1700 = vadd.f32 %v1698, 1.0
    %v1701 = vmul.f32 %v1699, 0.5
    %v1702 = vmul.f32 %v1700, 0.5
    %v1703 = vtanh.pop %v1694
    %v1704 = vmul.f32 %v1701, %v1403
    %1706 = vrot.lane.b32.xlu0 %v1703, 64
    %v1707 = vpop.permute.xlu0 %1706
    %v1709 = vmul.f32 %v1701, %v1707
    %1711 = vrot.lane.b32.xlu0 %v1709, 64
    %v1712 = vpop.permute.xlu0 %1711
    %v1714 = vadd.f32 %v1704, %v1712
    %v1715 = vtanh.pop %v1714
    %1717 = vrot.lane.b32.xlu0 %v1715, 64
    %v1718 = vpop.permute.xlu0 %1717
    %v1720 = vmul.f32 %v1702, %v1718
    %v1721 = vpack.c.bf16 %v1523, %v1523
    %v1723 = vsel %vm123, %v1721, 0
    %1725 = vmatprep.subr.bf16.mxu0 0
    %1726 = vmatpush1.bf16.msra.mxu0 0
    %1727 = vmatprep.subr.bf16.mxu0 0
    %1728 = vmatpush1.bf16.msra.mxu0 0
    %1729 = vmatprep.subr.bf16.mxu0 0
    %1730 = vmatpush1.bf16.msra.mxu0 0
    %1731 = vmatprep.subr.bf16.mxu0 0
    %1732 = vmatpush1.bf16.msra.mxu0 0
    %1733 = vmatprep.subr.bf16.mxu0 %v730
    %1734 = vmatpush1.bf16.msra.mxu0 %v729
    %1735 = vmatprep.subr.bf16.mxu0 %v728
    %1736 = vmatpush1.bf16.msra.mxu0 %v727
    %1737 = vmatprep.subr.bf16.mxu0 %v726
    %1738 = vmatpush1.bf16.msra.mxu0 %v725
    %1739 = vmatprep.subr.bf16.mxu0 %v724
    %1740 = vmatpush1.bf16.msra.mxu0 %v723
    %1741 = vmatprep.subr.bf16.mxu0 0
    %1742 = vmatpush2.bf16.msra.mxu0 0
    %1743 = vmatprep.subr.bf16.mxu0 0
    %1744 = vmatpush2.bf16.msra.mxu0 0
    %1745 = vmatprep.subr.bf16.mxu0 0
    %1746 = vmatpush2.bf16.msra.mxu0 0
    %1747 = vmatprep.subr.bf16.mxu0 0
    %1748 = vmatpush2.bf16.msra.mxu0 0
    %1749 = vmatprep.subr.bf16.mxu0 0
    %1750 = vmatpush2.bf16.msra.mxu0 0
    %1751 = vmatprep.subr.bf16.mxu0 0
    %1752 = vmatpush2.bf16.msra.mxu0 0
    %1753 = vmatprep.subr.bf16.mxu0 0
    %1754 = vmatpush2.bf16.msra.mxu0 0
    %1755 = vmatprep.subr.bf16.mxu0 0
    %1756 = vmatpush2.bf16.msra.mxu0 0
    %1757 = vmatprep.mubr.bf16.mxu0 0
    %1758 = vmatmul.mubr.bf16.gmra.mxu0 %v1723
    %v1759 = vpop.f32.mrf.mxu0
    %v1760 = vadd.f32 0.0, %v1759
    %v1761 = vpop.f32.mrf.mxu0
    %v1762 = vadd.f32 0.0, %v1761
    %v1763 = vpop.f32.mrf.mxu0
    %v1764 = vpop.f32.mrf.mxu0
    %1765 = vdwg.mxu0
    %1766 = vmatprep.subr.bf16.mxu0 0
    %1767 = vmatpush1.bf16.msra.mxu0 0
    %1768 = vmatprep.subr.bf16.mxu0 0
    %1769 = vmatpush1.bf16.msra.mxu0 0
    %1770 = vmatprep.subr.bf16.mxu0 0
    %1771 = vmatpush1.bf16.msra.mxu0 0
    %1772 = vmatprep.subr.bf16.mxu0 0
    %1773 = vmatpush1.bf16.msra.mxu0 0
    %1774 = vmatprep.subr.bf16.mxu0 %v811
    %1775 = vmatpush1.bf16.msra.mxu0 %v810
    %1776 = vmatprep.subr.bf16.mxu0 %v809
    %1777 = vmatpush1.bf16.msra.mxu0 %v808
    %1778 = vmatprep.subr.bf16.mxu0 %v807
    %1779 = vmatpush1.bf16.msra.mxu0 %v806
    %1780 = vmatprep.subr.bf16.mxu0 %v805
    %1781 = vmatpush1.bf16.msra.mxu0 %v804
    %1782 = vmatprep.subr.bf16.mxu0 0
    %1783 = vmatpush2.bf16.msra.mxu0 0
    %1784 = vmatprep.subr.bf16.mxu0 0
    %1785 = vmatpush2.bf16.msra.mxu0 0
    %1786 = vmatprep.subr.bf16.mxu0 0
    %1787 = vmatpush2.bf16.msra.mxu0 0
    %1788 = vmatprep.subr.bf16.mxu0 0
    %1789 = vmatpush2.bf16.msra.mxu0 0
    %1790 = vmatprep.subr.bf16.mxu0 0
    %1791 = vmatpush2.bf16.msra.mxu0 0
    %1792 = vmatprep.subr.bf16.mxu0 0
    %1793 = vmatpush2.bf16.msra.mxu0 0
    %1794 = vmatprep.subr.bf16.mxu0 0
    %1795 = vmatpush2.bf16.msra.mxu0 0
    %1796 = vmatprep.subr.bf16.mxu0 0
    %1797 = vmatpush2.bf16.msra.mxu0 0
    %1798 = vmatprep.mubr.bf16.mxu0 0
    %1799 = vmatmul.mubr.bf16.gmra.mxu0 %v1609
    %v1800 = vpop.f32.mrf.mxu0
    %v1801 = vadd.f32 %v1760, %v1800
    %v1802 = vpop.f32.mrf.mxu0
    %v1803 = vadd.f32 %v1762, %v1802
    %v1804 = vpop.f32.mrf.mxu0
    %v1805 = vpop.f32.mrf.mxu0
    %1806 = vdwg.mxu0
    %v1807 = vadd.f32 %v1801, %v867
    %v1808 = vadd.f32 %v1803, %v871
    %v1809 = vmul.f32 %v1807, 0.5
    %v1810 = vmul.f32 %v1808, 0.5
    %v1811 = vtanh.pop %v1809
    %v1812 = vtanh.pop %v1810
    %v1813 = vadd.f32 %v1811, 1.0
    %v1814 = vadd.f32 %v1812, 1.0
    %v1815 = vmul.f32 %v1813, 0.5
    %v1816 = vmul.f32 %v1814, 0.5
    %v1817 = vtanh.pop %v1808
    %v1818 = vmul.f32 %v1815, %v1517
    %1820 = vrot.lane.b32.xlu0 %v1817, 64
    %v1821 = vpop.permute.xlu0 %1820
    %v1823 = vmul.f32 %v1815, %v1821
    %1825 = vrot.lane.b32.xlu0 %v1823, 64
    %v1826 = vpop.permute.xlu0 %1825
    %v1828 = vadd.f32 %v1818, %v1826
    %v1829 = vtanh.pop %v1828
    %1831 = vrot.lane.b32.xlu0 %v1829, 64
    %v1832 = vpop.permute.xlu0 %1831
    %v1834 = vmul.f32 %v1816, %v1832
    %vm1835 = vcmp.eq.s32.totalorder %v72, 3
    %v1836 = vsel %vm1835, 1, 0
    %1837 = vset.pattern.permute.xlu0 0
    %1838 = vperm.xlu0 %1837, %v1836
    %v1839 = vpop.permute.xlu0 %1838
    %vm1840 = vcmp.eq.s32.totalorder %v1839, 1
    %v1841 = vsel %vm1840, %v1834, %v1530
    %s1842 = scalar_lea.vmem [#allocation2], 96
    %v1843 = vld [vmem:[%s1842] sm:$0xff]
    %v1844 = vld [vmem:[%s1842 + $0x8] sm:$0xff]
    %v1845 = vpack.c.bf16 %v1606, %v1606
    %v1847 = vsel %vm123, %v1845, 0
    %1849 = vmatprep.subr.bf16.mxu0 0
    %1850 = vmatpush1.bf16.msra.mxu0 0
    %1851 = vmatprep.subr.bf16.mxu0 0
    %1852 = vmatpush1.bf16.msra.mxu0 0
    %1853 = vmatprep.subr.bf16.mxu0 0
    %1854 = vmatpush1.bf16.msra.mxu0 0
    %1855 = vmatprep.subr.bf16.mxu0 0
    %1856 = vmatpush1.bf16.msra.mxu0 0
    %1857 = vmatprep.subr.bf16.mxu0 %v114
    %1858 = vmatpush1.bf16.msra.mxu0 %v113
    %1859 = vmatprep.subr.bf16.mxu0 %v112
    %1860 = vmatpush1.bf16.msra.mxu0 %v111
    %1861 = vmatprep.subr.bf16.mxu0 %v110
    %1862 = vmatpush1.bf16.msra.mxu0 %v109
    %1863 = vmatprep.subr.bf16.mxu0 %v108
    %1864 = vmatpush1.bf16.msra.mxu0 %v107
    %1865 = vmatprep.subr.bf16.mxu0 0
    %1866 = vmatpush2.bf16.msra.mxu0 0
    %1867 = vmatprep.subr.bf16.mxu0 0
    %1868 = vmatpush2.bf16.msra.mxu0 0
    %1869 = vmatprep.subr.bf16.mxu0 0
    %1870 = vmatpush2.bf16.msra.mxu0 0
    %1871 = vmatprep.subr.bf16.mxu0 0
    %1872 = vmatpush2.bf16.msra.mxu0 0
    %1873 = vmatprep.subr.bf16.mxu0 0
    %1874 = vmatpush2.bf16.msra.mxu0 0
    %1875 = vmatprep.subr.bf16.mxu0 0
    %1876 = vmatpush2.bf16.msra.mxu0 0
    %1877 = vmatprep.subr.bf16.mxu0 0
    %1878 = vmatpush2.bf16.msra.mxu0 0
    %1879 = vmatprep.subr.bf16.mxu0 0
    %1880 = vmatpush2.bf16.msra.mxu0 0
    %1881 = vmatprep.mubr.bf16.mxu0 0
    %1882 = vmatmul.mubr.bf16.gmra.mxu0 %v1847
    %v1883 = vpop.f32.mrf.mxu0
    %v1884 = vadd.f32 0.0, %v1883
    %v1885 = vpop.f32.mrf.mxu0
    %v1886 = vadd.f32 0.0, %v1885
    %v1887 = vpop.f32.mrf.mxu0
    %v1888 = vpop.f32.mrf.mxu0
    %1889 = vdwg.mxu0
    %v1890 = vadd.f32 %v1843, %v1884
    %v1891 = vadd.f32 %v1844, %v1886
    %v1892 = vmul.f32 %v1890, 0.5
    %v1893 = vmul.f32 %v1891, 0.5
    %v1894 = vtanh.pop %v1892
    %v1895 = vtanh.pop %v1893
    %v1896 = vadd.f32 %v1894, 1.0
    %v1897 = vadd.f32 %v1895, 1.0
    %v1898 = vmul.f32 %v1896, 0.5
    %v1899 = vmul.f32 %v1897, 0.5
    %v1900 = vtanh.pop %v1891
    %v1901 = vmul.f32 %v1898, %v1600
    %1903 = vrot.lane.b32.xlu0 %v1900, 64
    %v1904 = vpop.permute.xlu0 %1903
    %v1906 = vmul.f32 %v1898, %v1904
    %1908 = vrot.lane.b32.xlu0 %v1906, 64
    %v1909 = vpop.permute.xlu0 %1908
    %v1911 = vadd.f32 %v1901, %v1909
    %v1912 = vtanh.pop %v1911
    %1914 = vrot.lane.b32.xlu0 %v1912, 64
    %v1915 = vpop.permute.xlu0 %1914
    %v1917 = vmul.f32 %v1899, %v1915
    %v1918 = vpack.c.bf16 %v1720, %v1720
    %v1920 = vsel %vm123, %v1918, 0
    %1922 = vmatprep.subr.bf16.mxu0 0
    %1923 = vmatpush1.bf16.msra.mxu0 0
    %1924 = vmatprep.subr.bf16.mxu0 0
    %1925 = vmatpush1.bf16.msra.mxu0 0
    %1926 = vmatprep.subr.bf16.mxu0 0
    %1927 = vmatpush1.bf16.msra.mxu0 0
    %1928 = vmatprep.subr.bf16.mxu0 0
    %1929 = vmatpush1.bf16.msra.mxu0 0
    %1930 = vmatprep.subr.bf16.mxu0 %v320
    %1931 = vmatpush1.bf16.msra.mxu0 %v319
    %1932 = vmatprep.subr.bf16.mxu0 %v318
    %1933 = vmatpush1.bf16.msra.mxu0 %v317
    %1934 = vmatprep.subr.bf16.mxu0 %v316
    %1935 = vmatpush1.bf16.msra.mxu0 %v315
    %1936 = vmatprep.subr.bf16.mxu0 %v314
    %1937 = vmatpush1.bf16.msra.mxu0 %v313
    %1938 = vmatprep.subr.bf16.mxu0 0
    %1939 = vmatpush2.bf16.msra.mxu0 0
    %1940 = vmatprep.subr.bf16.mxu0 0
    %1941 = vmatpush2.bf16.msra.mxu0 0
    %1942 = vmatprep.subr.bf16.mxu0 0
    %1943 = vmatpush2.bf16.msra.mxu0 0
    %1944 = vmatprep.subr.bf16.mxu0 0
    %1945 = vmatpush2.bf16.msra.mxu0 0
    %1946 = vmatprep.subr.bf16.mxu0 0
    %1947 = vmatpush2.bf16.msra.mxu0 0
    %1948 = vmatprep.subr.bf16.mxu0 0
    %1949 = vmatpush2.bf16.msra.mxu0 0
    %1950 = vmatprep.subr.bf16.mxu0 0
    %1951 = vmatpush2.bf16.msra.mxu0 0
    %1952 = vmatprep.subr.bf16.mxu0 0
    %1953 = vmatpush2.bf16.msra.mxu0 0
    %1954 = vmatprep.mubr.bf16.mxu0 0
    %1955 = vmatmul.mubr.bf16.gmra.mxu0 %v1920
    %v1956 = vpop.f32.mrf.mxu0
    %v1957 = vadd.f32 0.0, %v1956
    %v1958 = vpop.f32.mrf.mxu0
    %v1959 = vadd.f32 0.0, %v1958
    %v1960 = vpop.f32.mrf.mxu0
    %v1961 = vpop.f32.mrf.mxu0
    %1962 = vdwg.mxu0
    %1963 = vmatprep.subr.bf16.mxu0 0
    %1964 = vmatpush1.bf16.msra.mxu0 0
    %1965 = vmatprep.subr.bf16.mxu0 0
    %1966 = vmatpush1.bf16.msra.mxu0 0
    %1967 = vmatprep.subr.bf16.mxu0 0
    %1968 = vmatpush1.bf16.msra.mxu0 0
    %1969 = vmatprep.subr.bf16.mxu0 0
    %1970 = vmatpush1.bf16.msra.mxu0 0
    %1971 = vmatprep.subr.bf16.mxu0 %v401
    %1972 = vmatpush1.bf16.msra.mxu0 %v400
    %1973 = vmatprep.subr.bf16.mxu0 %v399
    %1974 = vmatpush1.bf16.msra.mxu0 %v398
    %1975 = vmatprep.subr.bf16.mxu0 %v397
    %1976 = vmatpush1.bf16.msra.mxu0 %v396
    %1977 = vmatprep.subr.bf16.mxu0 %v395
    %1978 = vmatpush1.bf16.msra.mxu0 %v394
    %1979 = vmatprep.subr.bf16.mxu0 0
    %1980 = vmatpush2.bf16.msra.mxu0 0
    %1981 = vmatprep.subr.bf16.mxu0 0
    %1982 = vmatpush2.bf16.msra.mxu0 0
    %1983 = vmatprep.subr.bf16.mxu0 0
    %1984 = vmatpush2.bf16.msra.mxu0 0
    %1985 = vmatprep.subr.bf16.mxu0 0
    %1986 = vmatpush2.bf16.msra.mxu0 0
    %1987 = vmatprep.subr.bf16.mxu0 0
    %1988 = vmatpush2.bf16.msra.mxu0 0
    %1989 = vmatprep.subr.bf16.mxu0 0
    %1990 = vmatpush2.bf16.msra.mxu0 0
    %1991 = vmatprep.subr.bf16.mxu0 0
    %1992 = vmatpush2.bf16.msra.mxu0 0
    %1993 = vmatprep.subr.bf16.mxu0 0
    %1994 = vmatpush2.bf16.msra.mxu0 0
    %1995 = vmatprep.mubr.bf16.mxu0 0
    %1996 = vmatmul.mubr.bf16.gmra.mxu0 %v1847
    %v1997 = vpop.f32.mrf.mxu0
    %v1998 = vadd.f32 %v1957, %v1997
    %v1999 = vpop.f32.mrf.mxu0
    %v2000 = vadd.f32 %v1959, %v1999
    %v2001 = vpop.f32.mrf.mxu0
    %v2002 = vpop.f32.mrf.mxu0
    %2003 = vdwg.mxu0
    %v2004 = vadd.f32 %v1998, %v456
    %v2005 = vadd.f32 %v2000, %v460
    %v2006 = vmul.f32 %v2004, 0.5
    %v2007 = vmul.f32 %v2005, 0.5
    %v2008 = vtanh.pop %v2006
    %v2009 = vtanh.pop %v2007
    %v2010 = vadd.f32 %v2008, 1.0
    %v2011 = vadd.f32 %v2009, 1.0
    %v2012 = vmul.f32 %v2010, 0.5
    %v2013 = vmul.f32 %v2011, 0.5
    %v2014 = vtanh.pop %v2005
    %v2015 = vmul.f32 %v2012, %v1714
    %2017 = vrot.lane.b32.xlu0 %v2014, 64
    %v2018 = vpop.permute.xlu0 %2017
    %v2020 = vmul.f32 %v2012, %v2018
    %2022 = vrot.lane.b32.xlu0 %v2020, 64
    %v2023 = vpop.permute.xlu0 %2022
    %v2025 = vadd.f32 %v2015, %v2023
    %v2026 = vtanh.pop %v2025
    %2028 = vrot.lane.b32.xlu0 %v2026, 64
    %v2029 = vpop.permute.xlu0 %2028
    %v2031 = vmul.f32 %v2013, %v2029
    %v2032 = vpack.c.bf16 %v1834, %v1834
    %v2034 = vsel %vm123, %v2032, 0
    %2036 = vmatprep.subr.bf16.mxu0 0
    %2037 = vmatpush1.bf16.msra.mxu0 0
    %2038 = vmatprep.subr.bf16.mxu0 0
    %2039 = vmatpush1.bf16.msra.mxu0 0
    %2040 = vmatprep.subr.bf16.mxu0 0
    %2041 = vmatpush1.bf16.msra.mxu0 0
    %2042 = vmatprep.subr.bf16.mxu0 0
    %2043 = vmatpush1.bf16.msra.mxu0 0
    %2044 = vmatprep.subr.bf16.mxu0 %v730
    %2045 = vmatpush1.bf16.msra.mxu0 %v729
    %2046 = vmatprep.subr.bf16.mxu0 %v728
    %2047 = vmatpush1.bf16.msra.mxu0 %v727
    %2048 = vmatprep.subr.bf16.mxu0 %v726
    %2049 = vmatpush1.bf16.msra.mxu0 %v725
    %2050 = vmatprep.subr.bf16.mxu0 %v724
    %2051 = vmatpush1.bf16.msra.mxu0 %v723
    %2052 = vmatprep.subr.bf16.mxu0 0
    %2053 = vmatpush2.bf16.msra.mxu0 0
    %2054 = vmatprep.subr.bf16.mxu0 0
    %2055 = vmatpush2.bf16.msra.mxu0 0
    %2056 = vmatprep.subr.bf16.mxu0 0
    %2057 = vmatpush2.bf16.msra.mxu0 0
    %2058 = vmatprep.subr.bf16.mxu0 0
    %2059 = vmatpush2.bf16.msra.mxu0 0
    %2060 = vmatprep.subr.bf16.mxu0 0
    %2061 = vmatpush2.bf16.msra.mxu0 0
    %2062 = vmatprep.subr.bf16.mxu0 0
    %2063 = vmatpush2.bf16.msra.mxu0 0
    %2064 = vmatprep.subr.bf16.mxu0 0
    %2065 = vmatpush2.bf16.msra.mxu0 0
    %2066 = vmatprep.subr.bf16.mxu0 0
    %2067 = vmatpush2.bf16.msra.mxu0 0
    %2068 = vmatprep.mubr.bf16.mxu0 0
    %2069 = vmatmul.mubr.bf16.gmra.mxu0 %v2034
    %v2070 = vpop.f32.mrf.mxu0
    %v2071 = vadd.f32 0.0, %v2070
    %v2072 = vpop.f32.mrf.mxu0
    %v2073 = vadd.f32 0.0, %v2072
    %v2074 = vpop.f32.mrf.mxu0
    %v2075 = vpop.f32.mrf.mxu0
    %2076 = vdwg.mxu0
    %2077 = vmatprep.subr.bf16.mxu0 0
    %2078 = vmatpush1.bf16.msra.mxu0 0
    %2079 = vmatprep.subr.bf16.mxu0 0
    %2080 = vmatpush1.bf16.msra.mxu0 0
    %2081 = vmatprep.subr.bf16.mxu0 0
    %2082 = vmatpush1.bf16.msra.mxu0 0
    %2083 = vmatprep.subr.bf16.mxu0 0
    %2084 = vmatpush1.bf16.msra.mxu0 0
    %2085 = vmatprep.subr.bf16.mxu0 %v811
    %2086 = vmatpush1.bf16.msra.mxu0 %v810
    %2087 = vmatprep.subr.bf16.mxu0 %v809
    %2088 = vmatpush1.bf16.msra.mxu0 %v808
    %2089 = vmatprep.subr.bf16.mxu0 %v807
    %2090 = vmatpush1.bf16.msra.mxu0 %v806
    %2091 = vmatprep.subr.bf16.mxu0 %v805
    %2092 = vmatpush1.bf16.msra.mxu0 %v804
    %2093 = vmatprep.subr.bf16.mxu0 0
    %2094 = vmatpush2.bf16.msra.mxu0 0
    %2095 = vmatprep.subr.bf16.mxu0 0
    %2096 = vmatpush2.bf16.msra.mxu0 0
    %2097 = vmatprep.subr.bf16.mxu0 0
    %2098 = vmatpush2.bf16.msra.mxu0 0
    %2099 = vmatprep.subr.bf16.mxu0 0
    %2100 = vmatpush2.bf16.msra.mxu0 0
    %2101 = vmatprep.subr.bf16.mxu0 0
    %2102 = vmatpush2.bf16.msra.mxu0 0
    %2103 = vmatprep.subr.bf16.mxu0 0
    %2104 = vmatpush2.bf16.msra.mxu0 0
    %2105 = vmatprep.subr.bf16.mxu0 0
    %2106 = vmatpush2.bf16.msra.mxu0 0
    %2107 = vmatprep.subr.bf16.mxu0 0
    %2108 = vmatpush2.bf16.msra.mxu0 0
    %2109 = vmatprep.mubr.bf16.mxu0 0
    %2110 = vmatmul.mubr.bf16.gmra.mxu0 %v1920
    %v2111 = vpop.f32.mrf.mxu0
    %v2112 = vadd.f32 %v2071, %v2111
    %v2113 = vpop.f32.mrf.mxu0
    %v2114 = vadd.f32 %v2073, %v2113
    %v2115 = vpop.f32.mrf.mxu0
    %v2116 = vpop.f32.mrf.mxu0
    %2117 = vdwg.mxu0
    %v2118 = vadd.f32 %v2112, %v867
    %v2119 = vadd.f32 %v2114, %v871
    %v2120 = vmul.f32 %v2118, 0.5
    %v2121 = vmul.f32 %v2119, 0.5
    %v2122 = vtanh.pop %v2120
    %v2123 = vtanh.pop %v2121
    %v2124 = vadd.f32 %v2122, 1.0
    %v2125 = vadd.f32 %v2123, 1.0
    %v2126 = vmul.f32 %v2124, 0.5
    %v2127 = vmul.f32 %v2125, 0.5
    %v2128 = vtanh.pop %v2119
    %v2129 = vmul.f32 %v2126, %v1828
    %2131 = vrot.lane.b32.xlu0 %v2128, 64
    %v2132 = vpop.permute.xlu0 %2131
    %v2134 = vmul.f32 %v2126, %v2132
    %2136 = vrot.lane.b32.xlu0 %v2134, 64
    %v2137 = vpop.permute.xlu0 %2136
    %v2139 = vadd.f32 %v2129, %v2137
    %v2140 = vtanh.pop %v2139
    %2142 = vrot.lane.b32.xlu0 %v2140, 64
    %v2143 = vpop.permute.xlu0 %2142
    %v2145 = vmul.f32 %v2127, %v2143
    %vm2146 = vcmp.eq.s32.totalorder %v72, 4
    %v2147 = vsel %vm2146, 1, 0
    %2148 = vset.pattern.permute.xlu0 0
    %2149 = vperm.xlu0 %2148, %v2147
    %v2150 = vpop.permute.xlu0 %2149
    %vm2151 = vcmp.eq.s32.totalorder %v2150, 1
    %v2152 = vsel %vm2151, %v2145, %v1841
    %s2153 = scalar_lea.vmem [#allocation2], 112
    %v2154 = vld [vmem:[%s2153] sm:$0xff]
    %v2155 = vld [vmem:[%s2153 + $0x8] sm:$0xff]
    %v2156 = vpack.c.bf16 %v1917, %v1917
    %v2158 = vsel %vm123, %v2156, 0
    %2160 = vmatprep.subr.bf16.mxu0 0
    %2161 = vmatpush1.bf16.msra.mxu0 0
    %2162 = vmatprep.subr.bf16.mxu0 0
    %2163 = vmatpush1.bf16.msra.mxu0 0
    %2164 = vmatprep.subr.bf16.mxu0 0
    %2165 = vmatpush1.bf16.msra.mxu0 0
    %2166 = vmatprep.subr.bf16.mxu0 0
    %2167 = vmatpush1.bf16.msra.mxu0 0
    %2168 = vmatprep.subr.bf16.mxu0 %v114
    %2169 = vmatpush1.bf16.msra.mxu0 %v113
    %2170 = vmatprep.subr.bf16.mxu0 %v112
    %2171 = vmatpush1.bf16.msra.mxu0 %v111
    %2172 = vmatprep.subr.bf16.mxu0 %v110
    %2173 = vmatpush1.bf16.msra.mxu0 %v109
    %2174 = vmatprep.subr.bf16.mxu0 %v108
    %2175 = vmatpush1.bf16.msra.mxu0 %v107
    %2176 = vmatprep.subr.bf16.mxu0 0
    %2177 = vmatpush2.bf16.msra.mxu0 0
    %2178 = vmatprep.subr.bf16.mxu0 0
    %2179 = vmatpush2.bf16.msra.mxu0 0
    %2180 = vmatprep.subr.bf16.mxu0 0
    %2181 = vmatpush2.bf16.msra.mxu0 0
    %2182 = vmatprep.subr.bf16.mxu0 0
    %2183 = vmatpush2.bf16.msra.mxu0 0
    %2184 = vmatprep.subr.bf16.mxu0 0
    %2185 = vmatpush2.bf16.msra.mxu0 0
    %2186 = vmatprep.subr.bf16.mxu0 0
    %2187 = vmatpush2.bf16.msra.mxu0 0
    %2188 = vmatprep.subr.bf16.mxu0 0
    %2189 = vmatpush2.bf16.msra.mxu0 0
    %2190 = vmatprep.subr.bf16.mxu0 0
    %2191 = vmatpush2.bf16.msra.mxu0 0
    %2192 = vmatprep.mubr.bf16.mxu0 0
    %2193 = vmatmul.mubr.bf16.gmra.mxu0 %v2158
    %v2194 = vpop.f32.mrf.mxu0
    %v2195 = vadd.f32 0.0, %v2194
    %v2196 = vpop.f32.mrf.mxu0
    %v2197 = vadd.f32 0.0, %v2196
    %v2198 = vpop.f32.mrf.mxu0
    %v2199 = vpop.f32.mrf.mxu0
    %2200 = vdwg.mxu0
    %v2201 = vadd.f32 %v2154, %v2195
    %v2202 = vadd.f32 %v2155, %v2197
    %v2203 = vmul.f32 %v2201, 0.5
    %v2204 = vmul.f32 %v2202, 0.5
    %v2205 = vtanh.pop %v2203
    %v2206 = vtanh.pop %v2204
    %v2207 = vadd.f32 %v2205, 1.0
    %v2208 = vadd.f32 %v2206, 1.0
    %v2209 = vmul.f32 %v2207, 0.5
    %v2210 = vmul.f32 %v2208, 0.5
    %v2211 = vtanh.pop %v2202
    %v2212 = vmul.f32 %v2209, %v1911
    %2214 = vrot.lane.b32.xlu0 %v2211, 64
    %v2215 = vpop.permute.xlu0 %2214
    %v2217 = vmul.f32 %v2209, %v2215
    %2219 = vrot.lane.b32.xlu0 %v2217, 64
    %v2220 = vpop.permute.xlu0 %2219
    %v2222 = vadd.f32 %v2212, %v2220
    %v2223 = vtanh.pop %v2222
    %2225 = vrot.lane.b32.xlu0 %v2223, 64
    %v2226 = vpop.permute.xlu0 %2225
    %v2228 = vmul.f32 %v2210, %v2226
    %v2229 = vpack.c.bf16 %v2031, %v2031
    %v2231 = vsel %vm123, %v2229, 0
    %2233 = vmatprep.subr.bf16.mxu0 0
    %2234 = vmatpush1.bf16.msra.mxu0 0
    %2235 = vmatprep.subr.bf16.mxu0 0
    %2236 = vmatpush1.bf16.msra.mxu0 0
    %2237 = vmatprep.subr.bf16.mxu0 0
    %2238 = vmatpush1.bf16.msra.mxu0 0
    %2239 = vmatprep.subr.bf16.mxu0 0
    %2240 = vmatpush1.bf16.msra.mxu0 0
    %2241 = vmatprep.subr.bf16.mxu0 %v320
    %2242 = vmatpush1.bf16.msra.mxu0 %v319
    %2243 = vmatprep.subr.bf16.mxu0 %v318
    %2244 = vmatpush1.bf16.msra.mxu0 %v317
    %2245 = vmatprep.subr.bf16.mxu0 %v316
    %2246 = vmatpush1.bf16.msra.mxu0 %v315
    %2247 = vmatprep.subr.bf16.mxu0 %v314
    %2248 = vmatpush1.bf16.msra.mxu0 %v313
    %2249 = vmatprep.subr.bf16.mxu0 0
    %2250 = vmatpush2.bf16.msra.mxu0 0
    %2251 = vmatprep.subr.bf16.mxu0 0
    %2252 = vmatpush2.bf16.msra.mxu0 0
    %2253 = vmatprep.subr.bf16.mxu0 0
    %2254 = vmatpush2.bf16.msra.mxu0 0
    %2255 = vmatprep.subr.bf16.mxu0 0
    %2256 = vmatpush2.bf16.msra.mxu0 0
    %2257 = vmatprep.subr.bf16.mxu0 0
    %2258 = vmatpush2.bf16.msra.mxu0 0
    %2259 = vmatprep.subr.bf16.mxu0 0
    %2260 = vmatpush2.bf16.msra.mxu0 0
    %2261 = vmatprep.subr.bf16.mxu0 0
    %2262 = vmatpush2.bf16.msra.mxu0 0
    %2263 = vmatprep.subr.bf16.mxu0 0
    %2264 = vmatpush2.bf16.msra.mxu0 0
    %2265 = vmatprep.mubr.bf16.mxu0 0
    %2266 = vmatmul.mubr.bf16.gmra.mxu0 %v2231
    %v2267 = vpop.f32.mrf.mxu0
    %v2268 = vadd.f32 0.0, %v2267
    %v2269 = vpop.f32.mrf.mxu0
    %v2270 = vadd.f32 0.0, %v2269
    %v2271 = vpop.f32.mrf.mxu0
    %v2272 = vpop.f32.mrf.mxu0
    %2273 = vdwg.mxu0
    %2274 = vmatprep.subr.bf16.mxu0 0
    %2275 = vmatpush1.bf16.msra.mxu0 0
    %2276 = vmatprep.subr.bf16.mxu0 0
    %2277 = vmatpush1.bf16.msra.mxu0 0
    %2278 = vmatprep.subr.bf16.mxu0 0
    %2279 = vmatpush1.bf16.msra.mxu0 0
    %2280 = vmatprep.subr.bf16.mxu0 0
    %2281 = vmatpush1.bf16.msra.mxu0 0
    %2282 = vmatprep.subr.bf16.mxu0 %v401
    %2283 = vmatpush1.bf16.msra.mxu0 %v400
    %2284 = vmatprep.subr.bf16.mxu0 %v399
    %2285 = vmatpush1.bf16.msra.mxu0 %v398
    %2286 = vmatprep.subr.bf16.mxu0 %v397
    %2287 = vmatpush1.bf16.msra.mxu0 %v396
    %2288 = vmatprep.subr.bf16.mxu0 %v395
    %2289 = vmatpush1.bf16.msra.mxu0 %v394
    %2290 = vmatprep.subr.bf16.mxu0 0
    %2291 = vmatpush2.bf16.msra.mxu0 0
    %2292 = vmatprep.subr.bf16.mxu0 0
    %2293 = vmatpush2.bf16.msra.mxu0 0
    %2294 = vmatprep.subr.bf16.mxu0 0
    %2295 = vmatpush2.bf16.msra.mxu0 0
    %2296 = vmatprep.subr.bf16.mxu0 0
    %2297 = vmatpush2.bf16.msra.mxu0 0
    %2298 = vmatprep.subr.bf16.mxu0 0
    %2299 = vmatpush2.bf16.msra.mxu0 0
    %2300 = vmatprep.subr.bf16.mxu0 0
    %2301 = vmatpush2.bf16.msra.mxu0 0
    %2302 = vmatprep.subr.bf16.mxu0 0
    %2303 = vmatpush2.bf16.msra.mxu0 0
    %2304 = vmatprep.subr.bf16.mxu0 0
    %2305 = vmatpush2.bf16.msra.mxu0 0
    %2306 = vmatprep.mubr.bf16.mxu0 0
    %2307 = vmatmul.mubr.bf16.gmra.mxu0 %v2158
    %v2308 = vpop.f32.mrf.mxu0
    %v2309 = vadd.f32 %v2268, %v2308
    %v2310 = vpop.f32.mrf.mxu0
    %v2311 = vadd.f32 %v2270, %v2310
    %v2312 = vpop.f32.mrf.mxu0
    %v2313 = vpop.f32.mrf.mxu0
    %2314 = vdwg.mxu0
    %v2315 = vadd.f32 %v2309, %v456
    %v2316 = vadd.f32 %v2311, %v460
    %v2317 = vmul.f32 %v2315, 0.5
    %v2318 = vmul.f32 %v2316, 0.5
    %v2319 = vtanh.pop %v2317
    %v2320 = vtanh.pop %v2318
    %v2321 = vadd.f32 %v2319, 1.0
    %v2322 = vadd.f32 %v2320, 1.0
    %v2323 = vmul.f32 %v2321, 0.5
    %v2324 = vmul.f32 %v2322, 0.5
    %v2325 = vtanh.pop %v2316
    %v2326 = vmul.f32 %v2323, %v2025
    %2328 = vrot.lane.b32.xlu0 %v2325, 64
    %v2329 = vpop.permute.xlu0 %2328
    %v2331 = vmul.f32 %v2323, %v2329
    %2333 = vrot.lane.b32.xlu0 %v2331, 64
    %v2334 = vpop.permute.xlu0 %2333
    %v2336 = vadd.f32 %v2326, %v2334
    %v2337 = vtanh.pop %v2336
    %2339 = vrot.lane.b32.xlu0 %v2337, 64
    %v2340 = vpop.permute.xlu0 %2339
    %v2342 = vmul.f32 %v2324, %v2340
    %v2343 = vpack.c.bf16 %v2145, %v2145
    %v2345 = vsel %vm123, %v2343, 0
    %2347 = vmatprep.subr.bf16.mxu0 0
    %2348 = vmatpush1.bf16.msra.mxu0 0
    %2349 = vmatprep.subr.bf16.mxu0 0
    %2350 = vmatpush1.bf16.msra.mxu0 0
    %2351 = vmatprep.subr.bf16.mxu0 0
    %2352 = vmatpush1.bf16.msra.mxu0 0
    %2353 = vmatprep.subr.bf16.mxu0 0
    %2354 = vmatpush1.bf16.msra.mxu0 0
    %2355 = vmatprep.subr.bf16.mxu0 %v730
    %2356 = vmatpush1.bf16.msra.mxu0 %v729
    %2357 = vmatprep.subr.bf16.mxu0 %v728
    %2358 = vmatpush1.bf16.msra.mxu0 %v727
    %2359 = vmatprep.subr.bf16.mxu0 %v726
    %2360 = vmatpush1.bf16.msra.mxu0 %v725
    %2361 = vmatprep.subr.bf16.mxu0 %v724
    %2362 = vmatpush1.bf16.msra.mxu0 %v723
    %2363 = vmatprep.subr.bf16.mxu0 0
    %2364 = vmatpush2.bf16.msra.mxu0 0
    %2365 = vmatprep.subr.bf16.mxu0 0
    %2366 = vmatpush2.bf16.msra.mxu0 0
    %2367 = vmatprep.subr.bf16.mxu0 0
    %2368 = vmatpush2.bf16.msra.mxu0 0
    %2369 = vmatprep.subr.bf16.mxu0 0
    %2370 = vmatpush2.bf16.msra.mxu0 0
    %2371 = vmatprep.subr.bf16.mxu0 0
    %2372 = vmatpush2.bf16.msra.mxu0 0
    %2373 = vmatprep.subr.bf16.mxu0 0
    %2374 = vmatpush2.bf16.msra.mxu0 0
    %2375 = vmatprep.subr.bf16.mxu0 0
    %2376 = vmatpush2.bf16.msra.mxu0 0
    %2377 = vmatprep.subr.bf16.mxu0 0
    %2378 = vmatpush2.bf16.msra.mxu0 0
    %2379 = vmatprep.mubr.bf16.mxu0 0
    %2380 = vmatmul.mubr.bf16.gmra.mxu0 %v2345
    %v2381 = vpop.f32.mrf.mxu0
    %v2382 = vadd.f32 0.0, %v2381
    %v2383 = vpop.f32.mrf.mxu0
    %v2384 = vadd.f32 0.0, %v2383
    %v2385 = vpop.f32.mrf.mxu0
    %v2386 = vpop.f32.mrf.mxu0
    %2387 = vdwg.mxu0
    %2388 = vmatprep.subr.bf16.mxu0 0
    %2389 = vmatpush1.bf16.msra.mxu0 0
    %2390 = vmatprep.subr.bf16.mxu0 0
    %2391 = vmatpush1.bf16.msra.mxu0 0
    %2392 = vmatprep.subr.bf16.mxu0 0
    %2393 = vmatpush1.bf16.msra.mxu0 0
    %2394 = vmatprep.subr.bf16.mxu0 0
    %2395 = vmatpush1.bf16.msra.mxu0 0
    %2396 = vmatprep.subr.bf16.mxu0 %v811
    %2397 = vmatpush1.bf16.msra.mxu0 %v810
    %2398 = vmatprep.subr.bf16.mxu0 %v809
    %2399 = vmatpush1.bf16.msra.mxu0 %v808
    %2400 = vmatprep.subr.bf16.mxu0 %v807
    %2401 = vmatpush1.bf16.msra.mxu0 %v806
    %2402 = vmatprep.subr.bf16.mxu0 %v805
    %2403 = vmatpush1.bf16.msra.mxu0 %v804
    %2404 = vmatprep.subr.bf16.mxu0 0
    %2405 = vmatpush2.bf16.msra.mxu0 0
    %2406 = vmatprep.subr.bf16.mxu0 0
    %2407 = vmatpush2.bf16.msra.mxu0 0
    %2408 = vmatprep.subr.bf16.mxu0 0
    %2409 = vmatpush2.bf16.msra.mxu0 0
    %2410 = vmatprep.subr.bf16.mxu0 0
    %2411 = vmatpush2.bf16.msra.mxu0 0
    %2412 = vmatprep.subr.bf16.mxu0 0
    %2413 = vmatpush2.bf16.msra.mxu0 0
    %2414 = vmatprep.subr.bf16.mxu0 0
    %2415 = vmatpush2.bf16.msra.mxu0 0
    %2416 = vmatprep.subr.bf16.mxu0 0
    %2417 = vmatpush2.bf16.msra.mxu0 0
    %2418 = vmatprep.subr.bf16.mxu0 0
    %2419 = vmatpush2.bf16.msra.mxu0 0
    %2420 = vmatprep.mubr.bf16.mxu0 0
    %2421 = vmatmul.mubr.bf16.gmra.mxu0 %v2231
    %v2422 = vpop.f32.mrf.mxu0
    %v2423 = vadd.f32 %v2382, %v2422
    %v2424 = vpop.f32.mrf.mxu0
    %v2425 = vadd.f32 %v2384, %v2424
    %v2426 = vpop.f32.mrf.mxu0
    %v2427 = vpop.f32.mrf.mxu0
    %2428 = vdwg.mxu0
    %v2429 = vadd.f32 %v2423, %v867
    %v2430 = vadd.f32 %v2425, %v871
    %v2431 = vmul.f32 %v2429, 0.5
    %v2432 = vmul.f32 %v2430, 0.5
    %v2433 = vtanh.pop %v2431
    %v2434 = vtanh.pop %v2432
    %v2435 = vadd.f32 %v2433, 1.0
    %v2436 = vadd.f32 %v2434, 1.0
    %v2437 = vmul.f32 %v2435, 0.5
    %v2438 = vmul.f32 %v2436, 0.5
    %v2439 = vtanh.pop %v2430
    %v2440 = vmul.f32 %v2437, %v2139
    %2442 = vrot.lane.b32.xlu0 %v2439, 64
    %v2443 = vpop.permute.xlu0 %2442
    %v2445 = vmul.f32 %v2437, %v2443
    %2447 = vrot.lane.b32.xlu0 %v2445, 64
    %v2448 = vpop.permute.xlu0 %2447
    %v2450 = vadd.f32 %v2440, %v2448
    %v2451 = vtanh.pop %v2450
    %2453 = vrot.lane.b32.xlu0 %v2451, 64
    %v2454 = vpop.permute.xlu0 %2453
    %v2456 = vmul.f32 %v2438, %v2454
    %vm2457 = vcmp.eq.s32.totalorder %v72, 5
    %v2458 = vsel %vm2457, 1, 0
    %2459 = vset.pattern.permute.xlu0 0
    %2460 = vperm.xlu0 %2459, %v2458
    %v2461 = vpop.permute.xlu0 %2460
    %vm2462 = vcmp.eq.s32.totalorder %v2461, 1
    %v2463 = vsel %vm2462, %v2456, %v2152
    %v2464 = vpack.c.bf16 %v2228, %v2228
    %v2465 = vpack.c.bf16 %v2342, %v2342
    %v2467 = vsel %vm123, %v2465, 0
    %2469 = vmatprep.subr.bf16.mxu0 0
    %2470 = vmatpush1.bf16.msra.mxu0 0
    %2471 = vmatprep.subr.bf16.mxu0 0
    %2472 = vmatpush1.bf16.msra.mxu0 0
    %2473 = vmatprep.subr.bf16.mxu0 0
    %2474 = vmatpush1.bf16.msra.mxu0 0
    %2475 = vmatprep.subr.bf16.mxu0 0
    %2476 = vmatpush1.bf16.msra.mxu0 0
    %2477 = vmatprep.subr.bf16.mxu0 %v320
    %2478 = vmatpush1.bf16.msra.mxu0 %v319
    %2479 = vmatprep.subr.bf16.mxu0 %v318
    %2480 = vmatpush1.bf16.msra.mxu0 %v317
    %2481 = vmatprep.subr.bf16.mxu0 %v316
    %2482 = vmatpush1.bf16.msra.mxu0 %v315
    %2483 = vmatprep.subr.bf16.mxu0 %v314
    %2484 = vmatpush1.bf16.msra.mxu0 %v313
    %2485 = vmatprep.subr.bf16.mxu0 0
    %2486 = vmatpush2.bf16.msra.mxu0 0
    %2487 = vmatprep.subr.bf16.mxu0 0
    %2488 = vmatpush2.bf16.msra.mxu0 0
    %2489 = vmatprep.subr.bf16.mxu0 0
    %2490 = vmatpush2.bf16.msra.mxu0 0
    %2491 = vmatprep.subr.bf16.mxu0 0
    %2492 = vmatpush2.bf16.msra.mxu0 0
    %2493 = vmatprep.subr.bf16.mxu0 0
    %2494 = vmatpush2.bf16.msra.mxu0 0
    %2495 = vmatprep.subr.bf16.mxu0 0
    %2496 = vmatpush2.bf16.msra.mxu0 0
    %2497 = vmatprep.subr.bf16.mxu0 0
    %2498 = vmatpush2.bf16.msra.mxu0 0
    %2499 = vmatprep.subr.bf16.mxu0 0
    %2500 = vmatpush2.bf16.msra.mxu0 0
    %2501 = vmatprep.mubr.bf16.mxu0 0
    %2502 = vmatmul.mubr.bf16.gmra.mxu0 %v2467
    %v2503 = vpop.f32.mrf.mxu0
    %v2504 = vadd.f32 0.0, %v2503
    %v2505 = vpop.f32.mrf.mxu0
    %v2506 = vadd.f32 0.0, %v2505
    %v2507 = vpop.f32.mrf.mxu0
    %v2508 = vpop.f32.mrf.mxu0
    %2509 = vdwg.mxu0
    %v2511 = vsel %vm123, %v2464, 0
    %2513 = vmatprep.subr.bf16.mxu0 0
    %2514 = vmatpush1.bf16.msra.mxu0 0
    %2515 = vmatprep.subr.bf16.mxu0 0
    %2516 = vmatpush1.bf16.msra.mxu0 0
    %2517 = vmatprep.subr.bf16.mxu0 0
    %2518 = vmatpush1.bf16.msra.mxu0 0
    %2519 = vmatprep.subr.bf16.mxu0 0
    %2520 = vmatpush1.bf16.msra.mxu0 0
    %2521 = vmatprep.subr.bf16.mxu0 %v401
    %2522 = vmatpush1.bf16.msra.mxu0 %v400
    %2523 = vmatprep.subr.bf16.mxu0 %v399
    %2524 = vmatpush1.bf16.msra.mxu0 %v398
    %2525 = vmatprep.subr.bf16.mxu0 %v397
    %2526 = vmatpush1.bf16.msra.mxu0 %v396
    %2527 = vmatprep.subr.bf16.mxu0 %v395
    %2528 = vmatpush1.bf16.msra.mxu0 %v394
    %2529 = vmatprep.subr.bf16.mxu0 0
    %2530 = vmatpush2.bf16.msra.mxu0 0
    %2531 = vmatprep.subr.bf16.mxu0 0
    %2532 = vmatpush2.bf16.msra.mxu0 0
    %2533 = vmatprep.subr.bf16.mxu0 0
    %2534 = vmatpush2.bf16.msra.mxu0 0
    %2535 = vmatprep.subr.bf16.mxu0 0
    %2536 = vmatpush2.bf16.msra.mxu0 0
    %2537 = vmatprep.subr.bf16.mxu0 0
    %2538 = vmatpush2.bf16.msra.mxu0 0
    %2539 = vmatprep.subr.bf16.mxu0 0
    %2540 = vmatpush2.bf16.msra.mxu0 0
    %2541 = vmatprep.subr.bf16.mxu0 0
    %2542 = vmatpush2.bf16.msra.mxu0 0
    %2543 = vmatprep.subr.bf16.mxu0 0
    %2544 = vmatpush2.bf16.msra.mxu0 0
    %2545 = vmatprep.mubr.bf16.mxu0 0
    %2546 = vmatmul.mubr.bf16.gmra.mxu0 %v2511
    %v2547 = vpop.f32.mrf.mxu0
    %v2548 = vadd.f32 %v2504, %v2547
    %v2549 = vpop.f32.mrf.mxu0
    %v2550 = vadd.f32 %v2506, %v2549
    %v2551 = vpop.f32.mrf.mxu0
    %v2552 = vpop.f32.mrf.mxu0
    %2553 = vdwg.mxu0
    %v2554 = vadd.f32 %v2548, %v456
    %v2555 = vadd.f32 %v2550, %v460
    %v2556 = vmul.f32 %v2554, 0.5
    %v2557 = vmul.f32 %v2555, 0.5
    %v2558 = vtanh.pop %v2556
    %v2559 = vtanh.pop %v2557
    %v2560 = vadd.f32 %v2558, 1.0
    %v2561 = vadd.f32 %v2559, 1.0
    %v2562 = vmul.f32 %v2560, 0.5
    %v2563 = vmul.f32 %v2561, 0.5
    %v2564 = vtanh.pop %v2555
    %v2565 = vmul.f32 %v2562, %v2336
    %2567 = vrot.lane.b32.xlu0 %v2564, 64
    %v2568 = vpop.permute.xlu0 %2567
    %v2570 = vmul.f32 %v2562, %v2568
    %2572 = vrot.lane.b32.xlu0 %v2570, 64
    %v2573 = vpop.permute.xlu0 %2572
    %v2575 = vadd.f32 %v2565, %v2573
    %v2576 = vtanh.pop %v2575
    %2578 = vrot.lane.b32.xlu0 %v2576, 64
    %v2579 = vpop.permute.xlu0 %2578
    %v2581 = vmul.f32 %v2563, %v2579
    %v2582 = vpack.c.bf16 %v2456, %v2456
    %v2584 = vsel %vm123, %v2582, 0
    %2586 = vmatprep.subr.bf16.mxu0 0
    %2587 = vmatpush1.bf16.msra.mxu0 0
    %2588 = vmatprep.subr.bf16.mxu0 0
    %2589 = vmatpush1.bf16.msra.mxu0 0
    %2590 = vmatprep.subr.bf16.mxu0 0
    %2591 = vmatpush1.bf16.msra.mxu0 0
    %2592 = vmatprep.subr.bf16.mxu0 0
    %2593 = vmatpush1.bf16.msra.mxu0 0
    %2594 = vmatprep.subr.bf16.mxu0 %v730
    %2595 = vmatpush1.bf16.msra.mxu0 %v729
    %2596 = vmatprep.subr.bf16.mxu0 %v728
    %2597 = vmatpush1.bf16.msra.mxu0 %v727
    %2598 = vmatprep.subr.bf16.mxu0 %v726
    %2599 = vmatpush1.bf16.msra.mxu0 %v725
    %2600 = vmatprep.subr.bf16.mxu0 %v724
    %2601 = vmatpush1.bf16.msra.mxu0 %v723
    %2602 = vmatprep.subr.bf16.mxu0 0
    %2603 = vmatpush2.bf16.msra.mxu0 0
    %2604 = vmatprep.subr.bf16.mxu0 0
    %2605 = vmatpush2.bf16.msra.mxu0 0
    %2606 = vmatprep.subr.bf16.mxu0 0
    %2607 = vmatpush2.bf16.msra.mxu0 0
    %2608 = vmatprep.subr.bf16.mxu0 0
    %2609 = vmatpush2.bf16.msra.mxu0 0
    %2610 = vmatprep.subr.bf16.mxu0 0
    %2611 = vmatpush2.bf16.msra.mxu0 0
    %2612 = vmatprep.subr.bf16.mxu0 0
    %2613 = vmatpush2.bf16.msra.mxu0 0
    %2614 = vmatprep.subr.bf16.mxu0 0
    %2615 = vmatpush2.bf16.msra.mxu0 0
    %2616 = vmatprep.subr.bf16.mxu0 0
    %2617 = vmatpush2.bf16.msra.mxu0 0
    %2618 = vmatprep.mubr.bf16.mxu0 0
    %2619 = vmatmul.mubr.bf16.gmra.mxu0 %v2584
    %v2620 = vpop.f32.mrf.mxu0
    %v2621 = vadd.f32 0.0, %v2620
    %v2622 = vpop.f32.mrf.mxu0
    %v2623 = vadd.f32 0.0, %v2622
    %v2624 = vpop.f32.mrf.mxu0
    %v2625 = vpop.f32.mrf.mxu0
    %2626 = vdwg.mxu0
    %2627 = vmatprep.subr.bf16.mxu0 0
    %2628 = vmatpush1.bf16.msra.mxu0 0
    %2629 = vmatprep.subr.bf16.mxu0 0
    %2630 = vmatpush1.bf16.msra.mxu0 0
    %2631 = vmatprep.subr.bf16.mxu0 0
    %2632 = vmatpush1.bf16.msra.mxu0 0
    %2633 = vmatprep.subr.bf16.mxu0 0
    %2634 = vmatpush1.bf16.msra.mxu0 0
    %2635 = vmatprep.subr.bf16.mxu0 %v811
    %2636 = vmatpush1.bf16.msra.mxu0 %v810
    %2637 = vmatprep.subr.bf16.mxu0 %v809
    %2638 = vmatpush1.bf16.msra.mxu0 %v808
    %2639 = vmatprep.subr.bf16.mxu0 %v807
    %2640 = vmatpush1.bf16.msra.mxu0 %v806
    %2641 = vmatprep.subr.bf16.mxu0 %v805
    %2642 = vmatpush1.bf16.msra.mxu0 %v804
    %2643 = vmatprep.subr.bf16.mxu0 0
    %2644 = vmatpush2.bf16.msra.mxu0 0
    %2645 = vmatprep.subr.bf16.mxu0 0
    %2646 = vmatpush2.bf16.msra.mxu0 0
    %2647 = vmatprep.subr.bf16.mxu0 0
    %2648 = vmatpush2.bf16.msra.mxu0 0
    %2649 = vmatprep.subr.bf16.mxu0 0
    %2650 = vmatpush2.bf16.msra.mxu0 0
    %2651 = vmatprep.subr.bf16.mxu0 0
    %2652 = vmatpush2.bf16.msra.mxu0 0
    %2653 = vmatprep.subr.bf16.mxu0 0
    %2654 = vmatpush2.bf16.msra.mxu0 0
    %2655 = vmatprep.subr.bf16.mxu0 0
    %2656 = vmatpush2.bf16.msra.mxu0 0
    %2657 = vmatprep.subr.bf16.mxu0 0
    %2658 = vmatpush2.bf16.msra.mxu0 0
    %2659 = vmatprep.mubr.bf16.mxu0 0
    %2660 = vmatmul.mubr.bf16.gmra.mxu0 %v2467
    %v2661 = vpop.f32.mrf.mxu0
    %v2662 = vadd.f32 %v2621, %v2661
    %v2663 = vpop.f32.mrf.mxu0
    %v2664 = vadd.f32 %v2623, %v2663
    %v2665 = vpop.f32.mrf.mxu0
    %v2666 = vpop.f32.mrf.mxu0
    %2667 = vdwg.mxu0
    %v2668 = vadd.f32 %v2662, %v867
    %v2669 = vadd.f32 %v2664, %v871
    %v2670 = vmul.f32 %v2668, 0.5
    %v2671 = vmul.f32 %v2669, 0.5
    %v2672 = vtanh.pop %v2670
    %v2673 = vtanh.pop %v2671
    %v2674 = vadd.f32 %v2672, 1.0
    %v2675 = vadd.f32 %v2673, 1.0
    %v2676 = vmul.f32 %v2674, 0.5
    %v2677 = vmul.f32 %v2675, 0.5
    %v2678 = vtanh.pop %v2669
    %v2679 = vmul.f32 %v2676, %v2450
    %2681 = vrot.lane.b32.xlu0 %v2678, 64
    %v2682 = vpop.permute.xlu0 %2681
    %v2684 = vmul.f32 %v2676, %v2682
    %2686 = vrot.lane.b32.xlu0 %v2684, 64
    %v2687 = vpop.permute.xlu0 %2686
    %v2689 = vadd.f32 %v2679, %v2687
    %v2690 = vtanh.pop %v2689
    %2692 = vrot.lane.b32.xlu0 %v2690, 64
    %v2693 = vpop.permute.xlu0 %2692
    %v2695 = vmul.f32 %v2677, %v2693
    %vm2696 = vcmp.eq.s32.totalorder %v72, 6
    %v2697 = vsel %vm2696, 1, 0
    %2698 = vset.pattern.permute.xlu0 0
    %2699 = vperm.xlu0 %2698, %v2697
    %v2700 = vpop.permute.xlu0 %2699
    %vm2701 = vcmp.eq.s32.totalorder %v2700, 1
    %v2702 = vsel %vm2701, %v2695, %v2463
    %v2703 = vpack.c.bf16 %v2581, %v2581
    %v2704 = vpack.c.bf16 %v2695, %v2695
    %v2706 = vsel %vm123, %v2704, 0
    %2708 = vmatprep.subr.bf16.mxu0 0
    %2709 = vmatpush1.bf16.msra.mxu0 0
    %2710 = vmatprep.subr.bf16.mxu0 0
    %2711 = vmatpush1.bf16.msra.mxu0 0
    %2712 = vmatprep.subr.bf16.mxu0 0
    %2713 = vmatpush1.bf16.msra.mxu0 0
    %2714 = vmatprep.subr.bf16.mxu0 0
    %2715 = vmatpush1.bf16.msra.mxu0 0
    %2716 = vmatprep.subr.bf16.mxu0 %v730
    %2717 = vmatpush1.bf16.msra.mxu0 %v729
    %2718 = vmatprep.subr.bf16.mxu0 %v728
    %2719 = vmatpush1.bf16.msra.mxu0 %v727
    %2720 = vmatprep.subr.bf16.mxu0 %v726
    %2721 = vmatpush1.bf16.msra.mxu0 %v725
    %2722 = vmatprep.subr.bf16.mxu0 %v724
    %2723 = vmatpush1.bf16.msra.mxu0 %v723
    %2724 = vmatprep.subr.bf16.mxu0 0
    %2725 = vmatpush2.bf16.msra.mxu0 0
    %2726 = vmatprep.subr.bf16.mxu0 0
    %2727 = vmatpush2.bf16.msra.mxu0 0
    %2728 = vmatprep.subr.bf16.mxu0 0
    %2729 = vmatpush2.bf16.msra.mxu0 0
    %2730 = vmatprep.subr.bf16.mxu0 0
    %2731 = vmatpush2.bf16.msra.mxu0 0
    %2732 = vmatprep.subr.bf16.mxu0 0
    %2733 = vmatpush2.bf16.msra.mxu0 0
    %2734 = vmatprep.subr.bf16.mxu0 0
    %2735 = vmatpush2.bf16.msra.mxu0 0
    %2736 = vmatprep.subr.bf16.mxu0 0
    %2737 = vmatpush2.bf16.msra.mxu0 0
    %2738 = vmatprep.subr.bf16.mxu0 0
    %2739 = vmatpush2.bf16.msra.mxu0 0
    %2740 = vmatprep.mubr.bf16.mxu0 0
    %2741 = vmatmul.mubr.bf16.gmra.mxu0 %v2706
    %v2742 = vpop.f32.mrf.mxu0
    %v2743 = vadd.f32 0.0, %v2742
    %v2744 = vpop.f32.mrf.mxu0
    %v2745 = vadd.f32 0.0, %v2744
    %v2746 = vpop.f32.mrf.mxu0
    %v2747 = vpop.f32.mrf.mxu0
    %2748 = vdwg.mxu0
    %v2750 = vsel %vm123, %v2703, 0
    %2752 = vmatprep.subr.bf16.mxu0 0
    %2753 = vmatpush1.bf16.msra.mxu0 0
    %2754 = vmatprep.subr.bf16.mxu0 0
    %2755 = vmatpush1.bf16.msra.mxu0 0
    %2756 = vmatprep.subr.bf16.mxu0 0
    %2757 = vmatpush1.bf16.msra.mxu0 0
    %2758 = vmatprep.subr.bf16.mxu0 0
    %2759 = vmatpush1.bf16.msra.mxu0 0
    %2760 = vmatprep.subr.bf16.mxu0 %v811
    %2761 = vmatpush1.bf16.msra.mxu0 %v810
    %2762 = vmatprep.subr.bf16.mxu0 %v809
    %2763 = vmatpush1.bf16.msra.mxu0 %v808
    %2764 = vmatprep.subr.bf16.mxu0 %v807
    %2765 = vmatpush1.bf16.msra.mxu0 %v806
    %2766 = vmatprep.subr.bf16.mxu0 %v805
    %2767 = vmatpush1.bf16.msra.mxu0 %v804
    %2768 = vmatprep.subr.bf16.mxu0 0
    %2769 = vmatpush2.bf16.msra.mxu0 0
    %2770 = vmatprep.subr.bf16.mxu0 0
    %2771 = vmatpush2.bf16.msra.mxu0 0
    %2772 = vmatprep.subr.bf16.mxu0 0
    %2773 = vmatpush2.bf16.msra.mxu0 0
    %2774 = vmatprep.subr.bf16.mxu0 0
    %2775 = vmatpush2.bf16.msra.mxu0 0
    %2776 = vmatprep.subr.bf16.mxu0 0
    %2777 = vmatpush2.bf16.msra.mxu0 0
    %2778 = vmatprep.subr.bf16.mxu0 0
    %2779 = vmatpush2.bf16.msra.mxu0 0
    %2780 = vmatprep.subr.bf16.mxu0 0
    %2781 = vmatpush2.bf16.msra.mxu0 0
    %2782 = vmatprep.subr.bf16.mxu0 0
    %2783 = vmatpush2.bf16.msra.mxu0 0
    %2784 = vmatprep.mubr.bf16.mxu0 0
    %2785 = vmatmul.mubr.bf16.gmra.mxu0 %v2750
    %v2786 = vpop.f32.mrf.mxu0
    %v2787 = vadd.f32 %v2743, %v2786
    %v2788 = vpop.f32.mrf.mxu0
    %v2789 = vadd.f32 %v2745, %v2788
    %v2790 = vpop.f32.mrf.mxu0
    %v2791 = vpop.f32.mrf.mxu0
    %2792 = vdwg.mxu0
    %v2793 = vadd.f32 %v2787, %v867
    %v2794 = vadd.f32 %v2789, %v871
    %v2795 = vmul.f32 %v2793, 0.5
    %v2796 = vmul.f32 %v2794, 0.5
    %v2797 = vtanh.pop %v2795
    %v2798 = vtanh.pop %v2796
    %v2799 = vadd.f32 %v2797, 1.0
    %v2800 = vadd.f32 %v2798, 1.0
    %v2801 = vmul.f32 %v2799, 0.5
    %v2802 = vmul.f32 %v2800, 0.5
    %v2803 = vtanh.pop %v2794
    %v2804 = vmul.f32 %v2801, %v2689
    %2806 = vrot.lane.b32.xlu0 %v2803, 64
    %v2807 = vpop.permute.xlu0 %2806
    %v2809 = vmul.f32 %v2801, %v2807
    %2811 = vrot.lane.b32.xlu0 %v2809, 64
    %v2812 = vpop.permute.xlu0 %2811
    %v2814 = vadd.f32 %v2804, %v2812
    %v2815 = vtanh.pop %v2814
    %2817 = vrot.lane.b32.xlu0 %v2815, 64
    %v2818 = vpop.permute.xlu0 %2817
    %v2820 = vmul.f32 %v2802, %v2818
    %vm2821 = vcmp.eq.s32.totalorder %v72, 7
    %v2822 = vsel %vm2821, 1, 0
    %2823 = vset.pattern.permute.xlu0 0
    %2824 = vperm.xlu0 %2823, %v2822
    %v2825 = vpop.permute.xlu0 %2824
    %vm2826 = vcmp.eq.s32.totalorder %v2825, 1
    %v2827 = vsel %vm2826, %v2820, %v2702
    %v2828 = vpack.c.bf16 %v2827, %v2827
    %v2829 = vld [vmem:[%s6] sm:$0xf]
    %v2830 = vld [vmem:[%s6 + $0x4] sm:$0xf]
    %v2831 = vld [vmem:[%s6 + $0x8] sm:$0xf]
    %v2832 = vld [vmem:[%s6 + $0xc] sm:$0xf]
    %v2833 = vld [vmem:[%s6 + $0x10] sm:$0xf]
    %v2834 = vld [vmem:[%s6 + $0x14] sm:$0xf]
    %v2835 = vld [vmem:[%s6 + $0x18] sm:$0xf]
    %v2836 = vld [vmem:[%s6 + $0x1c] sm:$0xf]
    %v2837 = vld [vmem:[%s7] sm:$0x1]
    %v2839 = vlaneseq
    %v2840 = vshrl.u32 %v2839, 7
    %v2841 = vsub.s32 0, %v2840
    %v2842 = vrot.slane %v2837, %v2841
    %v2852 = vunpack.c.l.b16 %v2829
    %v2853 = vunpack.c.l.b16 %v2830
    %v2854 = vunpack.c.l.b16 %v2831
    %v2855 = vunpack.c.l.b16 %v2832
    %v2856 = vunpack.c.l.b16 %v2833
    %v2857 = vunpack.c.l.b16 %v2834
    %v2858 = vunpack.c.l.b16 %v2835
    %v2859 = vunpack.c.l.b16 %v2836
    %v2860 = vpack.c.b16 %v2853, %v2852
    %v2861 = vpack.c.b16 %v2855, %v2854
    %v2862 = vpack.c.b16 %v2857, %v2856
    %v2863 = vpack.c.b16 %v2859, %v2858
    %v2869 = vsel %vm123, %v2828, 0
    %2871 = vmatprep.subr.bf16.mxu0 0
    %2872 = vmatpush1.bf16.msra.mxu0 0
    %2873 = vmatprep.subr.bf16.mxu0 0
    %2874 = vmatpush1.bf16.msra.mxu0 0
    %2875 = vmatprep.subr.bf16.mxu0 0
    %2876 = vmatpush1.bf16.msra.mxu0 0
    %2877 = vmatprep.subr.bf16.mxu0 0
    %2878 = vmatpush1.bf16.msra.mxu0 0
    %2879 = vmatprep.subr.bf16.mxu0 0
    %2880 = vmatpush1.bf16.msra.mxu0 %v2863
    %2881 = vmatprep.subr.bf16.mxu0 0
    %2882 = vmatpush1.bf16.msra.mxu0 %v2862
    %2883 = vmatprep.subr.bf16.mxu0 0
    %2884 = vmatpush1.bf16.msra.mxu0 %v2861
    %2885 = vmatprep.subr.bf16.mxu0 0
    %2886 = vmatpush1.bf16.msra.mxu0 %v2860
    %2887 = vmatprep.subr.bf16.mxu0 0
    %2888 = vmatpush2.bf16.msra.mxu0 0
    %2889 = vmatprep.subr.bf16.mxu0 0
    %2890 = vmatpush2.bf16.msra.mxu0 0
    %2891 = vmatprep.subr.bf16.mxu0 0
    %2892 = vmatpush2.bf16.msra.mxu0 0
    %2893 = vmatprep.subr.bf16.mxu0 0
    %2894 = vmatpush2.bf16.msra.mxu0 0
    %2895 = vmatprep.subr.bf16.mxu0 0
    %2896 = vmatpush2.bf16.msra.mxu0 0
    %2897 = vmatprep.subr.bf16.mxu0 0
    %2898 = vmatpush2.bf16.msra.mxu0 0
    %2899 = vmatprep.subr.bf16.mxu0 0
    %2900 = vmatpush2.bf16.msra.mxu0 0
    %2901 = vmatprep.subr.bf16.mxu0 0
    %2902 = vmatpush2.bf16.msra.mxu0 0
    %2903 = vmatprep.mubr.bf16.mxu0 0
    %2904 = vmatmul.mubr.bf16.gmra.mxu0 %v2869
    %v2905 = vpop.f32.mrf.mxu0
    %v2906 = vadd.f32 %v2842, %v2905
    %v2907 = vpop.f32.mrf.mxu0
    %v2908 = vpop.f32.mrf.mxu0
    %v2909 = vpop.f32.mrf.mxu0
    %2910 = vdwg.mxu0
    %v2911 = vlaneseq
    %v2912 = vand.u32 %v2911, 127
    %vm2913 = vcmp.eq.s32.totalorder %v2912, 0
    %v2914 = vld [vmem:[%s2] sm:$0xff]
    %2916 = vset.pattern.permute.xlu0 0
    %2917 = vperm.xlu0 %2916, %v2914
    %v2918 = vpop.permute.xlu0 %2917
    %v2920 = vsel %vm2913, %v2918, 0.0
    %v2921 = vadd.f32 %v2906, %v2920
    %vm2922 = vcmask 39936
    %2923 = vst.msk [vmem:[#allocation8] sm:$0xff] %vm2922, %v2921
    // Predicated region
    $region46: #{tpu_custom_call.1} parent=1 // pred_check
      _
    $region47: #{tpu_custom_call.1} parent=1 // pred_check_branch
      %2925 = sbr.rel (0) target = $region49
    $region48: #{tpu_custom_call.1} parent=1 // pred_region
      %s2927 = ssub.s32 128, 128
      %2928 = vsyncadd [#allocation4], %s2927
      %s2930 = sshll.u32 [#allocation8], 4
      %s2931 = int_to_ptr.vmem [resolvable:$true] %s2930
      %2933 = dma.vmem_to_hbm [thread:$0]  %s2931, 128, %s8, [#allocation4]
    $region49: #{tpu_custom_call.1} parent=1 // pred_fallthru
      _
    // Predicated region
    $region50: #{tpu_custom_call.1} parent=1 // pred_check
      _
    $region51: #{tpu_custom_call.1} parent=1 // pred_check_branch
      %2935 = sbr.rel (0) target = $region53
    $region52: #{tpu_custom_call.1} parent=1 // pred_region
      %2936 = dma.done [#allocation4], 128
    $region53: #{tpu_custom_call.1} parent=1 // pred_fallthru
      _
    %2937 = vsyncpa [#allocation3], 1
    %2938 = vsyncpa [#allocation6], 1
    %2939 = vsyncpa [#allocation4], 1

</llo_original>
